<compile_context>
chip_gen: v6e
topology: v6e:2x2x1
jax: 0.10.0
libtpu: 0.0.40
codegen_flags: <defaults>
</compile_context>

<pallas_src>
import functools

import jax
import jax.numpy as jnp
from jax import lax
from jax.experimental import pallas as pl
from jax.experimental.pallas import tpu as pltpu


def _fused_lstm_kernel(*refs, n_layers, seq_len, block_t, hidden, tail_mask):
    """Fused multi-layer LSTM recurrence over one block of `block_t` timesteps.

    Inputs (in order):
      gx0_ref : (block_t, B, 4H) bf16  layer-0 x @ W_ih0 + b0 (precomputed)
      whh_ref : (L, H, 4H)       bf16  recurrent weights, all layers
      [L > 1 only]
      wih_ref : (L-1, H, 4H)     bf16  input weights for layers 1..L-1
      b_ref   : (L-1, 1, 4H)     f32   biases (b_ih + b_hh) for layers 1..L-1
    Outputs:
      out_ref : (block_t, B, H) f32    last-layer hidden state per timestep
      hn_ref  : (L, B, H)       f32    final hidden state per layer (resident)
      cn_ref  : (L, B, H)       f32    final cell state per layer (resident)
    Scratch:
      [L > 1 only] act_sc : (block_t, B, H) f32  inter-layer activations (VMEM)
      h_sc, c_sc : (L, B, H) f32  per-layer state carried across grid blocks
    """
    if n_layers > 1:
        gx0_ref, whh_ref, wih_ref, b_ref = refs[0:4]
        out_ref, hn_ref, cn_ref = refs[4:7]
        act_sc, h_sc, c_sc = refs[7:10]
    else:
        gx0_ref, whh_ref = refs[0:2]
        wih_ref = b_ref = act_sc = None
        out_ref, hn_ref, cn_ref = refs[2:5]
        h_sc, c_sc = refs[5:7]

    H = hidden
    blk = pl.program_id(0)

    @pl.when(blk == 0)
    def _():
        h_sc[...] = jnp.zeros_like(h_sc)
        c_sc[...] = jnp.zeros_like(c_sc)

    t0 = blk * block_t

    def sig(x):
        # Exact identity; lowers to a single EUP tanh push instead of exp+recip.
        return 0.5 * jnp.tanh(0.5 * x) + 0.5

    for layer in range(n_layers):
        is_last = layer == n_layers - 1
        # Hoist weight loads out of the timestep loop (once per layer per block).
        whh_l = whh_ref[layer]                                  # (H, 4H) bf16
        wih_l = wih_ref[layer - 1] if layer > 0 else None       # (H, 4H) bf16
        b_l = b_ref[layer - 1] if layer > 0 else None           # (1, 4H) f32

        def step(tt, carry, layer=layer, is_last=is_last,
                 whh_l=whh_l, wih_l=wih_l, b_l=b_l):
            h, c = carry
            if layer == 0:
                gx = gx0_ref[tt].astype(jnp.float32)            # (B, 4H)
            else:
                x_t = act_sc[tt]                                # (B, H) f32
                gx = jnp.dot(x_t.astype(whh_l.dtype), wih_l,
                             preferred_element_type=jnp.float32) + b_l
            gates = gx + jnp.dot(h.astype(whh_l.dtype), whh_l,
                                 preferred_element_type=jnp.float32)
            i_g = sig(gates[:, 0 * H:1 * H])
            f_g = sig(gates[:, 1 * H:2 * H])
            g_g = jnp.tanh(gates[:, 2 * H:3 * H])
            o_g = sig(gates[:, 3 * H:4 * H])
            c_new = f_g * c + i_g * g_g
            h_new = o_g * jnp.tanh(c_new)
            if tail_mask:  # only when T was padded up to a block multiple
                valid = (t0 + tt) < seq_len
                c_new = jnp.where(valid, c_new, c)
                h_new = jnp.where(valid, h_new, h)
            if is_last:
                out_ref[tt] = h_new
            else:
                act_sc[tt] = h_new     # in-place: this row was already consumed
            return h_new, c_new

        h_fin, c_fin = lax.fori_loop(
            0, block_t, step, (h_sc[layer], c_sc[layer]),
            unroll=True if block_t <= 64 else False)
        h_sc[layer] = h_fin
        c_sc[layer] = c_fin

    # Small resident outputs (constant index_map): last block's write wins.
    hn_ref[...] = h_sc[...]
    cn_ref[...] = c_sc[...]


def init_encoder_params(key, input_dim, emb_dim, hidden_dim, n_layers):
    """Deterministic parameter init mirroring nn.Embedding + nn.LSTM shapes."""
    params = {}
    k_emb, key = jax.random.split(key)
    params["embedding"] = jax.random.normal(k_emb, (input_dim, emb_dim),
                                            dtype=jnp.float32)
    bound = 1.0 / jnp.sqrt(hidden_dim)
    layers = []
    for layer in range(n_layers):
        in_dim = emb_dim if layer == 0 else hidden_dim
        key, k1, k2, k3, k4 = jax.random.split(key, 5)
        # PyTorch stores (4H, in)/(4H, H); we keep transposed (in, 4H) so the
        # kernel/wrapper do x @ W directly. Gate order [i, f, g, o].
        w_ih = jax.random.uniform(k1, (in_dim, 4 * hidden_dim),
                                  minval=-bound, maxval=bound, dtype=jnp.float32)
        w_hh = jax.random.uniform(k2, (hidden_dim, 4 * hidden_dim),
                                  minval=-bound, maxval=bound, dtype=jnp.float32)
        b_ih = jax.random.uniform(k3, (4 * hidden_dim,),
                                  minval=-bound, maxval=bound, dtype=jnp.float32)
        b_hh = jax.random.uniform(k4, (4 * hidden_dim,),
                                  minval=-bound, maxval=bound, dtype=jnp.float32)
        layers.append({"w_ih": w_ih, "w_hh": w_hh, "b": b_ih + b_hh})
    params["layers"] = layers
    return params


def encoder_forward(params, src, *, block_t=None):
    """src: (B, T) int32 token ids.

    Returns (outputs, (h_n, c_n)) matching PyTorch batch_first LSTM:
      outputs: (B, T, H); h_n, c_n: (n_layers, B, H). Dropout = 0.0 (identity).
    """
    emb = jnp.take(params["embedding"], src, axis=0)           # (B, T, E)
    x = jnp.transpose(emb, (1, 0, 2)).astype(jnp.float32)      # (T, B, E)
    T, B, E = x.shape

    layers = params["layers"]
    L = len(layers)
    H = layers[0]["w_hh"].shape[0]

    # Hoisted layer-0 input projection: one bf16 MXU matmul, f32 accumulation.
    w_ih0 = layers[0]["w_ih"].astype(jnp.bfloat16)             # (E, 4H)
    gx0 = jnp.dot(x.reshape(T * B, E).astype(jnp.bfloat16), w_ih0,
                  preferred_element_type=jnp.float32)
    gx0 = (gx0 + layers[0]["b"].reshape(1, 4 * H)).reshape(T, B, 4 * H)
    gx0 = gx0.astype(jnp.bfloat16)   # halve the biggest HBM->VMEM stream

    # block_t: cover the whole sequence in one grid step when it fits VMEM.
    if block_t is None:
        per_t = (B * 4 * H * 2) * 2 + (B * H * 4) * 2 + (B * H * 4)
        block_t = int((16 << 20) // max(per_t, 1))
    block_t = max(1, min(block_t, T))
    n_blocks = -(-T // block_t)
    Tp = n_blocks * block_t
    tail_mask = Tp != T
    if tail_mask:
        gx0 = jnp.pad(gx0, ((0, Tp - T), (0, 0), (0, 0)))

    whh = jnp.stack([lp["w_hh"] for lp in layers]).astype(jnp.bfloat16)  # (L,H,4H)
    ins = [gx0, whh]
    in_specs = [pl.BlockSpec((block_t, B, 4 * H), lambda i: (i, 0, 0)),
                pl.BlockSpec((L, H, 4 * H), lambda i: (0, 0, 0))]
    if L > 1:
        wih = jnp.stack([lp["w_ih"] for lp in layers[1:]]).astype(jnp.bfloat16)
        bia = jnp.stack([lp["b"].reshape(1, 4 * H) for lp in layers[1:]])
        ins += [wih, bia]
        in_specs += [pl.BlockSpec((L - 1, H, 4 * H), lambda i: (0, 0, 0)),
                     pl.BlockSpec((L - 1, 1, 4 * H), lambda i: (0, 0, 0))]

    scratch = []
    if L > 1:
        scratch.append(pltpu.VMEM((block_t, B, H), jnp.float32))   # inter-layer act
    scratch += [pltpu.VMEM((L, B, H), jnp.float32),                # h carry
                pltpu.VMEM((L, B, H), jnp.float32)]                # c carry

    kernel = functools.partial(_fused_lstm_kernel, n_layers=L, seq_len=T,
                               block_t=block_t, hidden=H, tail_mask=tail_mask)

    outs_p, h_n, c_n = pl.pallas_call(
        kernel,
        out_shape=(jax.ShapeDtypeStruct((Tp, B, H), jnp.float32),
                   jax.ShapeDtypeStruct((L, B, H), jnp.float32),
                   jax.ShapeDtypeStruct((L, B, H), jnp.float32)),
        grid_spec=pltpu.PrefetchScalarGridSpec(
            num_scalar_prefetch=0,
            grid=(n_blocks,),
            in_specs=in_specs,
            out_specs=[pl.BlockSpec((block_t, B, H), lambda i: (i, 0, 0)),
                       pl.BlockSpec((L, B, H), lambda i: (0, 0, 0)),
                       pl.BlockSpec((L, B, H), lambda i: (0, 0, 0))],
            scratch_shapes=scratch),
        compiler_params=pltpu.CompilerParams(
            dimension_semantics=("arbitrary",)),
    )(*ins)

    outputs = jnp.transpose(outs_p[:T], (1, 0, 2))             # (B, T, H)
    return outputs, (h_n, c_n)


def _encoder_reference(params, src):
    """Pure-JAX reference (f32 scan) for numerical validation."""
    emb = jnp.take(params["embedding"], src, axis=0)
    x = jnp.transpose(emb, (1, 0, 2)).astype(jnp.float32)      # (T, B, E)
    B = x.shape[1]
    h_fin, c_fin = [], []
    for lp in params["layers"]:
        H = lp["w_hh"].shape[0]

        def step(carry, x_t, lp=lp, H=H):
            h, c = carry
            gates = x_t @ lp["w_ih"] + h @ lp["w_hh"] + lp["b"]
            i = jax.nn.sigmoid(gates[:, 0 * H:1 * H])
            f = jax.nn.sigmoid(gates[:, 1 * H:2 * H])
            g = jnp.tanh(gates[:, 2 * H:3 * H])
            o = jax.nn.sigmoid(gates[:, 3 * H:4 * H])
            c = f * c + i * g
            h = o * jnp.tanh(c)
            return (h, c), h

        init = (jnp.zeros((B, H), jnp.float32), jnp.zeros((B, H), jnp.float32))
        (h_n, c_n), ys = lax.scan(step, init, x)
        x = ys
        h_fin.append(h_n)
        c_fin.append(c_n)
    return jnp.transpose(x, (1, 0, 2)), (jnp.stack(h_fin), jnp.stack(c_fin))


if __name__ == "__main__":
    INPUT_DIM = 50      # vocab size
    EMB_DIM = 32
    HIDDEN_DIM = 32
    N_LAYERS = 2
    B, T = 2, 10

    key = jax.random.PRNGKey(0)
    k_params, k_src = jax.random.split(key)
    params = init_encoder_params(k_params, INPUT_DIM, EMB_DIM,
                                 HIDDEN_DIM, N_LAYERS)
    src = jax.random.randint(k_src, (B, T), 0, INPUT_DIM, dtype=jnp.int32)

    outputs, (h_n, c_n) = encoder_forward(params, src)
    jax.block_until_ready((outputs, h_n, c_n))

    assert outputs.shape == (B, T, HIDDEN_DIM)
    assert h_n.shape == (N_LAYERS, B, HIDDEN_DIM)
    assert c_n.shape == (N_LAYERS, B, HIDDEN_DIM)

    # Numerical sanity vs. pure-JAX f32 reference (bf16 gx / weights in kernel).
    ref_out, (ref_h, ref_c) = _encoder_reference(params, src)
    TOL = 7.5e-2
    assert float(jnp.max(jnp.abs(outputs - ref_out))) < TOL
    assert float(jnp.max(jnp.abs(h_n - ref_h))) < TOL
    assert float(jnp.max(jnp.abs(c_n - ref_c))) < TOL

    print("KERNEL_OK")
</pallas_src>

<mosaic_0001>
module attributes {stable_mosaic.version = 11 : i64} {
  func.func @_fused_lstm_kernel(%arg0: i32, %arg1: memref<10x2x128xbf16, #tpu.memory_space<vmem>>, %arg2: memref<2x32x128xbf16, #tpu.memory_space<vmem>>, %arg3: memref<1x32x128xbf16, #tpu.memory_space<vmem>>, %arg4: memref<1x1x128xf32, #tpu.memory_space<vmem>>, %arg5: memref<10x2x32xf32, #tpu.memory_space<vmem>>, %arg6: memref<2x2x32xf32, #tpu.memory_space<vmem>>, %arg7: memref<2x2x32xf32, #tpu.memory_space<vmem>>, %arg8: memref<10x2x32xf32, #tpu.memory_space<vmem>>, %arg9: memref<2x2x32xf32, #tpu.memory_space<vmem>>, %arg10: memref<2x2x32xf32, #tpu.memory_space<vmem>>) attributes {dimension_semantics = [#tpu.dimension_semantics<arbitrary>], iteration_bounds = array<i64: 1>, scalar_prefetch = 0 : i64, scratch_operands = 3 : i64, tpu.core_type = #tpu.core_type<tc>, window_params = [{transform_indices = @transform_0, window_bounds = array<i64: 10, 2, 128>}, {pipeline_mode = #tpu.pipeline_mode<synchronous>, transform_indices = @transform_1, window_bounds = array<i64: 2, 32, 128>}, {pipeline_mode = #tpu.pipeline_mode<synchronous>, transform_indices = @transform_2, window_bounds = array<i64: 1, 32, 128>}, {pipeline_mode = #tpu.pipeline_mode<synchronous>, transform_indices = @transform_3, window_bounds = array<i64: 1, 1, 128>}, {transform_indices = @transform_4, window_bounds = array<i64: 10, 2, 32>}, {pipeline_mode = #tpu.pipeline_mode<synchronous>, transform_indices = @transform_5, window_bounds = array<i64: 2, 2, 32>}, {pipeline_mode = #tpu.pipeline_mode<synchronous>, transform_indices = @transform_6, window_bounds = array<i64: 2, 2, 32>}]} {
    %c0_i32 = arith.constant 0 : i32
    %0 = arith.cmpi eq, %arg0, %c0_i32 : i32
    %1 = arith.extui %0 : i1 to i32
    %c0_i32_0 = arith.constant 0 : i32
    %2 = arith.cmpi ne, %1, %c0_i32_0 : i32
    scf.if %2 {
      %cst_348 = arith.constant 0.000000e+00 : f32
      %905 = vector.broadcast %cst_348 : f32 to vector<2x2x32xf32>
      %c0_349 = arith.constant 0 : index
      %c0_350 = arith.constant 0 : index
      %c0_351 = arith.constant 0 : index
      %906 = vector.load %arg9[%c0_349, %c0_350, %c0_351] : memref<2x2x32xf32, #tpu.memory_space<vmem>>, vector<2x2x32xf32>
      tpu.vector_store %arg9[%c0_349, %c0_350, %c0_351], %905 {strides = array<i32>} : memref<2x2x32xf32, #tpu.memory_space<vmem>>, vector<2x2x32xf32>,
      %cst_352 = arith.constant 0.000000e+00 : f32
      %907 = vector.broadcast %cst_352 : f32 to vector<2x2x32xf32>
      %c0_353 = arith.constant 0 : index
      %c0_354 = arith.constant 0 : index
      %c0_355 = arith.constant 0 : index
      %908 = vector.load %arg10[%c0_353, %c0_354, %c0_355] : memref<2x2x32xf32, #tpu.memory_space<vmem>>, vector<2x2x32xf32>
      tpu.vector_store %arg10[%c0_353, %c0_354, %c0_355], %907 {strides = array<i32>} : memref<2x2x32xf32, #tpu.memory_space<vmem>>, vector<2x2x32xf32>,
    } else {
    }
    %c0 = arith.constant 0 : index
    %c0_1 = arith.constant 0 : index
    %c0_2 = arith.constant 0 : index
    %3 = vector.load %arg2[%c0, %c0_1, %c0_2] : memref<2x32x128xbf16, #tpu.memory_space<vmem>>, vector<1x32x128xbf16>
    %4 = vector.shape_cast %3 : vector<1x32x128xbf16> to vector<32x128xbf16>
    %c0_3 = arith.constant 0 : index
    %c0_4 = arith.constant 0 : index
    %c0_5 = arith.constant 0 : index
    %5 = vector.load %arg9[%c0_3, %c0_4, %c0_5] : memref<2x2x32xf32, #tpu.memory_space<vmem>>, vector<1x2x32xf32>
    %6 = vector.shape_cast %5 : vector<1x2x32xf32> to vector<2x32xf32>
    %c0_6 = arith.constant 0 : index
    %c0_7 = arith.constant 0 : index
    %c0_8 = arith.constant 0 : index
    %7 = vector.load %arg10[%c0_6, %c0_7, %c0_8] : memref<2x2x32xf32, #tpu.memory_space<vmem>>, vector<1x2x32xf32>
    %8 = vector.shape_cast %7 : vector<1x2x32xf32> to vector<2x32xf32>
    %c0_i32_9 = arith.constant 0 : i32
    %9 = arith.index_cast %c0_i32_9 : i32 to index
    %c0_10 = arith.constant 0 : index
    %c0_11 = arith.constant 0 : index
    %10 = vector.load %arg1[%9, %c0_10, %c0_11] : memref<10x2x128xbf16, #tpu.memory_space<vmem>>, vector<1x2x128xbf16>
    %11 = vector.shape_cast %10 : vector<1x2x128xbf16> to vector<2x128xbf16>
    %12 = arith.extf %11 : vector<2x128xbf16> to vector<2x128xf32>
    %13 = arith.truncf %6 : vector<2x32xf32> to vector<2x32xbf16>
    %cst = arith.constant dense<0.000000e+00> : vector<2x128xf32>
    %14 = tpu.matmul %13, %4, %cst {dimension_numbers = #tpu.dot_dimension_numbers<[1], [0], [0], [1], [0, 0, 1, 1], [], []>} : vector<2x32xbf16>, vector<32x128xbf16>, vector<2x128xf32> -> vector<2x128xf32>
    %15 = arith.addf %12, %14 : vector<2x128xf32>
    %16 = vector.extract_strided_slice %15 {offsets = [0, 0], sizes = [2, 32], strides = [1, 1]} : vector<2x128xf32> to vector<2x32xf32>
    %cst_12 = arith.constant 5.000000e-01 : f32
    %17 = vector.broadcast %cst_12 : f32 to vector<2x32xf32>
    %18 = arith.mulf %17, %16 : vector<2x32xf32>
    %19 = math.tanh %18 : vector<2x32xf32>
    %cst_13 = arith.constant 5.000000e-01 : f32
    %20 = vector.broadcast %cst_13 : f32 to vector<2x32xf32>
    %21 = arith.mulf %20, %19 : vector<2x32xf32>
    %cst_14 = arith.constant 5.000000e-01 : f32
    %22 = vector.broadcast %cst_14 : f32 to vector<2x32xf32>
    %23 = arith.addf %21, %22 : vector<2x32xf32>
    %24 = vector.extract_strided_slice %15 {offsets = [0, 32], sizes = [2, 32], strides = [1, 1]} : vector<2x128xf32> to vector<2x32xf32>
    %cst_15 = arith.constant 5.000000e-01 : f32
    %25 = vector.broadcast %cst_15 : f32 to vector<2x32xf32>
    %26 = arith.mulf %25, %24 : vector<2x32xf32>
    %27 = math.tanh %26 : vector<2x32xf32>
    %cst_16 = arith.constant 5.000000e-01 : f32
    %28 = vector.broadcast %cst_16 : f32 to vector<2x32xf32>
    %29 = arith.mulf %28, %27 : vector<2x32xf32>
    %cst_17 = arith.constant 5.000000e-01 : f32
    %30 = vector.broadcast %cst_17 : f32 to vector<2x32xf32>
    %31 = arith.addf %29, %30 : vector<2x32xf32>
    %32 = vector.extract_strided_slice %15 {offsets = [0, 64], sizes = [2, 32], strides = [1, 1]} : vector<2x128xf32> to vector<2x32xf32>
    %33 = math.tanh %32 : vector<2x32xf32>
    %34 = vector.extract_strided_slice %15 {offsets = [0, 96], sizes = [2, 32], strides = [1, 1]} : vector<2x128xf32> to vector<2x32xf32>
    %cst_18 = arith.constant 5.000000e-01 : f32
    %35 = vector.broadcast %cst_18 : f32 to vector<2x32xf32>
    %36 = arith.mulf %35, %34 : vector<2x32xf32>
    %37 = math.tanh %36 : vector<2x32xf32>
    %cst_19 = arith.constant 5.000000e-01 : f32
    %38 = vector.broadcast %cst_19 : f32 to vector<2x32xf32>
    %39 = arith.mulf %38, %37 : vector<2x32xf32>
    %cst_20 = arith.constant 5.000000e-01 : f32
    %40 = vector.broadcast %cst_20 : f32 to vector<2x32xf32>
    %41 = arith.addf %39, %40 : vector<2x32xf32>
    %42 = arith.mulf %31, %8 : vector<2x32xf32>
    %43 = arith.mulf %23, %33 : vector<2x32xf32>
    %44 = arith.addf %42, %43 : vector<2x32xf32>
    %45 = math.tanh %44 : vector<2x32xf32>
    %46 = arith.mulf %41, %45 : vector<2x32xf32>
    %47 = arith.index_cast %c0_i32_9 : i32 to index
    %c0_21 = arith.constant 0 : index
    %c0_22 = arith.constant 0 : index
    %48 = vector.load %arg8[%47, %c0_21, %c0_22] : memref<10x2x32xf32, #tpu.memory_space<vmem>>, vector<1x2x32xf32>
    %49 = vector.shape_cast %48 : vector<1x2x32xf32> to vector<2x32xf32>
    %50 = vector.shape_cast %46 : vector<2x32xf32> to vector<1x2x32xf32>
    tpu.vector_store %arg8[%47, %c0_21, %c0_22], %50 {strides = array<i32>} : memref<10x2x32xf32, #tpu.memory_space<vmem>>, vector<1x2x32xf32>,
    %c1_i32 = arith.constant 1 : i32
    %51 = arith.index_cast %c1_i32 : i32 to index
    %c0_23 = arith.constant 0 : index
    %c0_24 = arith.constant 0 : index
    %52 = vector.load %arg1[%51, %c0_23, %c0_24] : memref<10x2x128xbf16, #tpu.memory_space<vmem>>, vector<1x2x128xbf16>
    %53 = vector.shape_cast %52 : vector<1x2x128xbf16> to vector<2x128xbf16>
    %54 = arith.extf %53 : vector<2x128xbf16> to vector<2x128xf32>
    %55 = arith.truncf %46 : vector<2x32xf32> to vector<2x32xbf16>
    %cst_25 = arith.constant dense<0.000000e+00> : vector<2x128xf32>
    %56 = tpu.matmul %55, %4, %cst_25 {dimension_numbers = #tpu.dot_dimension_numbers<[1], [0], [0], [1], [0, 0, 1, 1], [], []>} : vector<2x32xbf16>, vector<32x128xbf16>, vector<2x128xf32> -> vector<2x128xf32>
    %57 = arith.addf %54, %56 : vector<2x128xf32>
    %58 = vector.extract_strided_slice %57 {offsets = [0, 0], sizes = [2, 32], strides = [1, 1]} : vector<2x128xf32> to vector<2x32xf32>
    %cst_26 = arith.constant 5.000000e-01 : f32
    %59 = vector.broadcast %cst_26 : f32 to vector<2x32xf32>
    %60 = arith.mulf %59, %58 : vector<2x32xf32>
    %61 = math.tanh %60 : vector<2x32xf32>
    %cst_27 = arith.constant 5.000000e-01 : f32
    %62 = vector.broadcast %cst_27 : f32 to vector<2x32xf32>
    %63 = arith.mulf %62, %61 : vector<2x32xf32>
    %cst_28 = arith.constant 5.000000e-01 : f32
    %64 = vector.broadcast %cst_28 : f32 to vector<2x32xf32>
    %65 = arith.addf %63, %64 : vector<2x32xf32>
    %66 = vector.extract_strided_slice %57 {offsets = [0, 32], sizes = [2, 32], strides = [1, 1]} : vector<2x128xf32> to vector<2x32xf32>
    %cst_29 = arith.constant 5.000000e-01 : f32
    %67 = vector.broadcast %cst_29 : f32 to vector<2x32xf32>
    %68 = arith.mulf %67, %66 : vector<2x32xf32>
    %69 = math.tanh %68 : vector<2x32xf32>
    %cst_30 = arith.constant 5.000000e-01 : f32
    %70 = vector.broadcast %cst_30 : f32 to vector<2x32xf32>
    %71 = arith.mulf %70, %69 : vector<2x32xf32>
    %cst_31 = arith.constant 5.000000e-01 : f32
    %72 = vector.broadcast %cst_31 : f32 to vector<2x32xf32>
    %73 = arith.addf %71, %72 : vector<2x32xf32>
    %74 = vector.extract_strided_slice %57 {offsets = [0, 64], sizes = [2, 32], strides = [1, 1]} : vector<2x128xf32> to vector<2x32xf32>
    %75 = math.tanh %74 : vector<2x32xf32>
    %76 = vector.extract_strided_slice %57 {offsets = [0, 96], sizes = [2, 32], strides = [1, 1]} : vector<2x128xf32> to vector<2x32xf32>
    %cst_32 = arith.constant 5.000000e-01 : f32
    %77 = vector.broadcast %cst_32 : f32 to vector<2x32xf32>
    %78 = arith.mulf %77, %76 : vector<2x32xf32>
    %79 = math.tanh %78 : vector<2x32xf32>
    %cst_33 = arith.constant 5.000000e-01 : f32
    %80 = vector.broadcast %cst_33 : f32 to vector<2x32xf32>
    %81 = arith.mulf %80, %79 : vector<2x32xf32>
    %cst_34 = arith.constant 5.000000e-01 : f32
    %82 = vector.broadcast %cst_34 : f32 to vector<2x32xf32>
    %83 = arith.addf %81, %82 : vector<2x32xf32>
    %84 = arith.mulf %73, %44 : vector<2x32xf32>
    %85 = arith.mulf %65, %75 : vector<2x32xf32>
    %86 = arith.addf %84, %85 : vector<2x32xf32>
    %87 = math.tanh %86 : vector<2x32xf32>
    %88 = arith.mulf %83, %87 : vector<2x32xf32>
    %89 = arith.index_cast %c1_i32 : i32 to index
    %c0_35 = arith.constant 0 : index
    %c0_36 = arith.constant 0 : index
    %90 = vector.load %arg8[%89, %c0_35, %c0_36] : memref<10x2x32xf32, #tpu.memory_space<vmem>>, vector<1x2x32xf32>
    %91 = vector.shape_cast %90 : vector<1x2x32xf32> to vector<2x32xf32>
    %92 = vector.shape_cast %88 : vector<2x32xf32> to vector<1x2x32xf32>
    tpu.vector_store %arg8[%89, %c0_35, %c0_36], %92 {strides = array<i32>} : memref<10x2x32xf32, #tpu.memory_space<vmem>>, vector<1x2x32xf32>,
    %c2_i32 = arith.constant 2 : i32
    %93 = arith.index_cast %c2_i32 : i32 to index
    %c0_37 = arith.constant 0 : index
    %c0_38 = arith.constant 0 : index
    %94 = vector.load %arg1[%93, %c0_37, %c0_38] : memref<10x2x128xbf16, #tpu.memory_space<vmem>>, vector<1x2x128xbf16>
    %95 = vector.shape_cast %94 : vector<1x2x128xbf16> to vector<2x128xbf16>
    %96 = arith.extf %95 : vector<2x128xbf16> to vector<2x128xf32>
    %97 = arith.truncf %88 : vector<2x32xf32> to vector<2x32xbf16>
    %cst_39 = arith.constant dense<0.000000e+00> : vector<2x128xf32>
    %98 = tpu.matmul %97, %4, %cst_39 {dimension_numbers = #tpu.dot_dimension_numbers<[1], [0], [0], [1], [0, 0, 1, 1], [], []>} : vector<2x32xbf16>, vector<32x128xbf16>, vector<2x128xf32> -> vector<2x128xf32>
    %99 = arith.addf %96, %98 : vector<2x128xf32>
    %100 = vector.extract_strided_slice %99 {offsets = [0, 0], sizes = [2, 32], strides = [1, 1]} : vector<2x128xf32> to vector<2x32xf32>
    %cst_40 = arith.constant 5.000000e-01 : f32
    %101 = vector.broadcast %cst_40 : f32 to vector<2x32xf32>
    %102 = arith.mulf %101, %100 : vector<2x32xf32>
    %103 = math.tanh %102 : vector<2x32xf32>
    %cst_41 = arith.constant 5.000000e-01 : f32
    %104 = vector.broadcast %cst_41 : f32 to vector<2x32xf32>
    %105 = arith.mulf %104, %103 : vector<2x32xf32>
    %cst_42 = arith.constant 5.000000e-01 : f32
    %106 = vector.broadcast %cst_42 : f32 to vector<2x32xf32>
    %107 = arith.addf %105, %106 : vector<2x32xf32>
    %108 = vector.extract_strided_slice %99 {offsets = [0, 32], sizes = [2, 32], strides = [1, 1]} : vector<2x128xf32> to vector<2x32xf32>
    %cst_43 = arith.constant 5.000000e-01 : f32
    %109 = vector.broadcast %cst_43 : f32 to vector<2x32xf32>
    %110 = arith.mulf %109, %108 : vector<2x32xf32>
    %111 = math.tanh %110 : vector<2x32xf32>
    %cst_44 = arith.constant 5.000000e-01 : f32
    %112 = vector.broadcast %cst_44 : f32 to vector<2x32xf32>
    %113 = arith.mulf %112, %111 : vector<2x32xf32>
    %cst_45 = arith.constant 5.000000e-01 : f32
    %114 = vector.broadcast %cst_45 : f32 to vector<2x32xf32>
    %115 = arith.addf %113, %114 : vector<2x32xf32>
    %116 = vector.extract_strided_slice %99 {offsets = [0, 64], sizes = [2, 32], strides = [1, 1]} : vector<2x128xf32> to vector<2x32xf32>
    %117 = math.tanh %116 : vector<2x32xf32>
    %118 = vector.extract_strided_slice %99 {offsets = [0, 96], sizes = [2, 32], strides = [1, 1]} : vector<2x128xf32> to vector<2x32xf32>
    %cst_46 = arith.constant 5.000000e-01 : f32
    %119 = vector.broadcast %cst_46 : f32 to vector<2x32xf32>
    %120 = arith.mulf %119, %118 : vector<2x32xf32>
    %121 = math.tanh %120 : vector<2x32xf32>
    %cst_47 = arith.constant 5.000000e-01 : f32
    %122 = vector.broadcast %cst_47 : f32 to vector<2x32xf32>
    %123 = arith.mulf %122, %121 : vector<2x32xf32>
    %cst_48 = arith.constant 5.000000e-01 : f32
    %124 = vector.broadcast %cst_48 : f32 to vector<2x32xf32>
    %125 = arith.addf %123, %124 : vector<2x32xf32>
    %126 = arith.mulf %115, %86 : vector<2x32xf32>
    %127 = arith.mulf %107, %117 : vector<2x32xf32>
    %128 = arith.addf %126, %127 : vector<2x32xf32>
    %129 = math.tanh %128 : vector<2x32xf32>
    %130 = arith.mulf %125, %129 : vector<2x32xf32>
    %131 = arith.index_cast %c2_i32 : i32 to index
    %c0_49 = arith.constant 0 : index
    %c0_50 = arith.constant 0 : index
    %132 = vector.load %arg8[%131, %c0_49, %c0_50] : memref<10x2x32xf32, #tpu.memory_space<vmem>>, vector<1x2x32xf32>
    %133 = vector.shape_cast %132 : vector<1x2x32xf32> to vector<2x32xf32>
    %134 = vector.shape_cast %130 : vector<2x32xf32> to vector<1x2x32xf32>
    tpu.vector_store %arg8[%131, %c0_49, %c0_50], %134 {strides = array<i32>} : memref<10x2x32xf32, #tpu.memory_space<vmem>>, vector<1x2x32xf32>,
    %c3_i32 = arith.constant 3 : i32
    %135 = arith.index_cast %c3_i32 : i32 to index
    %c0_51 = arith.constant 0 : index
    %c0_52 = arith.constant 0 : index
    %136 = vector.load %arg1[%135, %c0_51, %c0_52] : memref<10x2x128xbf16, #tpu.memory_space<vmem>>, vector<1x2x128xbf16>
    %137 = vector.shape_cast %136 : vector<1x2x128xbf16> to vector<2x128xbf16>
    %138 = arith.extf %137 : vector<2x128xbf16> to vector<2x128xf32>
    %139 = arith.truncf %130 : vector<2x32xf32> to vector<2x32xbf16>
    %cst_53 = arith.constant dense<0.000000e+00> : vector<2x128xf32>
    %140 = tpu.matmul %139, %4, %cst_53 {dimension_numbers = #tpu.dot_dimension_numbers<[1], [0], [0], [1], [0, 0, 1, 1], [], []>} : vector<2x32xbf16>, vector<32x128xbf16>, vector<2x128xf32> -> vector<2x128xf32>
    %141 = arith.addf %138, %140 : vector<2x128xf32>
    %142 = vector.extract_strided_slice %141 {offsets = [0, 0], sizes = [2, 32], strides = [1, 1]} : vector<2x128xf32> to vector<2x32xf32>
    %cst_54 = arith.constant 5.000000e-01 : f32
    %143 = vector.broadcast %cst_54 : f32 to vector<2x32xf32>
    %144 = arith.mulf %143, %142 : vector<2x32xf32>
    %145 = math.tanh %144 : vector<2x32xf32>
    %cst_55 = arith.constant 5.000000e-01 : f32
    %146 = vector.broadcast %cst_55 : f32 to vector<2x32xf32>
    %147 = arith.mulf %146, %145 : vector<2x32xf32>
    %cst_56 = arith.constant 5.000000e-01 : f32
    %148 = vector.broadcast %cst_56 : f32 to vector<2x32xf32>
    %149 = arith.addf %147, %148 : vector<2x32xf32>
    %150 = vector.extract_strided_slice %141 {offsets = [0, 32], sizes = [2, 32], strides = [1, 1]} : vector<2x128xf32> to vector<2x32xf32>
    %cst_57 = arith.constant 5.000000e-01 : f32
    %151 = vector.broadcast %cst_57 : f32 to vector<2x32xf32>
    %152 = arith.mulf %151, %150 : vector<2x32xf32>
    %153 = math.tanh %152 : vector<2x32xf32>
    %cst_58 = arith.constant 5.000000e-01 : f32
    %154 = vector.broadcast %cst_58 : f32 to vector<2x32xf32>
    %155 = arith.mulf %154, %153 : vector<2x32xf32>
    %cst_59 = arith.constant 5.000000e-01 : f32
    %156 = vector.broadcast %cst_59 : f32 to vector<2x32xf32>
    %157 = arith.addf %155, %156 : vector<2x32xf32>
    %158 = vector.extract_strided_slice %141 {offsets = [0, 64], sizes = [2, 32], strides = [1, 1]} : vector<2x128xf32> to vector<2x32xf32>
    %159 = math.tanh %158 : vector<2x32xf32>
    %160 = vector.extract_strided_slice %141 {offsets = [0, 96], sizes = [2, 32], strides = [1, 1]} : vector<2x128xf32> to vector<2x32xf32>
    %cst_60 = arith.constant 5.000000e-01 : f32
    %161 = vector.broadcast %cst_60 : f32 to vector<2x32xf32>
    %162 = arith.mulf %161, %160 : vector<2x32xf32>
    %163 = math.tanh %162 : vector<2x32xf32>
    %cst_61 = arith.constant 5.000000e-01 : f32
    %164 = vector.broadcast %cst_61 : f32 to vector<2x32xf32>
    %165 = arith.mulf %164, %163 : vector<2x32xf32>
    %cst_62 = arith.constant 5.000000e-01 : f32
    %166 = vector.broadcast %cst_62 : f32 to vector<2x32xf32>
    %167 = arith.addf %165, %166 : vector<2x32xf32>
    %168 = arith.mulf %157, %128 : vector<2x32xf32>
    %169 = arith.mulf %149, %159 : vector<2x32xf32>
    %170 = arith.addf %168, %169 : vector<2x32xf32>
    %171 = math.tanh %170 : vector<2x32xf32>
    %172 = arith.mulf %167, %171 : vector<2x32xf32>
    %173 = arith.index_cast %c3_i32 : i32 to index
    %c0_63 = arith.constant 0 : index
    %c0_64 = arith.constant 0 : index
    %174 = vector.load %arg8[%173, %c0_63, %c0_64] : memref<10x2x32xf32, #tpu.memory_space<vmem>>, vector<1x2x32xf32>
    %175 = vector.shape_cast %174 : vector<1x2x32xf32> to vector<2x32xf32>
    %176 = vector.shape_cast %172 : vector<2x32xf32> to vector<1x2x32xf32>
    tpu.vector_store %arg8[%173, %c0_63, %c0_64], %176 {strides = array<i32>} : memref<10x2x32xf32, #tpu.memory_space<vmem>>, vector<1x2x32xf32>,
    %c4_i32 = arith.constant 4 : i32
    %177 = arith.index_cast %c4_i32 : i32 to index
    %c0_65 = arith.constant 0 : index
    %c0_66 = arith.constant 0 : index
    %178 = vector.load %arg1[%177, %c0_65, %c0_66] : memref<10x2x128xbf16, #tpu.memory_space<vmem>>, vector<1x2x128xbf16>
    %179 = vector.shape_cast %178 : vector<1x2x128xbf16> to vector<2x128xbf16>
    %180 = arith.extf %179 : vector<2x128xbf16> to vector<2x128xf32>
    %181 = arith.truncf %172 : vector<2x32xf32> to vector<2x32xbf16>
    %cst_67 = arith.constant dense<0.000000e+00> : vector<2x128xf32>
    %182 = tpu.matmul %181, %4, %cst_67 {dimension_numbers = #tpu.dot_dimension_numbers<[1], [0], [0], [1], [0, 0, 1, 1], [], []>} : vector<2x32xbf16>, vector<32x128xbf16>, vector<2x128xf32> -> vector<2x128xf32>
    %183 = arith.addf %180, %182 : vector<2x128xf32>
    %184 = vector.extract_strided_slice %183 {offsets = [0, 0], sizes = [2, 32], strides = [1, 1]} : vector<2x128xf32> to vector<2x32xf32>
    %cst_68 = arith.constant 5.000000e-01 : f32
    %185 = vector.broadcast %cst_68 : f32 to vector<2x32xf32>
    %186 = arith.mulf %185, %184 : vector<2x32xf32>
    %187 = math.tanh %186 : vector<2x32xf32>
    %cst_69 = arith.constant 5.000000e-01 : f32
    %188 = vector.broadcast %cst_69 : f32 to vector<2x32xf32>
    %189 = arith.mulf %188, %187 : vector<2x32xf32>
    %cst_70 = arith.constant 5.000000e-01 : f32
    %190 = vector.broadcast %cst_70 : f32 to vector<2x32xf32>
    %191 = arith.addf %189, %190 : vector<2x32xf32>
    %192 = vector.extract_strided_slice %183 {offsets = [0, 32], sizes = [2, 32], strides = [1, 1]} : vector<2x128xf32> to vector<2x32xf32>
    %cst_71 = arith.constant 5.000000e-01 : f32
    %193 = vector.broadcast %cst_71 : f32 to vector<2x32xf32>
    %194 = arith.mulf %193, %192 : vector<2x32xf32>
    %195 = math.tanh %194 : vector<2x32xf32>
    %cst_72 = arith.constant 5.000000e-01 : f32
    %196 = vector.broadcast %cst_72 : f32 to vector<2x32xf32>
    %197 = arith.mulf %196, %195 : vector<2x32xf32>
    %cst_73 = arith.constant 5.000000e-01 : f32
    %198 = vector.broadcast %cst_73 : f32 to vector<2x32xf32>
    %199 = arith.addf %197, %198 : vector<2x32xf32>
    %200 = vector.extract_strided_slice %183 {offsets = [0, 64], sizes = [2, 32], strides = [1, 1]} : vector<2x128xf32> to vector<2x32xf32>
    %201 = math.tanh %200 : vector<2x32xf32>
    %202 = vector.extract_strided_slice %183 {offsets = [0, 96], sizes = [2, 32], strides = [1, 1]} : vector<2x128xf32> to vector<2x32xf32>
    %cst_74 = arith.constant 5.000000e-01 : f32
    %203 = vector.broadcast %cst_74 : f32 to vector<2x32xf32>
    %204 = arith.mulf %203, %202 : vector<2x32xf32>
    %205 = math.tanh %204 : vector<2x32xf32>
    %cst_75 = arith.constant 5.000000e-01 : f32
    %206 = vector.broadcast %cst_75 : f32 to vector<2x32xf32>
    %207 = arith.mulf %206, %205 : vector<2x32xf32>
    %cst_76 = arith.constant 5.000000e-01 : f32
    %208 = vector.broadcast %cst_76 : f32 to vector<2x32xf32>
    %209 = arith.addf %207, %208 : vector<2x32xf32>
    %210 = arith.mulf %199, %170 : vector<2x32xf32>
    %211 = arith.mulf %191, %201 : vector<2x32xf32>
    %212 = arith.addf %210, %211 : vector<2x32xf32>
    %213 = math.tanh %212 : vector<2x32xf32>
    %214 = arith.mulf %209, %213 : vector<2x32xf32>
    %215 = arith.index_cast %c4_i32 : i32 to index
    %c0_77 = arith.constant 0 : index
    %c0_78 = arith.constant 0 : index
    %216 = vector.load %arg8[%215, %c0_77, %c0_78] : memref<10x2x32xf32, #tpu.memory_space<vmem>>, vector<1x2x32xf32>
    %217 = vector.shape_cast %216 : vector<1x2x32xf32> to vector<2x32xf32>
    %218 = vector.shape_cast %214 : vector<2x32xf32> to vector<1x2x32xf32>
    tpu.vector_store %arg8[%215, %c0_77, %c0_78], %218 {strides = array<i32>} : memref<10x2x32xf32, #tpu.memory_space<vmem>>, vector<1x2x32xf32>,
    %c5_i32 = arith.constant 5 : i32
    %219 = arith.index_cast %c5_i32 : i32 to index
    %c0_79 = arith.constant 0 : index
    %c0_80 = arith.constant 0 : index
    %220 = vector.load %arg1[%219, %c0_79, %c0_80] : memref<10x2x128xbf16, #tpu.memory_space<vmem>>, vector<1x2x128xbf16>
    %221 = vector.shape_cast %220 : vector<1x2x128xbf16> to vector<2x128xbf16>
    %222 = arith.extf %221 : vector<2x128xbf16> to vector<2x128xf32>
    %223 = arith.truncf %214 : vector<2x32xf32> to vector<2x32xbf16>
    %cst_81 = arith.constant dense<0.000000e+00> : vector<2x128xf32>
    %224 = tpu.matmul %223, %4, %cst_81 {dimension_numbers = #tpu.dot_dimension_numbers<[1], [0], [0], [1], [0, 0, 1, 1], [], []>} : vector<2x32xbf16>, vector<32x128xbf16>, vector<2x128xf32> -> vector<2x128xf32>
    %225 = arith.addf %222, %224 : vector<2x128xf32>
    %226 = vector.extract_strided_slice %225 {offsets = [0, 0], sizes = [2, 32], strides = [1, 1]} : vector<2x128xf32> to vector<2x32xf32>
    %cst_82 = arith.constant 5.000000e-01 : f32
    %227 = vector.broadcast %cst_82 : f32 to vector<2x32xf32>
    %228 = arith.mulf %227, %226 : vector<2x32xf32>
    %229 = math.tanh %228 : vector<2x32xf32>
    %cst_83 = arith.constant 5.000000e-01 : f32
    %230 = vector.broadcast %cst_83 : f32 to vector<2x32xf32>
    %231 = arith.mulf %230, %229 : vector<2x32xf32>
    %cst_84 = arith.constant 5.000000e-01 : f32
    %232 = vector.broadcast %cst_84 : f32 to vector<2x32xf32>
    %233 = arith.addf %231, %232 : vector<2x32xf32>
    %234 = vector.extract_strided_slice %225 {offsets = [0, 32], sizes = [2, 32], strides = [1, 1]} : vector<2x128xf32> to vector<2x32xf32>
    %cst_85 = arith.constant 5.000000e-01 : f32
    %235 = vector.broadcast %cst_85 : f32 to vector<2x32xf32>
    %236 = arith.mulf %235, %234 : vector<2x32xf32>
    %237 = math.tanh %236 : vector<2x32xf32>
    %cst_86 = arith.constant 5.000000e-01 : f32
    %238 = vector.broadcast %cst_86 : f32 to vector<2x32xf32>
    %239 = arith.mulf %238, %237 : vector<2x32xf32>
    %cst_87 = arith.constant 5.000000e-01 : f32
    %240 = vector.broadcast %cst_87 : f32 to vector<2x32xf32>
    %241 = arith.addf %239, %240 : vector<2x32xf32>
    %242 = vector.extract_strided_slice %225 {offsets = [0, 64], sizes = [2, 32], strides = [1, 1]} : vector<2x128xf32> to vector<2x32xf32>
    %243 = math.tanh %242 : vector<2x32xf32>
    %244 = vector.extract_strided_slice %225 {offsets = [0, 96], sizes = [2, 32], strides = [1, 1]} : vector<2x128xf32> to vector<2x32xf32>
    %cst_88 = arith.constant 5.000000e-01 : f32
    %245 = vector.broadcast %cst_88 : f32 to vector<2x32xf32>
    %246 = arith.mulf %245, %244 : vector<2x32xf32>
    %247 = math.tanh %246 : vector<2x32xf32>
    %cst_89 = arith.constant 5.000000e-01 : f32
    %248 = vector.broadcast %cst_89 : f32 to vector<2x32xf32>
    %249 = arith.mulf %248, %247 : vector<2x32xf32>
    %cst_90 = arith.constant 5.000000e-01 : f32
    %250 = vector.broadcast %cst_90 : f32 to vector<2x32xf32>
    %251 = arith.addf %249, %250 : vector<2x32xf32>
    %252 = arith.mulf %241, %212 : vector<2x32xf32>
    %253 = arith.mulf %233, %243 : vector<2x32xf32>
    %254 = arith.addf %252, %253 : vector<2x32xf32>
    %255 = math.tanh %254 : vector<2x32xf32>
    %256 = arith.mulf %251, %255 : vector<2x32xf32>
    %257 = arith.index_cast %c5_i32 : i32 to index
    %c0_91 = arith.constant 0 : index
    %c0_92 = arith.constant 0 : index
    %258 = vector.load %arg8[%257, %c0_91, %c0_92] : memref<10x2x32xf32, #tpu.memory_space<vmem>>, vector<1x2x32xf32>
    %259 = vector.shape_cast %258 : vector<1x2x32xf32> to vector<2x32xf32>
    %260 = vector.shape_cast %256 : vector<2x32xf32> to vector<1x2x32xf32>
    tpu.vector_store %arg8[%257, %c0_91, %c0_92], %260 {strides = array<i32>} : memref<10x2x32xf32, #tpu.memory_space<vmem>>, vector<1x2x32xf32>,
    %c6_i32 = arith.constant 6 : i32
    %261 = arith.index_cast %c6_i32 : i32 to index
    %c0_93 = arith.constant 0 : index
    %c0_94 = arith.constant 0 : index
    %262 = vector.load %arg1[%261, %c0_93, %c0_94] : memref<10x2x128xbf16, #tpu.memory_space<vmem>>, vector<1x2x128xbf16>
    %263 = vector.shape_cast %262 : vector<1x2x128xbf16> to vector<2x128xbf16>
    %264 = arith.extf %263 : vector<2x128xbf16> to vector<2x128xf32>
    %265 = arith.truncf %256 : vector<2x32xf32> to vector<2x32xbf16>
    %cst_95 = arith.constant dense<0.000000e+00> : vector<2x128xf32>
    %266 = tpu.matmul %265, %4, %cst_95 {dimension_numbers = #tpu.dot_dimension_numbers<[1], [0], [0], [1], [0, 0, 1, 1], [], []>} : vector<2x32xbf16>, vector<32x128xbf16>, vector<2x128xf32> -> vector<2x128xf32>
    %267 = arith.addf %264, %266 : vector<2x128xf32>
    %268 = vector.extract_strided_slice %267 {offsets = [0, 0], sizes = [2, 32], strides = [1, 1]} : vector<2x128xf32> to vector<2x32xf32>
    %cst_96 = arith.constant 5.000000e-01 : f32
    %269 = vector.broadcast %cst_96 : f32 to vector<2x32xf32>
    %270 = arith.mulf %269, %268 : vector<2x32xf32>
    %271 = math.tanh %270 : vector<2x32xf32>
    %cst_97 = arith.constant 5.000000e-01 : f32
    %272 = vector.broadcast %cst_97 : f32 to vector<2x32xf32>
    %273 = arith.mulf %272, %271 : vector<2x32xf32>
    %cst_98 = arith.constant 5.000000e-01 : f32
    %274 = vector.broadcast %cst_98 : f32 to vector<2x32xf32>
    %275 = arith.addf %273, %274 : vector<2x32xf32>
    %276 = vector.extract_strided_slice %267 {offsets = [0, 32], sizes = [2, 32], strides = [1, 1]} : vector<2x128xf32> to vector<2x32xf32>
    %cst_99 = arith.constant 5.000000e-01 : f32
    %277 = vector.broadcast %cst_99 : f32 to vector<2x32xf32>
    %278 = arith.mulf %277, %276 : vector<2x32xf32>
    %279 = math.tanh %278 : vector<2x32xf32>
    %cst_100 = arith.constant 5.000000e-01 : f32
    %280 = vector.broadcast %cst_100 : f32 to vector<2x32xf32>
    %281 = arith.mulf %280, %279 : vector<2x32xf32>
    %cst_101 = arith.constant 5.000000e-01 : f32
    %282 = vector.broadcast %cst_101 : f32 to vector<2x32xf32>
    %283 = arith.addf %281, %282 : vector<2x32xf32>
    %284 = vector.extract_strided_slice %267 {offsets = [0, 64], sizes = [2, 32], strides = [1, 1]} : vector<2x128xf32> to vector<2x32xf32>
    %285 = math.tanh %284 : vector<2x32xf32>
    %286 = vector.extract_strided_slice %267 {offsets = [0, 96], sizes = [2, 32], strides = [1, 1]} : vector<2x128xf32> to vector<2x32xf32>
    %cst_102 = arith.constant 5.000000e-01 : f32
    %287 = vector.broadcast %cst_102 : f32 to vector<2x32xf32>
    %288 = arith.mulf %287, %286 : vector<2x32xf32>
    %289 = math.tanh %288 : vector<2x32xf32>
    %cst_103 = arith.constant 5.000000e-01 : f32
    %290 = vector.broadcast %cst_103 : f32 to vector<2x32xf32>
    %291 = arith.mulf %290, %289 : vector<2x32xf32>
    %cst_104 = arith.constant 5.000000e-01 : f32
    %292 = vector.broadcast %cst_104 : f32 to vector<2x32xf32>
    %293 = arith.addf %291, %292 : vector<2x32xf32>
    %294 = arith.mulf %283, %254 : vector<2x32xf32>
    %295 = arith.mulf %275, %285 : vector<2x32xf32>
    %296 = arith.addf %294, %295 : vector<2x32xf32>
    %297 = math.tanh %296 : vector<2x32xf32>
    %298 = arith.mulf %293, %297 : vector<2x32xf32>
    %299 = arith.index_cast %c6_i32 : i32 to index
    %c0_105 = arith.constant 0 : index
    %c0_106 = arith.constant 0 : index
    %300 = vector.load %arg8[%299, %c0_105, %c0_106] : memref<10x2x32xf32, #tpu.memory_space<vmem>>, vector<1x2x32xf32>
    %301 = vector.shape_cast %300 : vector<1x2x32xf32> to vector<2x32xf32>
    %302 = vector.shape_cast %298 : vector<2x32xf32> to vector<1x2x32xf32>
    tpu.vector_store %arg8[%299, %c0_105, %c0_106], %302 {strides = array<i32>} : memref<10x2x32xf32, #tpu.memory_space<vmem>>, vector<1x2x32xf32>,
    %c7_i32 = arith.constant 7 : i32
    %303 = arith.index_cast %c7_i32 : i32 to index
    %c0_107 = arith.constant 0 : index
    %c0_108 = arith.constant 0 : index
    %304 = vector.load %arg1[%303, %c0_107, %c0_108] : memref<10x2x128xbf16, #tpu.memory_space<vmem>>, vector<1x2x128xbf16>
    %305 = vector.shape_cast %304 : vector<1x2x128xbf16> to vector<2x128xbf16>
    %306 = arith.extf %305 : vector<2x128xbf16> to vector<2x128xf32>
    %307 = arith.truncf %298 : vector<2x32xf32> to vector<2x32xbf16>
    %cst_109 = arith.constant dense<0.000000e+00> : vector<2x128xf32>
    %308 = tpu.matmul %307, %4, %cst_109 {dimension_numbers = #tpu.dot_dimension_numbers<[1], [0], [0], [1], [0, 0, 1, 1], [], []>} : vector<2x32xbf16>, vector<32x128xbf16>, vector<2x128xf32> -> vector<2x128xf32>
    %309 = arith.addf %306, %308 : vector<2x128xf32>
    %310 = vector.extract_strided_slice %309 {offsets = [0, 0], sizes = [2, 32], strides = [1, 1]} : vector<2x128xf32> to vector<2x32xf32>
    %cst_110 = arith.constant 5.000000e-01 : f32
    %311 = vector.broadcast %cst_110 : f32 to vector<2x32xf32>
    %312 = arith.mulf %311, %310 : vector<2x32xf32>
    %313 = math.tanh %312 : vector<2x32xf32>
    %cst_111 = arith.constant 5.000000e-01 : f32
    %314 = vector.broadcast %cst_111 : f32 to vector<2x32xf32>
    %315 = arith.mulf %314, %313 : vector<2x32xf32>
    %cst_112 = arith.constant 5.000000e-01 : f32
    %316 = vector.broadcast %cst_112 : f32 to vector<2x32xf32>
    %317 = arith.addf %315, %316 : vector<2x32xf32>
    %318 = vector.extract_strided_slice %309 {offsets = [0, 32], sizes = [2, 32], strides = [1, 1]} : vector<2x128xf32> to vector<2x32xf32>
    %cst_113 = arith.constant 5.000000e-01 : f32
    %319 = vector.broadcast %cst_113 : f32 to vector<2x32xf32>
    %320 = arith.mulf %319, %318 : vector<2x32xf32>
    %321 = math.tanh %320 : vector<2x32xf32>
    %cst_114 = arith.constant 5.000000e-01 : f32
    %322 = vector.broadcast %cst_114 : f32 to vector<2x32xf32>
    %323 = arith.mulf %322, %321 : vector<2x32xf32>
    %cst_115 = arith.constant 5.000000e-01 : f32
    %324 = vector.broadcast %cst_115 : f32 to vector<2x32xf32>
    %325 = arith.addf %323, %324 : vector<2x32xf32>
    %326 = vector.extract_strided_slice %309 {offsets = [0, 64], sizes = [2, 32], strides = [1, 1]} : vector<2x128xf32> to vector<2x32xf32>
    %327 = math.tanh %326 : vector<2x32xf32>
    %328 = vector.extract_strided_slice %309 {offsets = [0, 96], sizes = [2, 32], strides = [1, 1]} : vector<2x128xf32> to vector<2x32xf32>
    %cst_116 = arith.constant 5.000000e-01 : f32
    %329 = vector.broadcast %cst_116 : f32 to vector<2x32xf32>
    %330 = arith.mulf %329, %328 : vector<2x32xf32>
    %331 = math.tanh %330 : vector<2x32xf32>
    %cst_117 = arith.constant 5.000000e-01 : f32
    %332 = vector.broadcast %cst_117 : f32 to vector<2x32xf32>
    %333 = arith.mulf %332, %331 : vector<2x32xf32>
    %cst_118 = arith.constant 5.000000e-01 : f32
    %334 = vector.broadcast %cst_118 : f32 to vector<2x32xf32>
    %335 = arith.addf %333, %334 : vector<2x32xf32>
    %336 = arith.mulf %325, %296 : vector<2x32xf32>
    %337 = arith.mulf %317, %327 : vector<2x32xf32>
    %338 = arith.addf %336, %337 : vector<2x32xf32>
    %339 = math.tanh %338 : vector<2x32xf32>
    %340 = arith.mulf %335, %339 : vector<2x32xf32>
    %341 = arith.index_cast %c7_i32 : i32 to index
    %c0_119 = arith.constant 0 : index
    %c0_120 = arith.constant 0 : index
    %342 = vector.load %arg8[%341, %c0_119, %c0_120] : memref<10x2x32xf32, #tpu.memory_space<vmem>>, vector<1x2x32xf32>
    %343 = vector.shape_cast %342 : vector<1x2x32xf32> to vector<2x32xf32>
    %344 = vector.shape_cast %340 : vector<2x32xf32> to vector<1x2x32xf32>
    tpu.vector_store %arg8[%341, %c0_119, %c0_120], %344 {strides = array<i32>} : memref<10x2x32xf32, #tpu.memory_space<vmem>>, vector<1x2x32xf32>,
    %c8_i32 = arith.constant 8 : i32
    %345 = arith.index_cast %c8_i32 : i32 to index
    %c0_121 = arith.constant 0 : index
    %c0_122 = arith.constant 0 : index
    %346 = vector.load %arg1[%345, %c0_121, %c0_122] : memref<10x2x128xbf16, #tpu.memory_space<vmem>>, vector<1x2x128xbf16>
    %347 = vector.shape_cast %346 : vector<1x2x128xbf16> to vector<2x128xbf16>
    %348 = arith.extf %347 : vector<2x128xbf16> to vector<2x128xf32>
    %349 = arith.truncf %340 : vector<2x32xf32> to vector<2x32xbf16>
    %cst_123 = arith.constant dense<0.000000e+00> : vector<2x128xf32>
    %350 = tpu.matmul %349, %4, %cst_123 {dimension_numbers = #tpu.dot_dimension_numbers<[1], [0], [0], [1], [0, 0, 1, 1], [], []>} : vector<2x32xbf16>, vector<32x128xbf16>, vector<2x128xf32> -> vector<2x128xf32>
    %351 = arith.addf %348, %350 : vector<2x128xf32>
    %352 = vector.extract_strided_slice %351 {offsets = [0, 0], sizes = [2, 32], strides = [1, 1]} : vector<2x128xf32> to vector<2x32xf32>
    %cst_124 = arith.constant 5.000000e-01 : f32
    %353 = vector.broadcast %cst_124 : f32 to vector<2x32xf32>
    %354 = arith.mulf %353, %352 : vector<2x32xf32>
    %355 = math.tanh %354 : vector<2x32xf32>
    %cst_125 = arith.constant 5.000000e-01 : f32
    %356 = vector.broadcast %cst_125 : f32 to vector<2x32xf32>
    %357 = arith.mulf %356, %355 : vector<2x32xf32>
    %cst_126 = arith.constant 5.000000e-01 : f32
    %358 = vector.broadcast %cst_126 : f32 to vector<2x32xf32>
    %359 = arith.addf %357, %358 : vector<2x32xf32>
    %360 = vector.extract_strided_slice %351 {offsets = [0, 32], sizes = [2, 32], strides = [1, 1]} : vector<2x128xf32> to vector<2x32xf32>
    %cst_127 = arith.constant 5.000000e-01 : f32
    %361 = vector.broadcast %cst_127 : f32 to vector<2x32xf32>
    %362 = arith.mulf %361, %360 : vector<2x32xf32>
    %363 = math.tanh %362 : vector<2x32xf32>
    %cst_128 = arith.constant 5.000000e-01 : f32
    %364 = vector.broadcast %cst_128 : f32 to vector<2x32xf32>
    %365 = arith.mulf %364, %363 : vector<2x32xf32>
    %cst_129 = arith.constant 5.000000e-01 : f32
    %366 = vector.broadcast %cst_129 : f32 to vector<2x32xf32>
    %367 = arith.addf %365, %366 : vector<2x32xf32>
    %368 = vector.extract_strided_slice %351 {offsets = [0, 64], sizes = [2, 32], strides = [1, 1]} : vector<2x128xf32> to vector<2x32xf32>
    %369 = math.tanh %368 : vector<2x32xf32>
    %370 = vector.extract_strided_slice %351 {offsets = [0, 96], sizes = [2, 32], strides = [1, 1]} : vector<2x128xf32> to vector<2x32xf32>
    %cst_130 = arith.constant 5.000000e-01 : f32
    %371 = vector.broadcast %cst_130 : f32 to vector<2x32xf32>
    %372 = arith.mulf %371, %370 : vector<2x32xf32>
    %373 = math.tanh %372 : vector<2x32xf32>
    %cst_131 = arith.constant 5.000000e-01 : f32
    %374 = vector.broadcast %cst_131 : f32 to vector<2x32xf32>
    %375 = arith.mulf %374, %373 : vector<2x32xf32>
    %cst_132 = arith.constant 5.000000e-01 : f32
    %376 = vector.broadcast %cst_132 : f32 to vector<2x32xf32>
    %377 = arith.addf %375, %376 : vector<2x32xf32>
    %378 = arith.mulf %367, %338 : vector<2x32xf32>
    %379 = arith.mulf %359, %369 : vector<2x32xf32>
    %380 = arith.addf %378, %379 : vector<2x32xf32>
    %381 = math.tanh %380 : vector<2x32xf32>
    %382 = arith.mulf %377, %381 : vector<2x32xf32>
    %383 = arith.index_cast %c8_i32 : i32 to index
    %c0_133 = arith.constant 0 : index
    %c0_134 = arith.constant 0 : index
    %384 = vector.load %arg8[%383, %c0_133, %c0_134] : memref<10x2x32xf32, #tpu.memory_space<vmem>>, vector<1x2x32xf32>
    %385 = vector.shape_cast %384 : vector<1x2x32xf32> to vector<2x32xf32>
    %386 = vector.shape_cast %382 : vector<2x32xf32> to vector<1x2x32xf32>
    tpu.vector_store %arg8[%383, %c0_133, %c0_134], %386 {strides = array<i32>} : memref<10x2x32xf32, #tpu.memory_space<vmem>>, vector<1x2x32xf32>,
    %c9_i32 = arith.constant 9 : i32
    %387 = arith.index_cast %c9_i32 : i32 to index
    %c0_135 = arith.constant 0 : index
    %c0_136 = arith.constant 0 : index
    %388 = vector.load %arg1[%387, %c0_135, %c0_136] : memref<10x2x128xbf16, #tpu.memory_space<vmem>>, vector<1x2x128xbf16>
    %389 = vector.shape_cast %388 : vector<1x2x128xbf16> to vector<2x128xbf16>
    %390 = arith.extf %389 : vector<2x128xbf16> to vector<2x128xf32>
    %391 = arith.truncf %382 : vector<2x32xf32> to vector<2x32xbf16>
    %cst_137 = arith.constant dense<0.000000e+00> : vector<2x128xf32>
    %392 = tpu.matmul %391, %4, %cst_137 {dimension_numbers = #tpu.dot_dimension_numbers<[1], [0], [0], [1], [0, 0, 1, 1], [], []>} : vector<2x32xbf16>, vector<32x128xbf16>, vector<2x128xf32> -> vector<2x128xf32>
    %393 = arith.addf %390, %392 : vector<2x128xf32>
    %394 = vector.extract_strided_slice %393 {offsets = [0, 0], sizes = [2, 32], strides = [1, 1]} : vector<2x128xf32> to vector<2x32xf32>
    %cst_138 = arith.constant 5.000000e-01 : f32
    %395 = vector.broadcast %cst_138 : f32 to vector<2x32xf32>
    %396 = arith.mulf %395, %394 : vector<2x32xf32>
    %397 = math.tanh %396 : vector<2x32xf32>
    %cst_139 = arith.constant 5.000000e-01 : f32
    %398 = vector.broadcast %cst_139 : f32 to vector<2x32xf32>
    %399 = arith.mulf %398, %397 : vector<2x32xf32>
    %cst_140 = arith.constant 5.000000e-01 : f32
    %400 = vector.broadcast %cst_140 : f32 to vector<2x32xf32>
    %401 = arith.addf %399, %400 : vector<2x32xf32>
    %402 = vector.extract_strided_slice %393 {offsets = [0, 32], sizes = [2, 32], strides = [1, 1]} : vector<2x128xf32> to vector<2x32xf32>
    %cst_141 = arith.constant 5.000000e-01 : f32
    %403 = vector.broadcast %cst_141 : f32 to vector<2x32xf32>
    %404 = arith.mulf %403, %402 : vector<2x32xf32>
    %405 = math.tanh %404 : vector<2x32xf32>
    %cst_142 = arith.constant 5.000000e-01 : f32
    %406 = vector.broadcast %cst_142 : f32 to vector<2x32xf32>
    %407 = arith.mulf %406, %405 : vector<2x32xf32>
    %cst_143 = arith.constant 5.000000e-01 : f32
    %408 = vector.broadcast %cst_143 : f32 to vector<2x32xf32>
    %409 = arith.addf %407, %408 : vector<2x32xf32>
    %410 = vector.extract_strided_slice %393 {offsets = [0, 64], sizes = [2, 32], strides = [1, 1]} : vector<2x128xf32> to vector<2x32xf32>
    %411 = math.tanh %410 : vector<2x32xf32>
    %412 = vector.extract_strided_slice %393 {offsets = [0, 96], sizes = [2, 32], strides = [1, 1]} : vector<2x128xf32> to vector<2x32xf32>
    %cst_144 = arith.constant 5.000000e-01 : f32
    %413 = vector.broadcast %cst_144 : f32 to vector<2x32xf32>
    %414 = arith.mulf %413, %412 : vector<2x32xf32>
    %415 = math.tanh %414 : vector<2x32xf32>
    %cst_145 = arith.constant 5.000000e-01 : f32
    %416 = vector.broadcast %cst_145 : f32 to vector<2x32xf32>
    %417 = arith.mulf %416, %415 : vector<2x32xf32>
    %cst_146 = arith.constant 5.000000e-01 : f32
    %418 = vector.broadcast %cst_146 : f32 to vector<2x32xf32>
    %419 = arith.addf %417, %418 : vector<2x32xf32>
    %420 = arith.mulf %409, %380 : vector<2x32xf32>
    %421 = arith.mulf %401, %411 : vector<2x32xf32>
    %422 = arith.addf %420, %421 : vector<2x32xf32>
    %423 = math.tanh %422 : vector<2x32xf32>
    %424 = arith.mulf %419, %423 : vector<2x32xf32>
    %425 = arith.index_cast %c9_i32 : i32 to index
    %c0_147 = arith.constant 0 : index
    %c0_148 = arith.constant 0 : index
    %426 = vector.load %arg8[%425, %c0_147, %c0_148] : memref<10x2x32xf32, #tpu.memory_space<vmem>>, vector<1x2x32xf32>
    %427 = vector.shape_cast %426 : vector<1x2x32xf32> to vector<2x32xf32>
    %428 = vector.shape_cast %424 : vector<2x32xf32> to vector<1x2x32xf32>
    tpu.vector_store %arg8[%425, %c0_147, %c0_148], %428 {strides = array<i32>} : memref<10x2x32xf32, #tpu.memory_space<vmem>>, vector<1x2x32xf32>,
    %c10_i32 = arith.constant 10 : i32
    %c0_149 = arith.constant 0 : index
    %c0_150 = arith.constant 0 : index
    %c0_151 = arith.constant 0 : index
    %429 = vector.load %arg9[%c0_149, %c0_150, %c0_151] : memref<2x2x32xf32, #tpu.memory_space<vmem>>, vector<1x2x32xf32>
    %430 = vector.shape_cast %429 : vector<1x2x32xf32> to vector<2x32xf32>
    %431 = vector.shape_cast %424 : vector<2x32xf32> to vector<1x2x32xf32>
    tpu.vector_store %arg9[%c0_149, %c0_150, %c0_151], %431 {strides = array<i32>} : memref<2x2x32xf32, #tpu.memory_space<vmem>>, vector<1x2x32xf32>,
    %c0_152 = arith.constant 0 : index
    %c0_153 = arith.constant 0 : index
    %c0_154 = arith.constant 0 : index
    %432 = vector.load %arg10[%c0_152, %c0_153, %c0_154] : memref<2x2x32xf32, #tpu.memory_space<vmem>>, vector<1x2x32xf32>
    %433 = vector.shape_cast %432 : vector<1x2x32xf32> to vector<2x32xf32>
    %434 = vector.shape_cast %422 : vector<2x32xf32> to vector<1x2x32xf32>
    tpu.vector_store %arg10[%c0_152, %c0_153, %c0_154], %434 {strides = array<i32>} : memref<2x2x32xf32, #tpu.memory_space<vmem>>, vector<1x2x32xf32>,
    %c1 = arith.constant 1 : index
    %c0_155 = arith.constant 0 : index
    %c0_156 = arith.constant 0 : index
    %435 = vector.load %arg2[%c1, %c0_155, %c0_156] : memref<2x32x128xbf16, #tpu.memory_space<vmem>>, vector<1x32x128xbf16>
    %436 = vector.shape_cast %435 : vector<1x32x128xbf16> to vector<32x128xbf16>
    %c0_157 = arith.constant 0 : index
    %c0_158 = arith.constant 0 : index
    %c0_159 = arith.constant 0 : index
    %437 = vector.load %arg3[%c0_157, %c0_158, %c0_159] : memref<1x32x128xbf16, #tpu.memory_space<vmem>>, vector<1x32x128xbf16>
    %438 = vector.shape_cast %437 : vector<1x32x128xbf16> to vector<32x128xbf16>
    %c0_160 = arith.constant 0 : index
    %c0_161 = arith.constant 0 : index
    %c0_162 = arith.constant 0 : index
    %439 = vector.load %arg4[%c0_160, %c0_161, %c0_162] : memref<1x1x128xf32, #tpu.memory_space<vmem>>, vector<1x1x128xf32>
    %440 = vector.shape_cast %439 : vector<1x1x128xf32> to vector<1x128xf32>
    %c1_163 = arith.constant 1 : index
    %c0_164 = arith.constant 0 : index
    %c0_165 = arith.constant 0 : index
    %441 = vector.load %arg9[%c1_163, %c0_164, %c0_165] : memref<2x2x32xf32, #tpu.memory_space<vmem>>, vector<1x2x32xf32>
    %442 = vector.shape_cast %441 : vector<1x2x32xf32> to vector<2x32xf32>
    %c1_166 = arith.constant 1 : index
    %c0_167 = arith.constant 0 : index
    %c0_168 = arith.constant 0 : index
    %443 = vector.load %arg10[%c1_166, %c0_167, %c0_168] : memref<2x2x32xf32, #tpu.memory_space<vmem>>, vector<1x2x32xf32>
    %444 = vector.shape_cast %443 : vector<1x2x32xf32> to vector<2x32xf32>
    %c0_i32_169 = arith.constant 0 : i32
    %445 = arith.index_cast %c0_i32_169 : i32 to index
    %c0_170 = arith.constant 0 : index
    %c0_171 = arith.constant 0 : index
    %446 = vector.load %arg8[%445, %c0_170, %c0_171] : memref<10x2x32xf32, #tpu.memory_space<vmem>>, vector<1x2x32xf32>
    %447 = vector.shape_cast %446 : vector<1x2x32xf32> to vector<2x32xf32>
    %448 = arith.truncf %447 : vector<2x32xf32> to vector<2x32xbf16>
    %cst_172 = arith.constant dense<0.000000e+00> : vector<2x128xf32>
    %449 = tpu.matmul %448, %438, %cst_172 {dimension_numbers = #tpu.dot_dimension_numbers<[1], [0], [0], [1], [0, 0, 1, 1], [], []>} : vector<2x32xbf16>, vector<32x128xbf16>, vector<2x128xf32> -> vector<2x128xf32>
    %450 = vector.broadcast %440 : vector<1x128xf32> to vector<2x128xf32>
    %451 = arith.addf %449, %450 : vector<2x128xf32>
    %452 = arith.truncf %442 : vector<2x32xf32> to vector<2x32xbf16>
    %cst_173 = arith.constant dense<0.000000e+00> : vector<2x128xf32>
    %453 = tpu.matmul %452, %436, %cst_173 {dimension_numbers = #tpu.dot_dimension_numbers<[1], [0], [0], [1], [0, 0, 1, 1], [], []>} : vector<2x32xbf16>, vector<32x128xbf16>, vector<2x128xf32> -> vector<2x128xf32>
    %454 = arith.addf %451, %453 : vector<2x128xf32>
    %455 = vector.extract_strided_slice %454 {offsets = [0, 0], sizes = [2, 32], strides = [1, 1]} : vector<2x128xf32> to vector<2x32xf32>
    %cst_174 = arith.constant 5.000000e-01 : f32
    %456 = vector.broadcast %cst_174 : f32 to vector<2x32xf32>
    %457 = arith.mulf %456, %455 : vector<2x32xf32>
    %458 = math.tanh %457 : vector<2x32xf32>
    %cst_175 = arith.constant 5.000000e-01 : f32
    %459 = vector.broadcast %cst_175 : f32 to vector<2x32xf32>
    %460 = arith.mulf %459, %458 : vector<2x32xf32>
    %cst_176 = arith.constant 5.000000e-01 : f32
    %461 = vector.broadcast %cst_176 : f32 to vector<2x32xf32>
    %462 = arith.addf %460, %461 : vector<2x32xf32>
    %463 = vector.extract_strided_slice %454 {offsets = [0, 32], sizes = [2, 32], strides = [1, 1]} : vector<2x128xf32> to vector<2x32xf32>
    %cst_177 = arith.constant 5.000000e-01 : f32
    %464 = vector.broadcast %cst_177 : f32 to vector<2x32xf32>
    %465 = arith.mulf %464, %463 : vector<2x32xf32>
    %466 = math.tanh %465 : vector<2x32xf32>
    %cst_178 = arith.constant 5.000000e-01 : f32
    %467 = vector.broadcast %cst_178 : f32 to vector<2x32xf32>
    %468 = arith.mulf %467, %466 : vector<2x32xf32>
    %cst_179 = arith.constant 5.000000e-01 : f32
    %469 = vector.broadcast %cst_179 : f32 to vector<2x32xf32>
    %470 = arith.addf %468, %469 : vector<2x32xf32>
    %471 = vector.extract_strided_slice %454 {offsets = [0, 64], sizes = [2, 32], strides = [1, 1]} : vector<2x128xf32> to vector<2x32xf32>
    %472 = math.tanh %471 : vector<2x32xf32>
    %473 = vector.extract_strided_slice %454 {offsets = [0, 96], sizes = [2, 32], strides = [1, 1]} : vector<2x128xf32> to vector<2x32xf32>
    %cst_180 = arith.constant 5.000000e-01 : f32
    %474 = vector.broadcast %cst_180 : f32 to vector<2x32xf32>
    %475 = arith.mulf %474, %473 : vector<2x32xf32>
    %476 = math.tanh %475 : vector<2x32xf32>
    %cst_181 = arith.constant 5.000000e-01 : f32
    %477 = vector.broadcast %cst_181 : f32 to vector<2x32xf32>
    %478 = arith.mulf %477, %476 : vector<2x32xf32>
    %cst_182 = arith.constant 5.000000e-01 : f32
    %479 = vector.broadcast %cst_182 : f32 to vector<2x32xf32>
    %480 = arith.addf %478, %479 : vector<2x32xf32>
    %481 = arith.mulf %470, %444 : vector<2x32xf32>
    %482 = arith.mulf %462, %472 : vector<2x32xf32>
    %483 = arith.addf %481, %482 : vector<2x32xf32>
    %484 = math.tanh %483 : vector<2x32xf32>
    %485 = arith.mulf %480, %484 : vector<2x32xf32>
    %486 = arith.index_cast %c0_i32_169 : i32 to index
    %c0_183 = arith.constant 0 : index
    %c0_184 = arith.constant 0 : index
    %487 = vector.load %arg5[%486, %c0_183, %c0_184] : memref<10x2x32xf32, #tpu.memory_space<vmem>>, vector<1x2x32xf32>
    %488 = vector.shape_cast %487 : vector<1x2x32xf32> to vector<2x32xf32>
    %489 = vector.shape_cast %485 : vector<2x32xf32> to vector<1x2x32xf32>
    tpu.vector_store %arg5[%486, %c0_183, %c0_184], %489 {strides = array<i32>} : memref<10x2x32xf32, #tpu.memory_space<vmem>>, vector<1x2x32xf32>,
    %c1_i32_185 = arith.constant 1 : i32
    %490 = arith.index_cast %c1_i32_185 : i32 to index
    %c0_186 = arith.constant 0 : index
    %c0_187 = arith.constant 0 : index
    %491 = vector.load %arg8[%490, %c0_186, %c0_187] : memref<10x2x32xf32, #tpu.memory_space<vmem>>, vector<1x2x32xf32>
    %492 = vector.shape_cast %491 : vector<1x2x32xf32> to vector<2x32xf32>
    %493 = arith.truncf %492 : vector<2x32xf32> to vector<2x32xbf16>
    %cst_188 = arith.constant dense<0.000000e+00> : vector<2x128xf32>
    %494 = tpu.matmul %493, %438, %cst_188 {dimension_numbers = #tpu.dot_dimension_numbers<[1], [0], [0], [1], [0, 0, 1, 1], [], []>} : vector<2x32xbf16>, vector<32x128xbf16>, vector<2x128xf32> -> vector<2x128xf32>
    %495 = vector.broadcast %440 : vector<1x128xf32> to vector<2x128xf32>
    %496 = arith.addf %494, %495 : vector<2x128xf32>
    %497 = arith.truncf %485 : vector<2x32xf32> to vector<2x32xbf16>
    %cst_189 = arith.constant dense<0.000000e+00> : vector<2x128xf32>
    %498 = tpu.matmul %497, %436, %cst_189 {dimension_numbers = #tpu.dot_dimension_numbers<[1], [0], [0], [1], [0, 0, 1, 1], [], []>} : vector<2x32xbf16>, vector<32x128xbf16>, vector<2x128xf32> -> vector<2x128xf32>
    %499 = arith.addf %496, %498 : vector<2x128xf32>
    %500 = vector.extract_strided_slice %499 {offsets = [0, 0], sizes = [2, 32], strides = [1, 1]} : vector<2x128xf32> to vector<2x32xf32>
    %cst_190 = arith.constant 5.000000e-01 : f32
    %501 = vector.broadcast %cst_190 : f32 to vector<2x32xf32>
    %502 = arith.mulf %501, %500 : vector<2x32xf32>
    %503 = math.tanh %502 : vector<2x32xf32>
    %cst_191 = arith.constant 5.000000e-01 : f32
    %504 = vector.broadcast %cst_191 : f32 to vector<2x32xf32>
    %505 = arith.mulf %504, %503 : vector<2x32xf32>
    %cst_192 = arith.constant 5.000000e-01 : f32
    %506 = vector.broadcast %cst_192 : f32 to vector<2x32xf32>
    %507 = arith.addf %505, %506 : vector<2x32xf32>
    %508 = vector.extract_strided_slice %499 {offsets = [0, 32], sizes = [2, 32], strides = [1, 1]} : vector<2x128xf32> to vector<2x32xf32>
    %cst_193 = arith.constant 5.000000e-01 : f32
    %509 = vector.broadcast %cst_193 : f32 to vector<2x32xf32>
    %510 = arith.mulf %509, %508 : vector<2x32xf32>
    %511 = math.tanh %510 : vector<2x32xf32>
    %cst_194 = arith.constant 5.000000e-01 : f32
    %512 = vector.broadcast %cst_194 : f32 to vector<2x32xf32>
    %513 = arith.mulf %512, %511 : vector<2x32xf32>
    %cst_195 = arith.constant 5.000000e-01 : f32
    %514 = vector.broadcast %cst_195 : f32 to vector<2x32xf32>
    %515 = arith.addf %513, %514 : vector<2x32xf32>
    %516 = vector.extract_strided_slice %499 {offsets = [0, 64], sizes = [2, 32], strides = [1, 1]} : vector<2x128xf32> to vector<2x32xf32>
    %517 = math.tanh %516 : vector<2x32xf32>
    %518 = vector.extract_strided_slice %499 {offsets = [0, 96], sizes = [2, 32], strides = [1, 1]} : vector<2x128xf32> to vector<2x32xf32>
    %cst_196 = arith.constant 5.000000e-01 : f32
    %519 = vector.broadcast %cst_196 : f32 to vector<2x32xf32>
    %520 = arith.mulf %519, %518 : vector<2x32xf32>
    %521 = math.tanh %520 : vector<2x32xf32>
    %cst_197 = arith.constant 5.000000e-01 : f32
    %522 = vector.broadcast %cst_197 : f32 to vector<2x32xf32>
    %523 = arith.mulf %522, %521 : vector<2x32xf32>
    %cst_198 = arith.constant 5.000000e-01 : f32
    %524 = vector.broadcast %cst_198 : f32 to vector<2x32xf32>
    %525 = arith.addf %523, %524 : vector<2x32xf32>
    %526 = arith.mulf %515, %483 : vector<2x32xf32>
    %527 = arith.mulf %507, %517 : vector<2x32xf32>
    %528 = arith.addf %526, %527 : vector<2x32xf32>
    %529 = math.tanh %528 : vector<2x32xf32>
    %530 = arith.mulf %525, %529 : vector<2x32xf32>
    %531 = arith.index_cast %c1_i32_185 : i32 to index
    %c0_199 = arith.constant 0 : index
    %c0_200 = arith.constant 0 : index
    %532 = vector.load %arg5[%531, %c0_199, %c0_200] : memref<10x2x32xf32, #tpu.memory_space<vmem>>, vector<1x2x32xf32>
    %533 = vector.shape_cast %532 : vector<1x2x32xf32> to vector<2x32xf32>
    %534 = vector.shape_cast %530 : vector<2x32xf32> to vector<1x2x32xf32>
    tpu.vector_store %arg5[%531, %c0_199, %c0_200], %534 {strides = array<i32>} : memref<10x2x32xf32, #tpu.memory_space<vmem>>, vector<1x2x32xf32>,
    %c2_i32_201 = arith.constant 2 : i32
    %535 = arith.index_cast %c2_i32_201 : i32 to index
    %c0_202 = arith.constant 0 : index
    %c0_203 = arith.constant 0 : index
    %536 = vector.load %arg8[%535, %c0_202, %c0_203] : memref<10x2x32xf32, #tpu.memory_space<vmem>>, vector<1x2x32xf32>
    %537 = vector.shape_cast %536 : vector<1x2x32xf32> to vector<2x32xf32>
    %538 = arith.truncf %537 : vector<2x32xf32> to vector<2x32xbf16>
    %cst_204 = arith.constant dense<0.000000e+00> : vector<2x128xf32>
    %539 = tpu.matmul %538, %438, %cst_204 {dimension_numbers = #tpu.dot_dimension_numbers<[1], [0], [0], [1], [0, 0, 1, 1], [], []>} : vector<2x32xbf16>, vector<32x128xbf16>, vector<2x128xf32> -> vector<2x128xf32>
    %540 = vector.broadcast %440 : vector<1x128xf32> to vector<2x128xf32>
    %541 = arith.addf %539, %540 : vector<2x128xf32>
    %542 = arith.truncf %530 : vector<2x32xf32> to vector<2x32xbf16>
    %cst_205 = arith.constant dense<0.000000e+00> : vector<2x128xf32>
    %543 = tpu.matmul %542, %436, %cst_205 {dimension_numbers = #tpu.dot_dimension_numbers<[1], [0], [0], [1], [0, 0, 1, 1], [], []>} : vector<2x32xbf16>, vector<32x128xbf16>, vector<2x128xf32> -> vector<2x128xf32>
    %544 = arith.addf %541, %543 : vector<2x128xf32>
    %545 = vector.extract_strided_slice %544 {offsets = [0, 0], sizes = [2, 32], strides = [1, 1]} : vector<2x128xf32> to vector<2x32xf32>
    %cst_206 = arith.constant 5.000000e-01 : f32
    %546 = vector.broadcast %cst_206 : f32 to vector<2x32xf32>
    %547 = arith.mulf %546, %545 : vector<2x32xf32>
    %548 = math.tanh %547 : vector<2x32xf32>
    %cst_207 = arith.constant 5.000000e-01 : f32
    %549 = vector.broadcast %cst_207 : f32 to vector<2x32xf32>
    %550 = arith.mulf %549, %548 : vector<2x32xf32>
    %cst_208 = arith.constant 5.000000e-01 : f32
    %551 = vector.broadcast %cst_208 : f32 to vector<2x32xf32>
    %552 = arith.addf %550, %551 : vector<2x32xf32>
    %553 = vector.extract_strided_slice %544 {offsets = [0, 32], sizes = [2, 32], strides = [1, 1]} : vector<2x128xf32> to vector<2x32xf32>
    %cst_209 = arith.constant 5.000000e-01 : f32
    %554 = vector.broadcast %cst_209 : f32 to vector<2x32xf32>
    %555 = arith.mulf %554, %553 : vector<2x32xf32>
    %556 = math.tanh %555 : vector<2x32xf32>
    %cst_210 = arith.constant 5.000000e-01 : f32
    %557 = vector.broadcast %cst_210 : f32 to vector<2x32xf32>
    %558 = arith.mulf %557, %556 : vector<2x32xf32>
    %cst_211 = arith.constant 5.000000e-01 : f32
    %559 = vector.broadcast %cst_211 : f32 to vector<2x32xf32>
    %560 = arith.addf %558, %559 : vector<2x32xf32>
    %561 = vector.extract_strided_slice %544 {offsets = [0, 64], sizes = [2, 32], strides = [1, 1]} : vector<2x128xf32> to vector<2x32xf32>
    %562 = math.tanh %561 : vector<2x32xf32>
    %563 = vector.extract_strided_slice %544 {offsets = [0, 96], sizes = [2, 32], strides = [1, 1]} : vector<2x128xf32> to vector<2x32xf32>
    %cst_212 = arith.constant 5.000000e-01 : f32
    %564 = vector.broadcast %cst_212 : f32 to vector<2x32xf32>
    %565 = arith.mulf %564, %563 : vector<2x32xf32>
    %566 = math.tanh %565 : vector<2x32xf32>
    %cst_213 = arith.constant 5.000000e-01 : f32
    %567 = vector.broadcast %cst_213 : f32 to vector<2x32xf32>
    %568 = arith.mulf %567, %566 : vector<2x32xf32>
    %cst_214 = arith.constant 5.000000e-01 : f32
    %569 = vector.broadcast %cst_214 : f32 to vector<2x32xf32>
    %570 = arith.addf %568, %569 : vector<2x32xf32>
    %571 = arith.mulf %560, %528 : vector<2x32xf32>
    %572 = arith.mulf %552, %562 : vector<2x32xf32>
    %573 = arith.addf %571, %572 : vector<2x32xf32>
    %574 = math.tanh %573 : vector<2x32xf32>
    %575 = arith.mulf %570, %574 : vector<2x32xf32>
    %576 = arith.index_cast %c2_i32_201 : i32 to index
    %c0_215 = arith.constant 0 : index
    %c0_216 = arith.constant 0 : index
    %577 = vector.load %arg5[%576, %c0_215, %c0_216] : memref<10x2x32xf32, #tpu.memory_space<vmem>>, vector<1x2x32xf32>
    %578 = vector.shape_cast %577 : vector<1x2x32xf32> to vector<2x32xf32>
    %579 = vector.shape_cast %575 : vector<2x32xf32> to vector<1x2x32xf32>
    tpu.vector_store %arg5[%576, %c0_215, %c0_216], %579 {strides = array<i32>} : memref<10x2x32xf32, #tpu.memory_space<vmem>>, vector<1x2x32xf32>,
    %c3_i32_217 = arith.constant 3 : i32
    %580 = arith.index_cast %c3_i32_217 : i32 to index
    %c0_218 = arith.constant 0 : index
    %c0_219 = arith.constant 0 : index
    %581 = vector.load %arg8[%580, %c0_218, %c0_219] : memref<10x2x32xf32, #tpu.memory_space<vmem>>, vector<1x2x32xf32>
    %582 = vector.shape_cast %581 : vector<1x2x32xf32> to vector<2x32xf32>
    %583 = arith.truncf %582 : vector<2x32xf32> to vector<2x32xbf16>
    %cst_220 = arith.constant dense<0.000000e+00> : vector<2x128xf32>
    %584 = tpu.matmul %583, %438, %cst_220 {dimension_numbers = #tpu.dot_dimension_numbers<[1], [0], [0], [1], [0, 0, 1, 1], [], []>} : vector<2x32xbf16>, vector<32x128xbf16>, vector<2x128xf32> -> vector<2x128xf32>
    %585 = vector.broadcast %440 : vector<1x128xf32> to vector<2x128xf32>
    %586 = arith.addf %584, %585 : vector<2x128xf32>
    %587 = arith.truncf %575 : vector<2x32xf32> to vector<2x32xbf16>
    %cst_221 = arith.constant dense<0.000000e+00> : vector<2x128xf32>
    %588 = tpu.matmul %587, %436, %cst_221 {dimension_numbers = #tpu.dot_dimension_numbers<[1], [0], [0], [1], [0, 0, 1, 1], [], []>} : vector<2x32xbf16>, vector<32x128xbf16>, vector<2x128xf32> -> vector<2x128xf32>
    %589 = arith.addf %586, %588 : vector<2x128xf32>
    %590 = vector.extract_strided_slice %589 {offsets = [0, 0], sizes = [2, 32], strides = [1, 1]} : vector<2x128xf32> to vector<2x32xf32>
    %cst_222 = arith.constant 5.000000e-01 : f32
    %591 = vector.broadcast %cst_222 : f32 to vector<2x32xf32>
    %592 = arith.mulf %591, %590 : vector<2x32xf32>
    %593 = math.tanh %592 : vector<2x32xf32>
    %cst_223 = arith.constant 5.000000e-01 : f32
    %594 = vector.broadcast %cst_223 : f32 to vector<2x32xf32>
    %595 = arith.mulf %594, %593 : vector<2x32xf32>
    %cst_224 = arith.constant 5.000000e-01 : f32
    %596 = vector.broadcast %cst_224 : f32 to vector<2x32xf32>
    %597 = arith.addf %595, %596 : vector<2x32xf32>
    %598 = vector.extract_strided_slice %589 {offsets = [0, 32], sizes = [2, 32], strides = [1, 1]} : vector<2x128xf32> to vector<2x32xf32>
    %cst_225 = arith.constant 5.000000e-01 : f32
    %599 = vector.broadcast %cst_225 : f32 to vector<2x32xf32>
    %600 = arith.mulf %599, %598 : vector<2x32xf32>
    %601 = math.tanh %600 : vector<2x32xf32>
    %cst_226 = arith.constant 5.000000e-01 : f32
    %602 = vector.broadcast %cst_226 : f32 to vector<2x32xf32>
    %603 = arith.mulf %602, %601 : vector<2x32xf32>
    %cst_227 = arith.constant 5.000000e-01 : f32
    %604 = vector.broadcast %cst_227 : f32 to vector<2x32xf32>
    %605 = arith.addf %603, %604 : vector<2x32xf32>
    %606 = vector.extract_strided_slice %589 {offsets = [0, 64], sizes = [2, 32], strides = [1, 1]} : vector<2x128xf32> to vector<2x32xf32>
    %607 = math.tanh %606 : vector<2x32xf32>
    %608 = vector.extract_strided_slice %589 {offsets = [0, 96], sizes = [2, 32], strides = [1, 1]} : vector<2x128xf32> to vector<2x32xf32>
    %cst_228 = arith.constant 5.000000e-01 : f32
    %609 = vector.broadcast %cst_228 : f32 to vector<2x32xf32>
    %610 = arith.mulf %609, %608 : vector<2x32xf32>
    %611 = math.tanh %610 : vector<2x32xf32>
    %cst_229 = arith.constant 5.000000e-01 : f32
    %612 = vector.broadcast %cst_229 : f32 to vector<2x32xf32>
    %613 = arith.mulf %612, %611 : vector<2x32xf32>
    %cst_230 = arith.constant 5.000000e-01 : f32
    %614 = vector.broadcast %cst_230 : f32 to vector<2x32xf32>
    %615 = arith.addf %613, %614 : vector<2x32xf32>
    %616 = arith.mulf %605, %573 : vector<2x32xf32>
    %617 = arith.mulf %597, %607 : vector<2x32xf32>
    %618 = arith.addf %616, %617 : vector<2x32xf32>
    %619 = math.tanh %618 : vector<2x32xf32>
    %620 = arith.mulf %615, %619 : vector<2x32xf32>
    %621 = arith.index_cast %c3_i32_217 : i32 to index
    %c0_231 = arith.constant 0 : index
    %c0_232 = arith.constant 0 : index
    %622 = vector.load %arg5[%621, %c0_231, %c0_232] : memref<10x2x32xf32, #tpu.memory_space<vmem>>, vector<1x2x32xf32>
    %623 = vector.shape_cast %622 : vector<1x2x32xf32> to vector<2x32xf32>
    %624 = vector.shape_cast %620 : vector<2x32xf32> to vector<1x2x32xf32>
    tpu.vector_store %arg5[%621, %c0_231, %c0_232], %624 {strides = array<i32>} : memref<10x2x32xf32, #tpu.memory_space<vmem>>, vector<1x2x32xf32>,
    %c4_i32_233 = arith.constant 4 : i32
    %625 = arith.index_cast %c4_i32_233 : i32 to index
    %c0_234 = arith.constant 0 : index
    %c0_235 = arith.constant 0 : index
    %626 = vector.load %arg8[%625, %c0_234, %c0_235] : memref<10x2x32xf32, #tpu.memory_space<vmem>>, vector<1x2x32xf32>
    %627 = vector.shape_cast %626 : vector<1x2x32xf32> to vector<2x32xf32>
    %628 = arith.truncf %627 : vector<2x32xf32> to vector<2x32xbf16>
    %cst_236 = arith.constant dense<0.000000e+00> : vector<2x128xf32>
    %629 = tpu.matmul %628, %438, %cst_236 {dimension_numbers = #tpu.dot_dimension_numbers<[1], [0], [0], [1], [0, 0, 1, 1], [], []>} : vector<2x32xbf16>, vector<32x128xbf16>, vector<2x128xf32> -> vector<2x128xf32>
    %630 = vector.broadcast %440 : vector<1x128xf32> to vector<2x128xf32>
    %631 = arith.addf %629, %630 : vector<2x128xf32>
    %632 = arith.truncf %620 : vector<2x32xf32> to vector<2x32xbf16>
    %cst_237 = arith.constant dense<0.000000e+00> : vector<2x128xf32>
    %633 = tpu.matmul %632, %436, %cst_237 {dimension_numbers = #tpu.dot_dimension_numbers<[1], [0], [0], [1], [0, 0, 1, 1], [], []>} : vector<2x32xbf16>, vector<32x128xbf16>, vector<2x128xf32> -> vector<2x128xf32>
    %634 = arith.addf %631, %633 : vector<2x128xf32>
    %635 = vector.extract_strided_slice %634 {offsets = [0, 0], sizes = [2, 32], strides = [1, 1]} : vector<2x128xf32> to vector<2x32xf32>
    %cst_238 = arith.constant 5.000000e-01 : f32
    %636 = vector.broadcast %cst_238 : f32 to vector<2x32xf32>
    %637 = arith.mulf %636, %635 : vector<2x32xf32>
    %638 = math.tanh %637 : vector<2x32xf32>
    %cst_239 = arith.constant 5.000000e-01 : f32
    %639 = vector.broadcast %cst_239 : f32 to vector<2x32xf32>
    %640 = arith.mulf %639, %638 : vector<2x32xf32>
    %cst_240 = arith.constant 5.000000e-01 : f32
    %641 = vector.broadcast %cst_240 : f32 to vector<2x32xf32>
    %642 = arith.addf %640, %641 : vector<2x32xf32>
    %643 = vector.extract_strided_slice %634 {offsets = [0, 32], sizes = [2, 32], strides = [1, 1]} : vector<2x128xf32> to vector<2x32xf32>
    %cst_241 = arith.constant 5.000000e-01 : f32
    %644 = vector.broadcast %cst_241 : f32 to vector<2x32xf32>
    %645 = arith.mulf %644, %643 : vector<2x32xf32>
    %646 = math.tanh %645 : vector<2x32xf32>
    %cst_242 = arith.constant 5.000000e-01 : f32
    %647 = vector.broadcast %cst_242 : f32 to vector<2x32xf32>
    %648 = arith.mulf %647, %646 : vector<2x32xf32>
    %cst_243 = arith.constant 5.000000e-01 : f32
    %649 = vector.broadcast %cst_243 : f32 to vector<2x32xf32>
    %650 = arith.addf %648, %649 : vector<2x32xf32>
    %651 = vector.extract_strided_slice %634 {offsets = [0, 64], sizes = [2, 32], strides = [1, 1]} : vector<2x128xf32> to vector<2x32xf32>
    %652 = math.tanh %651 : vector<2x32xf32>
    %653 = vector.extract_strided_slice %634 {offsets = [0, 96], sizes = [2, 32], strides = [1, 1]} : vector<2x128xf32> to vector<2x32xf32>
    %cst_244 = arith.constant 5.000000e-01 : f32
    %654 = vector.broadcast %cst_244 : f32 to vector<2x32xf32>
    %655 = arith.mulf %654, %653 : vector<2x32xf32>
    %656 = math.tanh %655 : vector<2x32xf32>
    %cst_245 = arith.constant 5.000000e-01 : f32
    %657 = vector.broadcast %cst_245 : f32 to vector<2x32xf32>
    %658 = arith.mulf %657, %656 : vector<2x32xf32>
    %cst_246 = arith.constant 5.000000e-01 : f32
    %659 = vector.broadcast %cst_246 : f32 to vector<2x32xf32>
    %660 = arith.addf %658, %659 : vector<2x32xf32>
    %661 = arith.mulf %650, %618 : vector<2x32xf32>
    %662 = arith.mulf %642, %652 : vector<2x32xf32>
    %663 = arith.addf %661, %662 : vector<2x32xf32>
    %664 = math.tanh %663 : vector<2x32xf32>
    %665 = arith.mulf %660, %664 : vector<2x32xf32>
    %666 = arith.index_cast %c4_i32_233 : i32 to index
    %c0_247 = arith.constant 0 : index
    %c0_248 = arith.constant 0 : index
    %667 = vector.load %arg5[%666, %c0_247, %c0_248] : memref<10x2x32xf32, #tpu.memory_space<vmem>>, vector<1x2x32xf32>
    %668 = vector.shape_cast %667 : vector<1x2x32xf32> to vector<2x32xf32>
    %669 = vector.shape_cast %665 : vector<2x32xf32> to vector<1x2x32xf32>
    tpu.vector_store %arg5[%666, %c0_247, %c0_248], %669 {strides = array<i32>} : memref<10x2x32xf32, #tpu.memory_space<vmem>>, vector<1x2x32xf32>,
    %c5_i32_249 = arith.constant 5 : i32
    %670 = arith.index_cast %c5_i32_249 : i32 to index
    %c0_250 = arith.constant 0 : index
    %c0_251 = arith.constant 0 : index
    %671 = vector.load %arg8[%670, %c0_250, %c0_251] : memref<10x2x32xf32, #tpu.memory_space<vmem>>, vector<1x2x32xf32>
    %672 = vector.shape_cast %671 : vector<1x2x32xf32> to vector<2x32xf32>
    %673 = arith.truncf %672 : vector<2x32xf32> to vector<2x32xbf16>
    %cst_252 = arith.constant dense<0.000000e+00> : vector<2x128xf32>
    %674 = tpu.matmul %673, %438, %cst_252 {dimension_numbers = #tpu.dot_dimension_numbers<[1], [0], [0], [1], [0, 0, 1, 1], [], []>} : vector<2x32xbf16>, vector<32x128xbf16>, vector<2x128xf32> -> vector<2x128xf32>
    %675 = vector.broadcast %440 : vector<1x128xf32> to vector<2x128xf32>
    %676 = arith.addf %674, %675 : vector<2x128xf32>
    %677 = arith.truncf %665 : vector<2x32xf32> to vector<2x32xbf16>
    %cst_253 = arith.constant dense<0.000000e+00> : vector<2x128xf32>
    %678 = tpu.matmul %677, %436, %cst_253 {dimension_numbers = #tpu.dot_dimension_numbers<[1], [0], [0], [1], [0, 0, 1, 1], [], []>} : vector<2x32xbf16>, vector<32x128xbf16>, vector<2x128xf32> -> vector<2x128xf32>
    %679 = arith.addf %676, %678 : vector<2x128xf32>
    %680 = vector.extract_strided_slice %679 {offsets = [0, 0], sizes = [2, 32], strides = [1, 1]} : vector<2x128xf32> to vector<2x32xf32>
    %cst_254 = arith.constant 5.000000e-01 : f32
    %681 = vector.broadcast %cst_254 : f32 to vector<2x32xf32>
    %682 = arith.mulf %681, %680 : vector<2x32xf32>
    %683 = math.tanh %682 : vector<2x32xf32>
    %cst_255 = arith.constant 5.000000e-01 : f32
    %684 = vector.broadcast %cst_255 : f32 to vector<2x32xf32>
    %685 = arith.mulf %684, %683 : vector<2x32xf32>
    %cst_256 = arith.constant 5.000000e-01 : f32
    %686 = vector.broadcast %cst_256 : f32 to vector<2x32xf32>
    %687 = arith.addf %685, %686 : vector<2x32xf32>
    %688 = vector.extract_strided_slice %679 {offsets = [0, 32], sizes = [2, 32], strides = [1, 1]} : vector<2x128xf32> to vector<2x32xf32>
    %cst_257 = arith.constant 5.000000e-01 : f32
    %689 = vector.broadcast %cst_257 : f32 to vector<2x32xf32>
    %690 = arith.mulf %689, %688 : vector<2x32xf32>
    %691 = math.tanh %690 : vector<2x32xf32>
    %cst_258 = arith.constant 5.000000e-01 : f32
    %692 = vector.broadcast %cst_258 : f32 to vector<2x32xf32>
    %693 = arith.mulf %692, %691 : vector<2x32xf32>
    %cst_259 = arith.constant 5.000000e-01 : f32
    %694 = vector.broadcast %cst_259 : f32 to vector<2x32xf32>
    %695 = arith.addf %693, %694 : vector<2x32xf32>
    %696 = vector.extract_strided_slice %679 {offsets = [0, 64], sizes = [2, 32], strides = [1, 1]} : vector<2x128xf32> to vector<2x32xf32>
    %697 = math.tanh %696 : vector<2x32xf32>
    %698 = vector.extract_strided_slice %679 {offsets = [0, 96], sizes = [2, 32], strides = [1, 1]} : vector<2x128xf32> to vector<2x32xf32>
    %cst_260 = arith.constant 5.000000e-01 : f32
    %699 = vector.broadcast %cst_260 : f32 to vector<2x32xf32>
    %700 = arith.mulf %699, %698 : vector<2x32xf32>
    %701 = math.tanh %700 : vector<2x32xf32>
    %cst_261 = arith.constant 5.000000e-01 : f32
    %702 = vector.broadcast %cst_261 : f32 to vector<2x32xf32>
    %703 = arith.mulf %702, %701 : vector<2x32xf32>
    %cst_262 = arith.constant 5.000000e-01 : f32
    %704 = vector.broadcast %cst_262 : f32 to vector<2x32xf32>
    %705 = arith.addf %703, %704 : vector<2x32xf32>
    %706 = arith.mulf %695, %663 : vector<2x32xf32>
    %707 = arith.mulf %687, %697 : vector<2x32xf32>
    %708 = arith.addf %706, %707 : vector<2x32xf32>
    %709 = math.tanh %708 : vector<2x32xf32>
    %710 = arith.mulf %705, %709 : vector<2x32xf32>
    %711 = arith.index_cast %c5_i32_249 : i32 to index
    %c0_263 = arith.constant 0 : index
    %c0_264 = arith.constant 0 : index
    %712 = vector.load %arg5[%711, %c0_263, %c0_264] : memref<10x2x32xf32, #tpu.memory_space<vmem>>, vector<1x2x32xf32>
    %713 = vector.shape_cast %712 : vector<1x2x32xf32> to vector<2x32xf32>
    %714 = vector.shape_cast %710 : vector<2x32xf32> to vector<1x2x32xf32>
    tpu.vector_store %arg5[%711, %c0_263, %c0_264], %714 {strides = array<i32>} : memref<10x2x32xf32, #tpu.memory_space<vmem>>, vector<1x2x32xf32>,
    %c6_i32_265 = arith.constant 6 : i32
    %715 = arith.index_cast %c6_i32_265 : i32 to index
    %c0_266 = arith.constant 0 : index
    %c0_267 = arith.constant 0 : index
    %716 = vector.load %arg8[%715, %c0_266, %c0_267] : memref<10x2x32xf32, #tpu.memory_space<vmem>>, vector<1x2x32xf32>
    %717 = vector.shape_cast %716 : vector<1x2x32xf32> to vector<2x32xf32>
    %718 = arith.truncf %717 : vector<2x32xf32> to vector<2x32xbf16>
    %cst_268 = arith.constant dense<0.000000e+00> : vector<2x128xf32>
    %719 = tpu.matmul %718, %438, %cst_268 {dimension_numbers = #tpu.dot_dimension_numbers<[1], [0], [0], [1], [0, 0, 1, 1], [], []>} : vector<2x32xbf16>, vector<32x128xbf16>, vector<2x128xf32> -> vector<2x128xf32>
    %720 = vector.broadcast %440 : vector<1x128xf32> to vector<2x128xf32>
    %721 = arith.addf %719, %720 : vector<2x128xf32>
    %722 = arith.truncf %710 : vector<2x32xf32> to vector<2x32xbf16>
    %cst_269 = arith.constant dense<0.000000e+00> : vector<2x128xf32>
    %723 = tpu.matmul %722, %436, %cst_269 {dimension_numbers = #tpu.dot_dimension_numbers<[1], [0], [0], [1], [0, 0, 1, 1], [], []>} : vector<2x32xbf16>, vector<32x128xbf16>, vector<2x128xf32> -> vector<2x128xf32>
    %724 = arith.addf %721, %723 : vector<2x128xf32>
    %725 = vector.extract_strided_slice %724 {offsets = [0, 0], sizes = [2, 32], strides = [1, 1]} : vector<2x128xf32> to vector<2x32xf32>
    %cst_270 = arith.constant 5.000000e-01 : f32
    %726 = vector.broadcast %cst_270 : f32 to vector<2x32xf32>
    %727 = arith.mulf %726, %725 : vector<2x32xf32>
    %728 = math.tanh %727 : vector<2x32xf32>
    %cst_271 = arith.constant 5.000000e-01 : f32
    %729 = vector.broadcast %cst_271 : f32 to vector<2x32xf32>
    %730 = arith.mulf %729, %728 : vector<2x32xf32>
    %cst_272 = arith.constant 5.000000e-01 : f32
    %731 = vector.broadcast %cst_272 : f32 to vector<2x32xf32>
    %732 = arith.addf %730, %731 : vector<2x32xf32>
    %733 = vector.extract_strided_slice %724 {offsets = [0, 32], sizes = [2, 32], strides = [1, 1]} : vector<2x128xf32> to vector<2x32xf32>
    %cst_273 = arith.constant 5.000000e-01 : f32
    %734 = vector.broadcast %cst_273 : f32 to vector<2x32xf32>
    %735 = arith.mulf %734, %733 : vector<2x32xf32>
    %736 = math.tanh %735 : vector<2x32xf32>
    %cst_274 = arith.constant 5.000000e-01 : f32
    %737 = vector.broadcast %cst_274 : f32 to vector<2x32xf32>
    %738 = arith.mulf %737, %736 : vector<2x32xf32>
    %cst_275 = arith.constant 5.000000e-01 : f32
    %739 = vector.broadcast %cst_275 : f32 to vector<2x32xf32>
    %740 = arith.addf %738, %739 : vector<2x32xf32>
    %741 = vector.extract_strided_slice %724 {offsets = [0, 64], sizes = [2, 32], strides = [1, 1]} : vector<2x128xf32> to vector<2x32xf32>
    %742 = math.tanh %741 : vector<2x32xf32>
    %743 = vector.extract_strided_slice %724 {offsets = [0, 96], sizes = [2, 32], strides = [1, 1]} : vector<2x128xf32> to vector<2x32xf32>
    %cst_276 = arith.constant 5.000000e-01 : f32
    %744 = vector.broadcast %cst_276 : f32 to vector<2x32xf32>
    %745 = arith.mulf %744, %743 : vector<2x32xf32>
    %746 = math.tanh %745 : vector<2x32xf32>
    %cst_277 = arith.constant 5.000000e-01 : f32
    %747 = vector.broadcast %cst_277 : f32 to vector<2x32xf32>
    %748 = arith.mulf %747, %746 : vector<2x32xf32>
    %cst_278 = arith.constant 5.000000e-01 : f32
    %749 = vector.broadcast %cst_278 : f32 to vector<2x32xf32>
    %750 = arith.addf %748, %749 : vector<2x32xf32>
    %751 = arith.mulf %740, %708 : vector<2x32xf32>
    %752 = arith.mulf %732, %742 : vector<2x32xf32>
    %753 = arith.addf %751, %752 : vector<2x32xf32>
    %754 = math.tanh %753 : vector<2x32xf32>
    %755 = arith.mulf %750, %754 : vector<2x32xf32>
    %756 = arith.index_cast %c6_i32_265 : i32 to index
    %c0_279 = arith.constant 0 : index
    %c0_280 = arith.constant 0 : index
    %757 = vector.load %arg5[%756, %c0_279, %c0_280] : memref<10x2x32xf32, #tpu.memory_space<vmem>>, vector<1x2x32xf32>
    %758 = vector.shape_cast %757 : vector<1x2x32xf32> to vector<2x32xf32>
    %759 = vector.shape_cast %755 : vector<2x32xf32> to vector<1x2x32xf32>
    tpu.vector_store %arg5[%756, %c0_279, %c0_280], %759 {strides = array<i32>} : memref<10x2x32xf32, #tpu.memory_space<vmem>>, vector<1x2x32xf32>,
    %c7_i32_281 = arith.constant 7 : i32
    %760 = arith.index_cast %c7_i32_281 : i32 to index
    %c0_282 = arith.constant 0 : index
    %c0_283 = arith.constant 0 : index
    %761 = vector.load %arg8[%760, %c0_282, %c0_283] : memref<10x2x32xf32, #tpu.memory_space<vmem>>, vector<1x2x32xf32>
    %762 = vector.shape_cast %761 : vector<1x2x32xf32> to vector<2x32xf32>
    %763 = arith.truncf %762 : vector<2x32xf32> to vector<2x32xbf16>
    %cst_284 = arith.constant dense<0.000000e+00> : vector<2x128xf32>
    %764 = tpu.matmul %763, %438, %cst_284 {dimension_numbers = #tpu.dot_dimension_numbers<[1], [0], [0], [1], [0, 0, 1, 1], [], []>} : vector<2x32xbf16>, vector<32x128xbf16>, vector<2x128xf32> -> vector<2x128xf32>
    %765 = vector.broadcast %440 : vector<1x128xf32> to vector<2x128xf32>
    %766 = arith.addf %764, %765 : vector<2x128xf32>
    %767 = arith.truncf %755 : vector<2x32xf32> to vector<2x32xbf16>
    %cst_285 = arith.constant dense<0.000000e+00> : vector<2x128xf32>
    %768 = tpu.matmul %767, %436, %cst_285 {dimension_numbers = #tpu.dot_dimension_numbers<[1], [0], [0], [1], [0, 0, 1, 1], [], []>} : vector<2x32xbf16>, vector<32x128xbf16>, vector<2x128xf32> -> vector<2x128xf32>
    %769 = arith.addf %766, %768 : vector<2x128xf32>
    %770 = vector.extract_strided_slice %769 {offsets = [0, 0], sizes = [2, 32], strides = [1, 1]} : vector<2x128xf32> to vector<2x32xf32>
    %cst_286 = arith.constant 5.000000e-01 : f32
    %771 = vector.broadcast %cst_286 : f32 to vector<2x32xf32>
    %772 = arith.mulf %771, %770 : vector<2x32xf32>
    %773 = math.tanh %772 : vector<2x32xf32>
    %cst_287 = arith.constant 5.000000e-01 : f32
    %774 = vector.broadcast %cst_287 : f32 to vector<2x32xf32>
    %775 = arith.mulf %774, %773 : vector<2x32xf32>
    %cst_288 = arith.constant 5.000000e-01 : f32
    %776 = vector.broadcast %cst_288 : f32 to vector<2x32xf32>
    %777 = arith.addf %775, %776 : vector<2x32xf32>
    %778 = vector.extract_strided_slice %769 {offsets = [0, 32], sizes = [2, 32], strides = [1, 1]} : vector<2x128xf32> to vector<2x32xf32>
    %cst_289 = arith.constant 5.000000e-01 : f32
    %779 = vector.broadcast %cst_289 : f32 to vector<2x32xf32>
    %780 = arith.mulf %779, %778 : vector<2x32xf32>
    %781 = math.tanh %780 : vector<2x32xf32>
    %cst_290 = arith.constant 5.000000e-01 : f32
    %782 = vector.broadcast %cst_290 : f32 to vector<2x32xf32>
    %783 = arith.mulf %782, %781 : vector<2x32xf32>
    %cst_291 = arith.constant 5.000000e-01 : f32
    %784 = vector.broadcast %cst_291 : f32 to vector<2x32xf32>
    %785 = arith.addf %783, %784 : vector<2x32xf32>
    %786 = vector.extract_strided_slice %769 {offsets = [0, 64], sizes = [2, 32], strides = [1, 1]} : vector<2x128xf32> to vector<2x32xf32>
    %787 = math.tanh %786 : vector<2x32xf32>
    %788 = vector.extract_strided_slice %769 {offsets = [0, 96], sizes = [2, 32], strides = [1, 1]} : vector<2x128xf32> to vector<2x32xf32>
    %cst_292 = arith.constant 5.000000e-01 : f32
    %789 = vector.broadcast %cst_292 : f32 to vector<2x32xf32>
    %790 = arith.mulf %789, %788 : vector<2x32xf32>
    %791 = math.tanh %790 : vector<2x32xf32>
    %cst_293 = arith.constant 5.000000e-01 : f32
    %792 = vector.broadcast %cst_293 : f32 to vector<2x32xf32>
    %793 = arith.mulf %792, %791 : vector<2x32xf32>
    %cst_294 = arith.constant 5.000000e-01 : f32
    %794 = vector.broadcast %cst_294 : f32 to vector<2x32xf32>
    %795 = arith.addf %793, %794 : vector<2x32xf32>
    %796 = arith.mulf %785, %753 : vector<2x32xf32>
    %797 = arith.mulf %777, %787 : vector<2x32xf32>
    %798 = arith.addf %796, %797 : vector<2x32xf32>
    %799 = math.tanh %798 : vector<2x32xf32>
    %800 = arith.mulf %795, %799 : vector<2x32xf32>
    %801 = arith.index_cast %c7_i32_281 : i32 to index
    %c0_295 = arith.constant 0 : index
    %c0_296 = arith.constant 0 : index
    %802 = vector.load %arg5[%801, %c0_295, %c0_296] : memref<10x2x32xf32, #tpu.memory_space<vmem>>, vector<1x2x32xf32>
    %803 = vector.shape_cast %802 : vector<1x2x32xf32> to vector<2x32xf32>
    %804 = vector.shape_cast %800 : vector<2x32xf32> to vector<1x2x32xf32>
    tpu.vector_store %arg5[%801, %c0_295, %c0_296], %804 {strides = array<i32>} : memref<10x2x32xf32, #tpu.memory_space<vmem>>, vector<1x2x32xf32>,
    %c8_i32_297 = arith.constant 8 : i32
    %805 = arith.index_cast %c8_i32_297 : i32 to index
    %c0_298 = arith.constant 0 : index
    %c0_299 = arith.constant 0 : index
    %806 = vector.load %arg8[%805, %c0_298, %c0_299] : memref<10x2x32xf32, #tpu.memory_space<vmem>>, vector<1x2x32xf32>
    %807 = vector.shape_cast %806 : vector<1x2x32xf32> to vector<2x32xf32>
    %808 = arith.truncf %807 : vector<2x32xf32> to vector<2x32xbf16>
    %cst_300 = arith.constant dense<0.000000e+00> : vector<2x128xf32>
    %809 = tpu.matmul %808, %438, %cst_300 {dimension_numbers = #tpu.dot_dimension_numbers<[1], [0], [0], [1], [0, 0, 1, 1], [], []>} : vector<2x32xbf16>, vector<32x128xbf16>, vector<2x128xf32> -> vector<2x128xf32>
    %810 = vector.broadcast %440 : vector<1x128xf32> to vector<2x128xf32>
    %811 = arith.addf %809, %810 : vector<2x128xf32>
    %812 = arith.truncf %800 : vector<2x32xf32> to vector<2x32xbf16>
    %cst_301 = arith.constant dense<0.000000e+00> : vector<2x128xf32>
    %813 = tpu.matmul %812, %436, %cst_301 {dimension_numbers = #tpu.dot_dimension_numbers<[1], [0], [0], [1], [0, 0, 1, 1], [], []>} : vector<2x32xbf16>, vector<32x128xbf16>, vector<2x128xf32> -> vector<2x128xf32>
    %814 = arith.addf %811, %813 : vector<2x128xf32>
    %815 = vector.extract_strided_slice %814 {offsets = [0, 0], sizes = [2, 32], strides = [1, 1]} : vector<2x128xf32> to vector<2x32xf32>
    %cst_302 = arith.constant 5.000000e-01 : f32
    %816 = vector.broadcast %cst_302 : f32 to vector<2x32xf32>
    %817 = arith.mulf %816, %815 : vector<2x32xf32>
    %818 = math.tanh %817 : vector<2x32xf32>
    %cst_303 = arith.constant 5.000000e-01 : f32
    %819 = vector.broadcast %cst_303 : f32 to vector<2x32xf32>
    %820 = arith.mulf %819, %818 : vector<2x32xf32>
    %cst_304 = arith.constant 5.000000e-01 : f32
    %821 = vector.broadcast %cst_304 : f32 to vector<2x32xf32>
    %822 = arith.addf %820, %821 : vector<2x32xf32>
    %823 = vector.extract_strided_slice %814 {offsets = [0, 32], sizes = [2, 32], strides = [1, 1]} : vector<2x128xf32> to vector<2x32xf32>
    %cst_305 = arith.constant 5.000000e-01 : f32
    %824 = vector.broadcast %cst_305 : f32 to vector<2x32xf32>
    %825 = arith.mulf %824, %823 : vector<2x32xf32>
    %826 = math.tanh %825 : vector<2x32xf32>
    %cst_306 = arith.constant 5.000000e-01 : f32
    %827 = vector.broadcast %cst_306 : f32 to vector<2x32xf32>
    %828 = arith.mulf %827, %826 : vector<2x32xf32>
    %cst_307 = arith.constant 5.000000e-01 : f32
    %829 = vector.broadcast %cst_307 : f32 to vector<2x32xf32>
    %830 = arith.addf %828, %829 : vector<2x32xf32>
    %831 = vector.extract_strided_slice %814 {offsets = [0, 64], sizes = [2, 32], strides = [1, 1]} : vector<2x128xf32> to vector<2x32xf32>
    %832 = math.tanh %831 : vector<2x32xf32>
    %833 = vector.extract_strided_slice %814 {offsets = [0, 96], sizes = [2, 32], strides = [1, 1]} : vector<2x128xf32> to vector<2x32xf32>
    %cst_308 = arith.constant 5.000000e-01 : f32
    %834 = vector.broadcast %cst_308 : f32 to vector<2x32xf32>
    %835 = arith.mulf %834, %833 : vector<2x32xf32>
    %836 = math.tanh %835 : vector<2x32xf32>
    %cst_309 = arith.constant 5.000000e-01 : f32
    %837 = vector.broadcast %cst_309 : f32 to vector<2x32xf32>
    %838 = arith.mulf %837, %836 : vector<2x32xf32>
    %cst_310 = arith.constant 5.000000e-01 : f32
    %839 = vector.broadcast %cst_310 : f32 to vector<2x32xf32>
    %840 = arith.addf %838, %839 : vector<2x32xf32>
    %841 = arith.mulf %830, %798 : vector<2x32xf32>
    %842 = arith.mulf %822, %832 : vector<2x32xf32>
    %843 = arith.addf %841, %842 : vector<2x32xf32>
    %844 = math.tanh %843 : vector<2x32xf32>
    %845 = arith.mulf %840, %844 : vector<2x32xf32>
    %846 = arith.index_cast %c8_i32_297 : i32 to index
    %c0_311 = arith.constant 0 : index
    %c0_312 = arith.constant 0 : index
    %847 = vector.load %arg5[%846, %c0_311, %c0_312] : memref<10x2x32xf32, #tpu.memory_space<vmem>>, vector<1x2x32xf32>
    %848 = vector.shape_cast %847 : vector<1x2x32xf32> to vector<2x32xf32>
    %849 = vector.shape_cast %845 : vector<2x32xf32> to vector<1x2x32xf32>
    tpu.vector_store %arg5[%846, %c0_311, %c0_312], %849 {strides = array<i32>} : memref<10x2x32xf32, #tpu.memory_space<vmem>>, vector<1x2x32xf32>,
    %c9_i32_313 = arith.constant 9 : i32
    %850 = arith.index_cast %c9_i32_313 : i32 to index
    %c0_314 = arith.constant 0 : index
    %c0_315 = arith.constant 0 : index
    %851 = vector.load %arg8[%850, %c0_314, %c0_315] : memref<10x2x32xf32, #tpu.memory_space<vmem>>, vector<1x2x32xf32>
    %852 = vector.shape_cast %851 : vector<1x2x32xf32> to vector<2x32xf32>
    %853 = arith.truncf %852 : vector<2x32xf32> to vector<2x32xbf16>
    %cst_316 = arith.constant dense<0.000000e+00> : vector<2x128xf32>
    %854 = tpu.matmul %853, %438, %cst_316 {dimension_numbers = #tpu.dot_dimension_numbers<[1], [0], [0], [1], [0, 0, 1, 1], [], []>} : vector<2x32xbf16>, vector<32x128xbf16>, vector<2x128xf32> -> vector<2x128xf32>
    %855 = vector.broadcast %440 : vector<1x128xf32> to vector<2x128xf32>
    %856 = arith.addf %854, %855 : vector<2x128xf32>
    %857 = arith.truncf %845 : vector<2x32xf32> to vector<2x32xbf16>
    %cst_317 = arith.constant dense<0.000000e+00> : vector<2x128xf32>
    %858 = tpu.matmul %857, %436, %cst_317 {dimension_numbers = #tpu.dot_dimension_numbers<[1], [0], [0], [1], [0, 0, 1, 1], [], []>} : vector<2x32xbf16>, vector<32x128xbf16>, vector<2x128xf32> -> vector<2x128xf32>
    %859 = arith.addf %856, %858 : vector<2x128xf32>
    %860 = vector.extract_strided_slice %859 {offsets = [0, 0], sizes = [2, 32], strides = [1, 1]} : vector<2x128xf32> to vector<2x32xf32>
    %cst_318 = arith.constant 5.000000e-01 : f32
    %861 = vector.broadcast %cst_318 : f32 to vector<2x32xf32>
    %862 = arith.mulf %861, %860 : vector<2x32xf32>
    %863 = math.tanh %862 : vector<2x32xf32>
    %cst_319 = arith.constant 5.000000e-01 : f32
    %864 = vector.broadcast %cst_319 : f32 to vector<2x32xf32>
    %865 = arith.mulf %864, %863 : vector<2x32xf32>
    %cst_320 = arith.constant 5.000000e-01 : f32
    %866 = vector.broadcast %cst_320 : f32 to vector<2x32xf32>
    %867 = arith.addf %865, %866 : vector<2x32xf32>
    %868 = vector.extract_strided_slice %859 {offsets = [0, 32], sizes = [2, 32], strides = [1, 1]} : vector<2x128xf32> to vector<2x32xf32>
    %cst_321 = arith.constant 5.000000e-01 : f32
    %869 = vector.broadcast %cst_321 : f32 to vector<2x32xf32>
    %870 = arith.mulf %869, %868 : vector<2x32xf32>
    %871 = math.tanh %870 : vector<2x32xf32>
    %cst_322 = arith.constant 5.000000e-01 : f32
    %872 = vector.broadcast %cst_322 : f32 to vector<2x32xf32>
    %873 = arith.mulf %872, %871 : vector<2x32xf32>
    %cst_323 = arith.constant 5.000000e-01 : f32
    %874 = vector.broadcast %cst_323 : f32 to vector<2x32xf32>
    %875 = arith.addf %873, %874 : vector<2x32xf32>
    %876 = vector.extract_strided_slice %859 {offsets = [0, 64], sizes = [2, 32], strides = [1, 1]} : vector<2x128xf32> to vector<2x32xf32>
    %877 = math.tanh %876 : vector<2x32xf32>
    %878 = vector.extract_strided_slice %859 {offsets = [0, 96], sizes = [2, 32], strides = [1, 1]} : vector<2x128xf32> to vector<2x32xf32>
    %cst_324 = arith.constant 5.000000e-01 : f32
    %879 = vector.broadcast %cst_324 : f32 to vector<2x32xf32>
    %880 = arith.mulf %879, %878 : vector<2x32xf32>
    %881 = math.tanh %880 : vector<2x32xf32>
    %cst_325 = arith.constant 5.000000e-01 : f32
    %882 = vector.broadcast %cst_325 : f32 to vector<2x32xf32>
    %883 = arith.mulf %882, %881 : vector<2x32xf32>
    %cst_326 = arith.constant 5.000000e-01 : f32
    %884 = vector.broadcast %cst_326 : f32 to vector<2x32xf32>
    %885 = arith.addf %883, %884 : vector<2x32xf32>
    %886 = arith.mulf %875, %843 : vector<2x32xf32>
    %887 = arith.mulf %867, %877 : vector<2x32xf32>
    %888 = arith.addf %886, %887 : vector<2x32xf32>
    %889 = math.tanh %888 : vector<2x32xf32>
    %890 = arith.mulf %885, %889 : vector<2x32xf32>
    %891 = arith.index_cast %c9_i32_313 : i32 to index
    %c0_327 = arith.constant 0 : index
    %c0_328 = arith.constant 0 : index
    %892 = vector.load %arg5[%891, %c0_327, %c0_328] : memref<10x2x32xf32, #tpu.memory_space<vmem>>, vector<1x2x32xf32>
    %893 = vector.shape_cast %892 : vector<1x2x32xf32> to vector<2x32xf32>
    %894 = vector.shape_cast %890 : vector<2x32xf32> to vector<1x2x32xf32>
    tpu.vector_store %arg5[%891, %c0_327, %c0_328], %894 {strides = array<i32>} : memref<10x2x32xf32, #tpu.memory_space<vmem>>, vector<1x2x32xf32>,
    %c10_i32_329 = arith.constant 10 : i32
    %c1_330 = arith.constant 1 : index
    %c0_331 = arith.constant 0 : index
    %c0_332 = arith.constant 0 : index
    %895 = vector.load %arg9[%c1_330, %c0_331, %c0_332] : memref<2x2x32xf32, #tpu.memory_space<vmem>>, vector<1x2x32xf32>
    %896 = vector.shape_cast %895 : vector<1x2x32xf32> to vector<2x32xf32>
    %897 = vector.shape_cast %890 : vector<2x32xf32> to vector<1x2x32xf32>
    tpu.vector_store %arg9[%c1_330, %c0_331, %c0_332], %897 {strides = array<i32>} : memref<2x2x32xf32, #tpu.memory_space<vmem>>, vector<1x2x32xf32>,
    %c1_333 = arith.constant 1 : index
    %c0_334 = arith.constant 0 : index
    %c0_335 = arith.constant 0 : index
    %898 = vector.load %arg10[%c1_333, %c0_334, %c0_335] : memref<2x2x32xf32, #tpu.memory_space<vmem>>, vector<1x2x32xf32>
    %899 = vector.shape_cast %898 : vector<1x2x32xf32> to vector<2x32xf32>
    %900 = vector.shape_cast %888 : vector<2x32xf32> to vector<1x2x32xf32>
    tpu.vector_store %arg10[%c1_333, %c0_334, %c0_335], %900 {strides = array<i32>} : memref<2x2x32xf32, #tpu.memory_space<vmem>>, vector<1x2x32xf32>,
    %c0_336 = arith.constant 0 : index
    %c0_337 = arith.constant 0 : index
    %c0_338 = arith.constant 0 : index
    %901 = vector.load %arg9[%c0_336, %c0_337, %c0_338] : memref<2x2x32xf32, #tpu.memory_space<vmem>>, vector<2x2x32xf32>
    %c0_339 = arith.constant 0 : index
    %c0_340 = arith.constant 0 : index
    %c0_341 = arith.constant 0 : index
    %902 = vector.load %arg6[%c0_339, %c0_340, %c0_341] : memref<2x2x32xf32, #tpu.memory_space<vmem>>, vector<2x2x32xf32>
    tpu.vector_store %arg6[%c0_339, %c0_340, %c0_341], %901 {strides = array<i32>} : memref<2x2x32xf32, #tpu.memory_space<vmem>>, vector<2x2x32xf32>,
    %c0_342 = arith.constant 0 : index
    %c0_343 = arith.constant 0 : index
    %c0_344 = arith.constant 0 : index
    %903 = vector.load %arg10[%c0_342, %c0_343, %c0_344] : memref<2x2x32xf32, #tpu.memory_space<vmem>>, vector<2x2x32xf32>
    %c0_345 = arith.constant 0 : index
    %c0_346 = arith.constant 0 : index
    %c0_347 = arith.constant 0 : index
    %904 = vector.load %arg7[%c0_345, %c0_346, %c0_347] : memref<2x2x32xf32, #tpu.memory_space<vmem>>, vector<2x2x32xf32>
    tpu.vector_store %arg7[%c0_345, %c0_346, %c0_347], %903 {strides = array<i32>} : memref<2x2x32xf32, #tpu.memory_space<vmem>>, vector<2x2x32xf32>,
    return
  }
  func.func @transform_0(%arg0: i32) -> (i32, i32, i32) {
    %c0_i32 = arith.constant 0 : i32
    %c0_i32_0 = arith.constant 0 : i32
    %c0_i32_1 = arith.constant 0 : i32
    return %arg0, %c0_i32, %c0_i32_0 : i32, i32, i32
  }
  func.func @transform_1(%arg0: i32) -> (i32, i32, i32) {
    %c0_i32 = arith.constant 0 : i32
    %c0_i32_0 = arith.constant 0 : i32
    %c0_i32_1 = arith.constant 0 : i32
    %c0_i32_2 = arith.constant 0 : i32
    return %c0_i32, %c0_i32_0, %c0_i32_1 : i32, i32, i32
  }
  func.func @transform_2(%arg0: i32) -> (i32, i32, i32) {
    %c0_i32 = arith.constant 0 : i32
    %c0_i32_0 = arith.constant 0 : i32
    %c0_i32_1 = arith.constant 0 : i32
    %c0_i32_2 = arith.constant 0 : i32
    return %c0_i32, %c0_i32_0, %c0_i32_1 : i32, i32, i32
  }
  func.func @transform_3(%arg0: i32) -> (i32, i32, i32) {
    %c0_i32 = arith.constant 0 : i32
    %c0_i32_0 = arith.constant 0 : i32
    %c0_i32_1 = arith.constant 0 : i32
    %c0_i32_2 = arith.constant 0 : i32
    return %c0_i32, %c0_i32_0, %c0_i32_1 : i32, i32, i32
  }
  func.func @transform_4(%arg0: i32) -> (i32, i32, i32) {
    %c0_i32 = arith.constant 0 : i32
    %c0_i32_0 = arith.constant 0 : i32
    %c0_i32_1 = arith.constant 0 : i32
    return %arg0, %c0_i32, %c0_i32_0 : i32, i32, i32
  }
  func.func @transform_5(%arg0: i32) -> (i32, i32, i32) {
    %c0_i32 = arith.constant 0 : i32
    %c0_i32_0 = arith.constant 0 : i32
    %c0_i32_1 = arith.constant 0 : i32
    %c0_i32_2 = arith.constant 0 : i32
    return %c0_i32, %c0_i32_0, %c0_i32_1 : i32, i32, i32
  }
  func.func @transform_6(%arg0: i32) -> (i32, i32, i32) {
    %c0_i32 = arith.constant 0 : i32
    %c0_i32_0 = arith.constant 0 : i32
    %c0_i32_1 = arith.constant 0 : i32
    %c0_i32_2 = arith.constant 0 : i32
    return %c0_i32, %c0_i32_0, %c0_i32_1 : i32, i32, i32
  }
}

</mosaic_0001>

<llo_original>
// kernel: tpu_custom_call.1
$region0: #{tpu_custom_call.1}
  #allocation0 [shape = 'u32[]', space=smem, size = 0x4, offset = 0x4, fixed_abs, tag = 'smem constant byte address 0x4 - core index']
  #allocation1 [shape = 'u32[144,128]{1,0:T(1,128)}', space=vmem, size = 0x12000, scoped, tag = 'internal scratch']
  #allocation2 [shape = 'f32[10,2,32]{2,1,0:T(2,128)}', space=vmem, size = 0x2800, scoped, tag = 'scratch operand']
  #allocation3 [shape = 'f32[2,2,32]{2,1,0:T(2,128)}', space=vmem, size = 0x800, scoped, tag = 'scratch operand']
  #allocation4 [shape = 'f32[2,2,32]{2,1,0:T(2,128)}', space=vmem, size = 0x800, scoped, tag = 'scratch operand']
  %s0 = inlined_call_operand.hbm [shape: bf16[10,2,128], index: 0, kind: input, shape index: {}]
  %s1 = inlined_call_operand.hbm [shape: bf16[2,32,128], index: 1, kind: input, shape index: {}]
  %s2 = inlined_call_operand.hbm [shape: bf16[1,32,128], index: 2, kind: input, shape index: {}]
  %s3 = inlined_call_operand.vmem [shape: f32[1,1,128], index: 3, kind: input, shape index: {}]
  %s4 = inlined_call_operand.hbm [shape: f32[10,2,32], index: 4, kind: output, shape index: {0}]
  %s5 = inlined_call_operand.hbm [shape: f32[2,2,32], index: 5, kind: output, shape index: {1}]
  %s6 = inlined_call_operand.hbm [shape: f32[2,2,32], index: 6, kind: output, shape index: {2}]
  %7 = xla_tuple %s4, %s5, %s6
  %s8 = sld [smem:[#allocation0]]
  $region58: #{tpu_custom_call.1} parent=0
    _
  %s10 = ssub.s32 1, %s8
  %s11 = scalar_select 0, %s10, %s8
  $region1: #{tpu_custom_call.1} parent=0
    #allocation5 [shape = 'u8[5120]{0}', space=vmem, size = 0x1400, scoped, tag = 'input window, operand 0, single buffered']
    #allocation6 [shape = 's32[1]{0}', space=sflag, size = 0x4, scoped, tag = 'scoped memory for tpu_custom_call.1']
    #allocation7 [shape = 's32[1]{0}', space=sflag, size = 0x4, scoped, tag = 'scoped memory for tpu_custom_call.1']
    #allocation8 [shape = 'u8[16384]{0}', space=vmem, size = 0x4000, scoped, tag = 'input window, operand 1, single buffered']
    #allocation9 [shape = 's32[1]{0}', space=sflag, size = 0x4, scoped, tag = 'scoped memory for tpu_custom_call.1']
    #allocation10 [shape = 'u8[8192]{0}', space=vmem, size = 0x2000, scoped, tag = 'input window, operand 2, single buffered']
    #allocation11 [shape = 'u8[10240]{0}', space=vmem, size = 0x2800, scoped, tag = 'output window, operand 0, single buffered']
    #allocation12 [shape = 'u8[2048]{0}', space=vmem, size = 0x800, scoped, tag = 'output window, operand 1, single buffered']
    #allocation13 [shape = 's32[1]{0}', space=sflag, size = 0x4, scoped, tag = 'scoped memory for tpu_custom_call.1']
    #allocation14 [shape = 'u8[2048]{0}', space=vmem, size = 0x800, scoped, tag = 'output window, operand 2, single buffered']
    %12 = vsyncpa [#allocation6], 0
    %13 = vsyncpa [#allocation9], 0
    %14 = vsyncpa [#allocation7], 0
    %15 = vsyncpa [#allocation13], 0
    // Predicated region
    $region2: #{tpu_custom_call.1} parent=1 // pred_check
      _
    $region3: #{tpu_custom_call.1} parent=1 // pred_check_branch
      %17 = sbr.rel (0) target = $region5
    $region4: #{tpu_custom_call.1} parent=1 // pred_region
      %s19 = ssub.s32 160, 160
      %20 = vsyncadd [#allocation6], %s19
      %s21 = sshll.u32 [#allocation5], 4
      %s22 = int_to_ptr.vmem [resolvable:$true] %s21
      %27 = dma.hbm_to_vmem [thread:$0]  %s0, 160, %s22, [#allocation6], 16, 16, 1
    $region5: #{tpu_custom_call.1} parent=1 // pred_fallthru
      _
    // Predicated region
    $region6: #{tpu_custom_call.1} parent=1 // pred_check
      _
    $region7: #{tpu_custom_call.1} parent=1 // pred_check_branch
      %29 = sbr.rel (0) target = $region9
    $region8: #{tpu_custom_call.1} parent=1 // pred_region
      %s31 = ssub.s32 512, 512
      %32 = vsyncadd [#allocation9], %s31
      %s33 = sshll.u32 [#allocation8], 4
      %s34 = int_to_ptr.vmem [resolvable:$true] %s33
      %39 = dma.hbm_to_vmem [thread:$0]  %s1, 512, %s34, [#allocation9], 64, 64, 4
    $region9: #{tpu_custom_call.1} parent=1 // pred_fallthru
      _
    // Predicated region
    $region10: #{tpu_custom_call.1} parent=1 // pred_check
      _
    $region11: #{tpu_custom_call.1} parent=1 // pred_check_branch
      %41 = sbr.rel (0) target = $region13
    $region12: #{tpu_custom_call.1} parent=1 // pred_region
      %s43 = ssub.s32 256, 256
      %44 = vsyncadd [#allocation9], %s43
      %s45 = sshll.u32 [#allocation10], 4
      %s46 = int_to_ptr.vmem [resolvable:$true] %s45
      %51 = dma.hbm_to_vmem [thread:$0]  %s2, 256, %s46, [#allocation9], 64, 64, 4
    $region13: #{tpu_custom_call.1} parent=1 // pred_fallthru
      _
    // Predicated region
    $region14: #{tpu_custom_call.1} parent=1 // pred_check
      _
    $region15: #{tpu_custom_call.1} parent=1 // pred_check_branch
      %53 = sbr.rel (0) target = $region17
    $region16: #{tpu_custom_call.1} parent=1 // pred_region
      _
    $region17: #{tpu_custom_call.1} parent=1 // pred_fallthru
      _
    // Predicated region
    $region18: #{tpu_custom_call.1} parent=1 // pred_check
      _
    $region19: #{tpu_custom_call.1} parent=1 // pred_check_branch
      %55 = sbr.rel (0) target = $region21
    $region20: #{tpu_custom_call.1} parent=1 // pred_region
      %56 = dma.done [#allocation6], 160
    $region21: #{tpu_custom_call.1} parent=1 // pred_fallthru
      _
    // Predicated region
    $region22: #{tpu_custom_call.1} parent=1 // pred_check
      _
    $region23: #{tpu_custom_call.1} parent=1 // pred_check_branch
      %58 = sbr.rel (0) target = $region25
    $region24: #{tpu_custom_call.1} parent=1 // pred_region
      %59 = dma.done [#allocation9], 512
    $region25: #{tpu_custom_call.1} parent=1 // pred_fallthru
      _
    // Predicated region
    $region26: #{tpu_custom_call.1} parent=1 // pred_check
      _
    $region27: #{tpu_custom_call.1} parent=1 // pred_check_branch
      %61 = sbr.rel (0) target = $region29
    $region28: #{tpu_custom_call.1} parent=1 // pred_region
      %62 = dma.done [#allocation9], 256
    $region29: #{tpu_custom_call.1} parent=1 // pred_fallthru
      _
    %p64 = scmp.eq.s32.totalorder 0, 0
    // Predicated region
    $region30: #{tpu_custom_call.1} parent=1 // pred_check
      %p65 = pneg %p64
    $region31: #{tpu_custom_call.1} parent=1 // pred_check_branch
      %67 = sbr.rel (%p65) target = $region33
    $region32: #{tpu_custom_call.1} parent=1 // pred_region
      %vm68 = vcmask 254976
      %69 = vst.msk [vmem:[#allocation3] sm:$0x3] %vm68, 0.0
      %70 = vst.msk [vmem:[#allocation3 + $0x2] sm:$0x3] %vm68, 0.0
      %71 = vst.msk [vmem:[#allocation4] sm:$0x3] %vm68, 0.0
      %72 = vst.msk [vmem:[#allocation4 + $0x2] sm:$0x3] %vm68, 0.0
    $region33: #{tpu_custom_call.1} parent=1 // pred_fallthru
      _
    %v73 = vld [vmem:[#allocation8] sm:$0xf]
    %v74 = vld [vmem:[#allocation8 + $0x4] sm:$0xf]
    %v75 = vld [vmem:[#allocation8 + $0x8] sm:$0xf]
    %v76 = vld [vmem:[#allocation8 + $0xc] sm:$0xf]
    %v77 = vld [vmem:[#allocation3] sm:$0x3]
    %v78 = vld [vmem:[#allocation4] sm:$0x3]
    %v79 = vld [vmem:[#allocation5] sm:$0x1]
    %v80 = vunpack.c.l.bf16 %v79
    %v81 = vpack.c.bf16 %v77, %v77
    %v86 = vunpack.c.l.b16 %v73
    %v87 = vunpack.c.l.b16 %v74
    %v88 = vunpack.c.l.b16 %v75
    %v89 = vunpack.c.l.b16 %v76
    %v90 = vpack.c.b16 %v87, %v86
    %v91 = vpack.c.b16 %v89, %v88
    %vm94 = vcmask 261120
    %v96 = vsel %vm94, %v81, 0
    %98 = vmatprep.subr.bf16.mxu0 0
    %99 = vmatpush1.bf16.msra.mxu0 0
    %100 = vmatprep.subr.bf16.mxu0 0
    %101 = vmatpush1.bf16.msra.mxu0 0
    %102 = vmatprep.subr.bf16.mxu0 0
    %103 = vmatpush1.bf16.msra.mxu0 0
    %104 = vmatprep.subr.bf16.mxu0 0
    %105 = vmatpush1.bf16.msra.mxu0 0
    %106 = vmatprep.subr.bf16.mxu0 0
    %107 = vmatpush1.bf16.msra.mxu0 0
    %108 = vmatprep.subr.bf16.mxu0 0
    %109 = vmatpush1.bf16.msra.mxu0 0
    %110 = vmatprep.subr.bf16.mxu0 0
    %111 = vmatpush1.bf16.msra.mxu0 %v91
    %112 = vmatprep.subr.bf16.mxu0 0
    %113 = vmatpush1.bf16.msra.mxu0 %v90
    %114 = vmatprep.subr.bf16.mxu0 0
    %115 = vmatpush2.bf16.msra.mxu0 0
    %116 = vmatprep.subr.bf16.mxu0 0
    %117 = vmatpush2.bf16.msra.mxu0 0
    %118 = vmatprep.subr.bf16.mxu0 0
    %119 = vmatpush2.bf16.msra.mxu0 0
    %120 = vmatprep.subr.bf16.mxu0 0
    %121 = vmatpush2.bf16.msra.mxu0 0
    %122 = vmatprep.subr.bf16.mxu0 0
    %123 = vmatpush2.bf16.msra.mxu0 0
    %124 = vmatprep.subr.bf16.mxu0 0
    %125 = vmatpush2.bf16.msra.mxu0 0
    %126 = vmatprep.subr.bf16.mxu0 0
    %127 = vmatpush2.bf16.msra.mxu0 0
    %128 = vmatprep.subr.bf16.mxu0 0
    %129 = vmatpush2.bf16.msra.mxu0 0
    %130 = vmatprep.mubr.bf16.mxu0 0
    %131 = vmatmul.mubr.bf16.gmra.mxu0 %v96
    %v132 = vpop.f32.mrf.mxu0
    %v133 = vadd.f32 0.0, %v132
    %v134 = vpop.f32.mrf.mxu0
    %v135 = vpop.f32.mrf.mxu0
    %v136 = vpop.f32.mrf.mxu0
    %137 = vdwg.mxu0
    %v138 = vadd.f32 %v80, %v133
    %v139 = vmul.f32 %v138, 0.5
    %v140 = vtanh.pop %v139
    %v141 = vmul.f32 %v140, 0.5
    %v142 = vadd.f32 %v141, 0.5
    %v143 = vtanh.pop %v138
    %v146 = vunpack.c.l.s4 1983009808
    %v147 = vunpack.c.0.s8 %v146
    %v148 = vlaneseq
    %v149 = vshrl.u32 %v148, 7
    %v150 = vsub.s32 %v147, %v149
    %v151 = vrot.slane %v78, %v150
    %152 = vrot.lane.b32.xlu0 %v151, 32
    %v153 = vpop.permute.xlu0 %152
    %v155 = vmul.f32 %v142, %v153
    %157 = vrot.lane.b32.xlu0 %v143, 64
    %v158 = vpop.permute.xlu0 %157
    %v160 = vmul.f32 %v142, %v158
    %162 = vrot.lane.b32.xlu0 %v160, 32
    %v163 = vpop.permute.xlu0 %162
    %v165 = vadd.f32 %v155, %v163
    %v166 = vtanh.pop %v165
    %168 = vrot.lane.b32.xlu0 %v166, 64
    %v169 = vpop.permute.xlu0 %168
    %v171 = vmul.f32 %v142, %v169
    %v174 = vunpack.c.l.s4 1983009808
    %v175 = vunpack.c.0.s8 %v174
    %v176 = vlaneseq
    %v177 = vshrl.u32 %v176, 7
    %v178 = vsub.s32 %v175, %v177
    %v179 = vrot.slane %v171, %v178
    %180 = vrot.lane.b32.xlu0 %v179, 32
    %v181 = vpop.permute.xlu0 %180
    %vm183 = vcmask 254976
    %184 = vst.msk [vmem:[#allocation2] sm:$0x3] %vm183, %v181
    %s185 = scalar_lea.vmem [#allocation5], 1
    %v186 = vld [vmem:[%s185] sm:$0x1]
    %v187 = vunpack.c.l.bf16 %v186
    %v188 = vpack.c.bf16 %v171, %v171
    %190 = vrot.lane.b32.xlu0 %v188, 32
    %v191 = vpop.permute.xlu0 %190
    %v193 = vsel %vm94, %v191, 0
    %195 = vmatprep.subr.bf16.mxu0 0
    %196 = vmatpush1.bf16.msra.mxu0 0
    %197 = vmatprep.subr.bf16.mxu0 0
    %198 = vmatpush1.bf16.msra.mxu0 0
    %199 = vmatprep.subr.bf16.mxu0 0
    %200 = vmatpush1.bf16.msra.mxu0 0
    %201 = vmatprep.subr.bf16.mxu0 0
    %202 = vmatpush1.bf16.msra.mxu0 0
    %203 = vmatprep.subr.bf16.mxu0 0
    %204 = vmatpush1.bf16.msra.mxu0 0
    %205 = vmatprep.subr.bf16.mxu0 0
    %206 = vmatpush1.bf16.msra.mxu0 0
    %207 = vmatprep.subr.bf16.mxu0 0
    %208 = vmatpush1.bf16.msra.mxu0 %v91
    %209 = vmatprep.subr.bf16.mxu0 0
    %210 = vmatpush1.bf16.msra.mxu0 %v90
    %211 = vmatprep.subr.bf16.mxu0 0
    %212 = vmatpush2.bf16.msra.mxu0 0
    %213 = vmatprep.subr.bf16.mxu0 0
    %214 = vmatpush2.bf16.msra.mxu0 0
    %215 = vmatprep.subr.bf16.mxu0 0
    %216 = vmatpush2.bf16.msra.mxu0 0
    %217 = vmatprep.subr.bf16.mxu0 0
    %218 = vmatpush2.bf16.msra.mxu0 0
    %219 = vmatprep.subr.bf16.mxu0 0
    %220 = vmatpush2.bf16.msra.mxu0 0
    %221 = vmatprep.subr.bf16.mxu0 0
    %222 = vmatpush2.bf16.msra.mxu0 0
    %223 = vmatprep.subr.bf16.mxu0 0
    %224 = vmatpush2.bf16.msra.mxu0 0
    %225 = vmatprep.subr.bf16.mxu0 0
    %226 = vmatpush2.bf16.msra.mxu0 0
    %227 = vmatprep.mubr.bf16.mxu0 0
    %228 = vmatmul.mubr.bf16.gmra.mxu0 %v193
    %v229 = vpop.f32.mrf.mxu0
    %v230 = vadd.f32 0.0, %v229
    %v231 = vpop.f32.mrf.mxu0
    %v232 = vpop.f32.mrf.mxu0
    %v233 = vpop.f32.mrf.mxu0
    %234 = vdwg.mxu0
    %v235 = vadd.f32 %v187, %v230
    %v236 = vmul.f32 %v235, 0.5
    %v237 = vtanh.pop %v236
    %v238 = vmul.f32 %v237, 0.5
    %v239 = vadd.f32 %v238, 0.5
    %v240 = vtanh.pop %v235
    %v241 = vmul.f32 %v239, %v165
    %243 = vrot.lane.b32.xlu0 %v240, 64
    %v244 = vpop.permute.xlu0 %243
    %v246 = vmul.f32 %v239, %v244
    %248 = vrot.lane.b32.xlu0 %v246, 32
    %v249 = vpop.permute.xlu0 %248
    %v251 = vadd.f32 %v241, %v249
    %v252 = vtanh.pop %v251
    %254 = vrot.lane.b32.xlu0 %v252, 64
    %v255 = vpop.permute.xlu0 %254
    %v257 = vmul.f32 %v239, %v255
    %v260 = vunpack.c.l.s4 1983009808
    %v261 = vunpack.c.0.s8 %v260
    %v262 = vlaneseq
    %v263 = vshrl.u32 %v262, 7
    %v264 = vsub.s32 %v261, %v263
    %v265 = vrot.slane %v257, %v264
    %266 = vrot.lane.b32.xlu0 %v265, 32
    %v267 = vpop.permute.xlu0 %266
    %s269 = scalar_lea.vmem [#allocation2], 2
    %270 = vst.msk [vmem:[%s269] sm:$0x3] %vm183, %v267
    %s271 = scalar_lea.vmem [#allocation5], 2
    %v272 = vld [vmem:[%s271] sm:$0x1]
    %v273 = vunpack.c.l.bf16 %v272
    %v274 = vpack.c.bf16 %v257, %v257
    %276 = vrot.lane.b32.xlu0 %v274, 32
    %v277 = vpop.permute.xlu0 %276
    %v279 = vsel %vm94, %v277, 0
    %281 = vmatprep.subr.bf16.mxu0 0
    %282 = vmatpush1.bf16.msra.mxu0 0
    %283 = vmatprep.subr.bf16.mxu0 0
    %284 = vmatpush1.bf16.msra.mxu0 0
    %285 = vmatprep.subr.bf16.mxu0 0
    %286 = vmatpush1.bf16.msra.mxu0 0
    %287 = vmatprep.subr.bf16.mxu0 0
    %288 = vmatpush1.bf16.msra.mxu0 0
    %289 = vmatprep.subr.bf16.mxu0 0
    %290 = vmatpush1.bf16.msra.mxu0 0
    %291 = vmatprep.subr.bf16.mxu0 0
    %292 = vmatpush1.bf16.msra.mxu0 0
    %293 = vmatprep.subr.bf16.mxu0 0
    %294 = vmatpush1.bf16.msra.mxu0 %v91
    %295 = vmatprep.subr.bf16.mxu0 0
    %296 = vmatpush1.bf16.msra.mxu0 %v90
    %297 = vmatprep.subr.bf16.mxu0 0
    %298 = vmatpush2.bf16.msra.mxu0 0
    %299 = vmatprep.subr.bf16.mxu0 0
    %300 = vmatpush2.bf16.msra.mxu0 0
    %301 = vmatprep.subr.bf16.mxu0 0
    %302 = vmatpush2.bf16.msra.mxu0 0
    %303 = vmatprep.subr.bf16.mxu0 0
    %304 = vmatpush2.bf16.msra.mxu0 0
    %305 = vmatprep.subr.bf16.mxu0 0
    %306 = vmatpush2.bf16.msra.mxu0 0
    %307 = vmatprep.subr.bf16.mxu0 0
    %308 = vmatpush2.bf16.msra.mxu0 0
    %309 = vmatprep.subr.bf16.mxu0 0
    %310 = vmatpush2.bf16.msra.mxu0 0
    %311 = vmatprep.subr.bf16.mxu0 0
    %312 = vmatpush2.bf16.msra.mxu0 0
    %313 = vmatprep.mubr.bf16.mxu0 0
    %314 = vmatmul.mubr.bf16.gmra.mxu0 %v279
    %v315 = vpop.f32.mrf.mxu0
    %v316 = vadd.f32 0.0, %v315
    %v317 = vpop.f32.mrf.mxu0
    %v318 = vpop.f32.mrf.mxu0
    %v319 = vpop.f32.mrf.mxu0
    %320 = vdwg.mxu0
    %v321 = vadd.f32 %v273, %v316
    %v322 = vmul.f32 %v321, 0.5
    %v323 = vtanh.pop %v322
    %v324 = vmul.f32 %v323, 0.5
    %v325 = vadd.f32 %v324, 0.5
    %v326 = vtanh.pop %v321
    %v327 = vmul.f32 %v325, %v251
    %329 = vrot.lane.b32.xlu0 %v326, 64
    %v330 = vpop.permute.xlu0 %329
    %v332 = vmul.f32 %v325, %v330
    %334 = vrot.lane.b32.xlu0 %v332, 32
    %v335 = vpop.permute.xlu0 %334
    %v337 = vadd.f32 %v327, %v335
    %v338 = vtanh.pop %v337
    %340 = vrot.lane.b32.xlu0 %v338, 64
    %v341 = vpop.permute.xlu0 %340
    %v343 = vmul.f32 %v325, %v341
    %v346 = vunpack.c.l.s4 1983009808
    %v347 = vunpack.c.0.s8 %v346
    %v348 = vlaneseq
    %v349 = vshrl.u32 %v348, 7
    %v350 = vsub.s32 %v347, %v349
    %v351 = vrot.slane %v343, %v350
    %352 = vrot.lane.b32.xlu0 %v351, 32
    %v353 = vpop.permute.xlu0 %352
    %s355 = scalar_lea.vmem [#allocation2], 4
    %356 = vst.msk [vmem:[%s355] sm:$0x3] %vm183, %v353
    %s357 = scalar_lea.vmem [#allocation5], 3
    %v358 = vld [vmem:[%s357] sm:$0x1]
    %v359 = vunpack.c.l.bf16 %v358
    %v360 = vpack.c.bf16 %v343, %v343
    %362 = vrot.lane.b32.xlu0 %v360, 32
    %v363 = vpop.permute.xlu0 %362
    %v365 = vsel %vm94, %v363, 0
    %367 = vmatprep.subr.bf16.mxu0 0
    %368 = vmatpush1.bf16.msra.mxu0 0
    %369 = vmatprep.subr.bf16.mxu0 0
    %370 = vmatpush1.bf16.msra.mxu0 0
    %371 = vmatprep.subr.bf16.mxu0 0
    %372 = vmatpush1.bf16.msra.mxu0 0
    %373 = vmatprep.subr.bf16.mxu0 0
    %374 = vmatpush1.bf16.msra.mxu0 0
    %375 = vmatprep.subr.bf16.mxu0 0
    %376 = vmatpush1.bf16.msra.mxu0 0
    %377 = vmatprep.subr.bf16.mxu0 0
    %378 = vmatpush1.bf16.msra.mxu0 0
    %379 = vmatprep.subr.bf16.mxu0 0
    %380 = vmatpush1.bf16.msra.mxu0 %v91
    %381 = vmatprep.subr.bf16.mxu0 0
    %382 = vmatpush1.bf16.msra.mxu0 %v90
    %383 = vmatprep.subr.bf16.mxu0 0
    %384 = vmatpush2.bf16.msra.mxu0 0
    %385 = vmatprep.subr.bf16.mxu0 0
    %386 = vmatpush2.bf16.msra.mxu0 0
    %387 = vmatprep.subr.bf16.mxu0 0
    %388 = vmatpush2.bf16.msra.mxu0 0
    %389 = vmatprep.subr.bf16.mxu0 0
    %390 = vmatpush2.bf16.msra.mxu0 0
    %391 = vmatprep.subr.bf16.mxu0 0
    %392 = vmatpush2.bf16.msra.mxu0 0
    %393 = vmatprep.subr.bf16.mxu0 0
    %394 = vmatpush2.bf16.msra.mxu0 0
    %395 = vmatprep.subr.bf16.mxu0 0
    %396 = vmatpush2.bf16.msra.mxu0 0
    %397 = vmatprep.subr.bf16.mxu0 0
    %398 = vmatpush2.bf16.msra.mxu0 0
    %399 = vmatprep.mubr.bf16.mxu0 0
    %400 = vmatmul.mubr.bf16.gmra.mxu0 %v365
    %v401 = vpop.f32.mrf.mxu0
    %v402 = vadd.f32 0.0, %v401
    %v403 = vpop.f32.mrf.mxu0
    %v404 = vpop.f32.mrf.mxu0
    %v405 = vpop.f32.mrf.mxu0
    %406 = vdwg.mxu0
    %v407 = vadd.f32 %v359, %v402
    %v408 = vmul.f32 %v407, 0.5
    %v409 = vtanh.pop %v408
    %v410 = vmul.f32 %v409, 0.5
    %v411 = vadd.f32 %v410, 0.5
    %v412 = vtanh.pop %v407
    %v413 = vmul.f32 %v411, %v337
    %415 = vrot.lane.b32.xlu0 %v412, 64
    %v416 = vpop.permute.xlu0 %415
    %v418 = vmul.f32 %v411, %v416
    %420 = vrot.lane.b32.xlu0 %v418, 32
    %v421 = vpop.permute.xlu0 %420
    %v423 = vadd.f32 %v413, %v421
    %v424 = vtanh.pop %v423
    %426 = vrot.lane.b32.xlu0 %v424, 64
    %v427 = vpop.permute.xlu0 %426
    %v429 = vmul.f32 %v411, %v427
    %v432 = vunpack.c.l.s4 1983009808
    %v433 = vunpack.c.0.s8 %v432
    %v434 = vlaneseq
    %v435 = vshrl.u32 %v434, 7
    %v436 = vsub.s32 %v433, %v435
    %v437 = vrot.slane %v429, %v436
    %438 = vrot.lane.b32.xlu0 %v437, 32
    %v439 = vpop.permute.xlu0 %438
    %s441 = scalar_lea.vmem [#allocation2], 6
    %442 = vst.msk [vmem:[%s441] sm:$0x3] %vm183, %v439
    %s443 = scalar_lea.vmem [#allocation5], 4
    %v444 = vld [vmem:[%s443] sm:$0x1]
    %v445 = vunpack.c.l.bf16 %v444
    %v446 = vpack.c.bf16 %v429, %v429
    %448 = vrot.lane.b32.xlu0 %v446, 32
    %v449 = vpop.permute.xlu0 %448
    %v451 = vsel %vm94, %v449, 0
    %453 = vmatprep.subr.bf16.mxu0 0
    %454 = vmatpush1.bf16.msra.mxu0 0
    %455 = vmatprep.subr.bf16.mxu0 0
    %456 = vmatpush1.bf16.msra.mxu0 0
    %457 = vmatprep.subr.bf16.mxu0 0
    %458 = vmatpush1.bf16.msra.mxu0 0
    %459 = vmatprep.subr.bf16.mxu0 0
    %460 = vmatpush1.bf16.msra.mxu0 0
    %461 = vmatprep.subr.bf16.mxu0 0
    %462 = vmatpush1.bf16.msra.mxu0 0
    %463 = vmatprep.subr.bf16.mxu0 0
    %464 = vmatpush1.bf16.msra.mxu0 0
    %465 = vmatprep.subr.bf16.mxu0 0
    %466 = vmatpush1.bf16.msra.mxu0 %v91
    %467 = vmatprep.subr.bf16.mxu0 0
    %468 = vmatpush1.bf16.msra.mxu0 %v90
    %469 = vmatprep.subr.bf16.mxu0 0
    %470 = vmatpush2.bf16.msra.mxu0 0
    %471 = vmatprep.subr.bf16.mxu0 0
    %472 = vmatpush2.bf16.msra.mxu0 0
    %473 = vmatprep.subr.bf16.mxu0 0
    %474 = vmatpush2.bf16.msra.mxu0 0
    %475 = vmatprep.subr.bf16.mxu0 0
    %476 = vmatpush2.bf16.msra.mxu0 0
    %477 = vmatprep.subr.bf16.mxu0 0
    %478 = vmatpush2.bf16.msra.mxu0 0
    %479 = vmatprep.subr.bf16.mxu0 0
    %480 = vmatpush2.bf16.msra.mxu0 0
    %481 = vmatprep.subr.bf16.mxu0 0
    %482 = vmatpush2.bf16.msra.mxu0 0
    %483 = vmatprep.subr.bf16.mxu0 0
    %484 = vmatpush2.bf16.msra.mxu0 0
    %485 = vmatprep.mubr.bf16.mxu0 0
    %486 = vmatmul.mubr.bf16.gmra.mxu0 %v451
    %v487 = vpop.f32.mrf.mxu0
    %v488 = vadd.f32 0.0, %v487
    %v489 = vpop.f32.mrf.mxu0
    %v490 = vpop.f32.mrf.mxu0
    %v491 = vpop.f32.mrf.mxu0
    %492 = vdwg.mxu0
    %v493 = vadd.f32 %v445, %v488
    %v494 = vmul.f32 %v493, 0.5
    %v495 = vtanh.pop %v494
    %v496 = vmul.f32 %v495, 0.5
    %v497 = vadd.f32 %v496, 0.5
    %v498 = vtanh.pop %v493
    %v499 = vmul.f32 %v497, %v423
    %501 = vrot.lane.b32.xlu0 %v498, 64
    %v502 = vpop.permute.xlu0 %501
    %v504 = vmul.f32 %v497, %v502
    %506 = vrot.lane.b32.xlu0 %v504, 32
    %v507 = vpop.permute.xlu0 %506
    %v509 = vadd.f32 %v499, %v507
    %v510 = vtanh.pop %v509
    %512 = vrot.lane.b32.xlu0 %v510, 64
    %v513 = vpop.permute.xlu0 %512
    %v515 = vmul.f32 %v497, %v513
    %v518 = vunpack.c.l.s4 1983009808
    %v519 = vunpack.c.0.s8 %v518
    %v520 = vlaneseq
    %v521 = vshrl.u32 %v520, 7
    %v522 = vsub.s32 %v519, %v521
    %v523 = vrot.slane %v515, %v522
    %524 = vrot.lane.b32.xlu0 %v523, 32
    %v525 = vpop.permute.xlu0 %524
    %s527 = scalar_lea.vmem [#allocation2], 8
    %528 = vst.msk [vmem:[%s527] sm:$0x3] %vm183, %v525
    %s529 = scalar_lea.vmem [#allocation5], 5
    %v530 = vld [vmem:[%s529] sm:$0x1]
    %v531 = vunpack.c.l.bf16 %v530
    %v532 = vpack.c.bf16 %v515, %v515
    %534 = vrot.lane.b32.xlu0 %v532, 32
    %v535 = vpop.permute.xlu0 %534
    %v537 = vsel %vm94, %v535, 0
    %539 = vmatprep.subr.bf16.mxu0 0
    %540 = vmatpush1.bf16.msra.mxu0 0
    %541 = vmatprep.subr.bf16.mxu0 0
    %542 = vmatpush1.bf16.msra.mxu0 0
    %543 = vmatprep.subr.bf16.mxu0 0
    %544 = vmatpush1.bf16.msra.mxu0 0
    %545 = vmatprep.subr.bf16.mxu0 0
    %546 = vmatpush1.bf16.msra.mxu0 0
    %547 = vmatprep.subr.bf16.mxu0 0
    %548 = vmatpush1.bf16.msra.mxu0 0
    %549 = vmatprep.subr.bf16.mxu0 0
    %550 = vmatpush1.bf16.msra.mxu0 0
    %551 = vmatprep.subr.bf16.mxu0 0
    %552 = vmatpush1.bf16.msra.mxu0 %v91
    %553 = vmatprep.subr.bf16.mxu0 0
    %554 = vmatpush1.bf16.msra.mxu0 %v90
    %555 = vmatprep.subr.bf16.mxu0 0
    %556 = vmatpush2.bf16.msra.mxu0 0
    %557 = vmatprep.subr.bf16.mxu0 0
    %558 = vmatpush2.bf16.msra.mxu0 0
    %559 = vmatprep.subr.bf16.mxu0 0
    %560 = vmatpush2.bf16.msra.mxu0 0
    %561 = vmatprep.subr.bf16.mxu0 0
    %562 = vmatpush2.bf16.msra.mxu0 0
    %563 = vmatprep.subr.bf16.mxu0 0
    %564 = vmatpush2.bf16.msra.mxu0 0
    %565 = vmatprep.subr.bf16.mxu0 0
    %566 = vmatpush2.bf16.msra.mxu0 0
    %567 = vmatprep.subr.bf16.mxu0 0
    %568 = vmatpush2.bf16.msra.mxu0 0
    %569 = vmatprep.subr.bf16.mxu0 0
    %570 = vmatpush2.bf16.msra.mxu0 0
    %571 = vmatprep.mubr.bf16.mxu0 0
    %572 = vmatmul.mubr.bf16.gmra.mxu0 %v537
    %v573 = vpop.f32.mrf.mxu0
    %v574 = vadd.f32 0.0, %v573
    %v575 = vpop.f32.mrf.mxu0
    %v576 = vpop.f32.mrf.mxu0
    %v577 = vpop.f32.mrf.mxu0
    %578 = vdwg.mxu0
    %v579 = vadd.f32 %v531, %v574
    %v580 = vmul.f32 %v579, 0.5
    %v581 = vtanh.pop %v580
    %v582 = vmul.f32 %v581, 0.5
    %v583 = vadd.f32 %v582, 0.5
    %v584 = vtanh.pop %v579
    %v585 = vmul.f32 %v583, %v509
    %587 = vrot.lane.b32.xlu0 %v584, 64
    %v588 = vpop.permute.xlu0 %587
    %v590 = vmul.f32 %v583, %v588
    %592 = vrot.lane.b32.xlu0 %v590, 32
    %v593 = vpop.permute.xlu0 %592
    %v595 = vadd.f32 %v585, %v593
    %v596 = vtanh.pop %v595
    %598 = vrot.lane.b32.xlu0 %v596, 64
    %v599 = vpop.permute.xlu0 %598
    %v601 = vmul.f32 %v583, %v599
    %v604 = vunpack.c.l.s4 1983009808
    %v605 = vunpack.c.0.s8 %v604
    %v606 = vlaneseq
    %v607 = vshrl.u32 %v606, 7
    %v608 = vsub.s32 %v605, %v607
    %v609 = vrot.slane %v601, %v608
    %610 = vrot.lane.b32.xlu0 %v609, 32
    %v611 = vpop.permute.xlu0 %610
    %s613 = scalar_lea.vmem [#allocation2], 10
    %614 = vst.msk [vmem:[%s613] sm:$0x3] %vm183, %v611
    %s615 = scalar_lea.vmem [#allocation5], 6
    %v616 = vld [vmem:[%s615] sm:$0x1]
    %v617 = vunpack.c.l.bf16 %v616
    %v618 = vpack.c.bf16 %v601, %v601
    %620 = vrot.lane.b32.xlu0 %v618, 32
    %v621 = vpop.permute.xlu0 %620
    %v623 = vsel %vm94, %v621, 0
    %625 = vmatprep.subr.bf16.mxu0 0
    %626 = vmatpush1.bf16.msra.mxu0 0
    %627 = vmatprep.subr.bf16.mxu0 0
    %628 = vmatpush1.bf16.msra.mxu0 0
    %629 = vmatprep.subr.bf16.mxu0 0
    %630 = vmatpush1.bf16.msra.mxu0 0
    %631 = vmatprep.subr.bf16.mxu0 0
    %632 = vmatpush1.bf16.msra.mxu0 0
    %633 = vmatprep.subr.bf16.mxu0 0
    %634 = vmatpush1.bf16.msra.mxu0 0
    %635 = vmatprep.subr.bf16.mxu0 0
    %636 = vmatpush1.bf16.msra.mxu0 0
    %637 = vmatprep.subr.bf16.mxu0 0
    %638 = vmatpush1.bf16.msra.mxu0 %v91
    %639 = vmatprep.subr.bf16.mxu0 0
    %640 = vmatpush1.bf16.msra.mxu0 %v90
    %641 = vmatprep.subr.bf16.mxu0 0
    %642 = vmatpush2.bf16.msra.mxu0 0
    %643 = vmatprep.subr.bf16.mxu0 0
    %644 = vmatpush2.bf16.msra.mxu0 0
    %645 = vmatprep.subr.bf16.mxu0 0
    %646 = vmatpush2.bf16.msra.mxu0 0
    %647 = vmatprep.subr.bf16.mxu0 0
    %648 = vmatpush2.bf16.msra.mxu0 0
    %649 = vmatprep.subr.bf16.mxu0 0
    %650 = vmatpush2.bf16.msra.mxu0 0
    %651 = vmatprep.subr.bf16.mxu0 0
    %652 = vmatpush2.bf16.msra.mxu0 0
    %653 = vmatprep.subr.bf16.mxu0 0
    %654 = vmatpush2.bf16.msra.mxu0 0
    %655 = vmatprep.subr.bf16.mxu0 0
    %656 = vmatpush2.bf16.msra.mxu0 0
    %657 = vmatprep.mubr.bf16.mxu0 0
    %658 = vmatmul.mubr.bf16.gmra.mxu0 %v623
    %v659 = vpop.f32.mrf.mxu0
    %v660 = vadd.f32 0.0, %v659
    %v661 = vpop.f32.mrf.mxu0
    %v662 = vpop.f32.mrf.mxu0
    %v663 = vpop.f32.mrf.mxu0
    %664 = vdwg.mxu0
    %v665 = vadd.f32 %v617, %v660
    %v666 = vmul.f32 %v665, 0.5
    %v667 = vtanh.pop %v666
    %v668 = vmul.f32 %v667, 0.5
    %v669 = vadd.f32 %v668, 0.5
    %v670 = vtanh.pop %v665
    %v671 = vmul.f32 %v669, %v595
    %673 = vrot.lane.b32.xlu0 %v670, 64
    %v674 = vpop.permute.xlu0 %673
    %v676 = vmul.f32 %v669, %v674
    %678 = vrot.lane.b32.xlu0 %v676, 32
    %v679 = vpop.permute.xlu0 %678
    %v681 = vadd.f32 %v671, %v679
    %v682 = vtanh.pop %v681
    %684 = vrot.lane.b32.xlu0 %v682, 64
    %v685 = vpop.permute.xlu0 %684
    %v687 = vmul.f32 %v669, %v685
    %v690 = vunpack.c.l.s4 1983009808
    %v691 = vunpack.c.0.s8 %v690
    %v692 = vlaneseq
    %v693 = vshrl.u32 %v692, 7
    %v694 = vsub.s32 %v691, %v693
    %v695 = vrot.slane %v687, %v694
    %696 = vrot.lane.b32.xlu0 %v695, 32
    %v697 = vpop.permute.xlu0 %696
    %s699 = scalar_lea.vmem [#allocation2], 12
    %700 = vst.msk [vmem:[%s699] sm:$0x3] %vm183, %v697
    %s701 = scalar_lea.vmem [#allocation5], 7
    %v702 = vld [vmem:[%s701] sm:$0x1]
    %v703 = vunpack.c.l.bf16 %v702
    %v704 = vpack.c.bf16 %v687, %v687
    %706 = vrot.lane.b32.xlu0 %v704, 32
    %v707 = vpop.permute.xlu0 %706
    %v709 = vsel %vm94, %v707, 0
    %711 = vmatprep.subr.bf16.mxu0 0
    %712 = vmatpush1.bf16.msra.mxu0 0
    %713 = vmatprep.subr.bf16.mxu0 0
    %714 = vmatpush1.bf16.msra.mxu0 0
    %715 = vmatprep.subr.bf16.mxu0 0
    %716 = vmatpush1.bf16.msra.mxu0 0
    %717 = vmatprep.subr.bf16.mxu0 0
    %718 = vmatpush1.bf16.msra.mxu0 0
    %719 = vmatprep.subr.bf16.mxu0 0
    %720 = vmatpush1.bf16.msra.mxu0 0
    %721 = vmatprep.subr.bf16.mxu0 0
    %722 = vmatpush1.bf16.msra.mxu0 0
    %723 = vmatprep.subr.bf16.mxu0 0
    %724 = vmatpush1.bf16.msra.mxu0 %v91
    %725 = vmatprep.subr.bf16.mxu0 0
    %726 = vmatpush1.bf16.msra.mxu0 %v90
    %727 = vmatprep.subr.bf16.mxu0 0
    %728 = vmatpush2.bf16.msra.mxu0 0
    %729 = vmatprep.subr.bf16.mxu0 0
    %730 = vmatpush2.bf16.msra.mxu0 0
    %731 = vmatprep.subr.bf16.mxu0 0
    %732 = vmatpush2.bf16.msra.mxu0 0
    %733 = vmatprep.subr.bf16.mxu0 0
    %734 = vmatpush2.bf16.msra.mxu0 0
    %735 = vmatprep.subr.bf16.mxu0 0
    %736 = vmatpush2.bf16.msra.mxu0 0
    %737 = vmatprep.subr.bf16.mxu0 0
    %738 = vmatpush2.bf16.msra.mxu0 0
    %739 = vmatprep.subr.bf16.mxu0 0
    %740 = vmatpush2.bf16.msra.mxu0 0
    %741 = vmatprep.subr.bf16.mxu0 0
    %742 = vmatpush2.bf16.msra.mxu0 0
    %743 = vmatprep.mubr.bf16.mxu0 0
    %744 = vmatmul.mubr.bf16.gmra.mxu0 %v709
    %v745 = vpop.f32.mrf.mxu0
    %v746 = vadd.f32 0.0, %v745
    %v747 = vpop.f32.mrf.mxu0
    %v748 = vpop.f32.mrf.mxu0
    %v749 = vpop.f32.mrf.mxu0
    %750 = vdwg.mxu0
    %v751 = vadd.f32 %v703, %v746
    %v752 = vmul.f32 %v751, 0.5
    %v753 = vtanh.pop %v752
    %v754 = vmul.f32 %v753, 0.5
    %v755 = vadd.f32 %v754, 0.5
    %v756 = vtanh.pop %v751
    %v757 = vmul.f32 %v755, %v681
    %759 = vrot.lane.b32.xlu0 %v756, 64
    %v760 = vpop.permute.xlu0 %759
    %v762 = vmul.f32 %v755, %v760
    %764 = vrot.lane.b32.xlu0 %v762, 32
    %v765 = vpop.permute.xlu0 %764
    %v767 = vadd.f32 %v757, %v765
    %v768 = vtanh.pop %v767
    %770 = vrot.lane.b32.xlu0 %v768, 64
    %v771 = vpop.permute.xlu0 %770
    %v773 = vmul.f32 %v755, %v771
    %v776 = vunpack.c.l.s4 1983009808
    %v777 = vunpack.c.0.s8 %v776
    %v778 = vlaneseq
    %v779 = vshrl.u32 %v778, 7
    %v780 = vsub.s32 %v777, %v779
    %v781 = vrot.slane %v773, %v780
    %782 = vrot.lane.b32.xlu0 %v781, 32
    %v783 = vpop.permute.xlu0 %782
    %s785 = scalar_lea.vmem [#allocation2], 14
    %786 = vst.msk [vmem:[%s785] sm:$0x3] %vm183, %v783
    %s787 = scalar_lea.vmem [#allocation5], 8
    %v788 = vld [vmem:[%s787] sm:$0x1]
    %v789 = vunpack.c.l.bf16 %v788
    %v790 = vpack.c.bf16 %v773, %v773
    %792 = vrot.lane.b32.xlu0 %v790, 32
    %v793 = vpop.permute.xlu0 %792
    %v795 = vsel %vm94, %v793, 0
    %797 = vmatprep.subr.bf16.mxu0 0
    %798 = vmatpush1.bf16.msra.mxu0 0
    %799 = vmatprep.subr.bf16.mxu0 0
    %800 = vmatpush1.bf16.msra.mxu0 0
    %801 = vmatprep.subr.bf16.mxu0 0
    %802 = vmatpush1.bf16.msra.mxu0 0
    %803 = vmatprep.subr.bf16.mxu0 0
    %804 = vmatpush1.bf16.msra.mxu0 0
    %805 = vmatprep.subr.bf16.mxu0 0
    %806 = vmatpush1.bf16.msra.mxu0 0
    %807 = vmatprep.subr.bf16.mxu0 0
    %808 = vmatpush1.bf16.msra.mxu0 0
    %809 = vmatprep.subr.bf16.mxu0 0
    %810 = vmatpush1.bf16.msra.mxu0 %v91
    %811 = vmatprep.subr.bf16.mxu0 0
    %812 = vmatpush1.bf16.msra.mxu0 %v90
    %813 = vmatprep.subr.bf16.mxu0 0
    %814 = vmatpush2.bf16.msra.mxu0 0
    %815 = vmatprep.subr.bf16.mxu0 0
    %816 = vmatpush2.bf16.msra.mxu0 0
    %817 = vmatprep.subr.bf16.mxu0 0
    %818 = vmatpush2.bf16.msra.mxu0 0
    %819 = vmatprep.subr.bf16.mxu0 0
    %820 = vmatpush2.bf16.msra.mxu0 0
    %821 = vmatprep.subr.bf16.mxu0 0
    %822 = vmatpush2.bf16.msra.mxu0 0
    %823 = vmatprep.subr.bf16.mxu0 0
    %824 = vmatpush2.bf16.msra.mxu0 0
    %825 = vmatprep.subr.bf16.mxu0 0
    %826 = vmatpush2.bf16.msra.mxu0 0
    %827 = vmatprep.subr.bf16.mxu0 0
    %828 = vmatpush2.bf16.msra.mxu0 0
    %829 = vmatprep.mubr.bf16.mxu0 0
    %830 = vmatmul.mubr.bf16.gmra.mxu0 %v795
    %v831 = vpop.f32.mrf.mxu0
    %v832 = vadd.f32 0.0, %v831
    %v833 = vpop.f32.mrf.mxu0
    %v834 = vpop.f32.mrf.mxu0
    %v835 = vpop.f32.mrf.mxu0
    %836 = vdwg.mxu0
    %v837 = vadd.f32 %v789, %v832
    %v838 = vmul.f32 %v837, 0.5
    %v839 = vtanh.pop %v838
    %v840 = vmul.f32 %v839, 0.5
    %v841 = vadd.f32 %v840, 0.5
    %v842 = vtanh.pop %v837
    %v843 = vmul.f32 %v841, %v767
    %845 = vrot.lane.b32.xlu0 %v842, 64
    %v846 = vpop.permute.xlu0 %845
    %v848 = vmul.f32 %v841, %v846
    %850 = vrot.lane.b32.xlu0 %v848, 32
    %v851 = vpop.permute.xlu0 %850
    %v853 = vadd.f32 %v843, %v851
    %v854 = vtanh.pop %v853
    %856 = vrot.lane.b32.xlu0 %v854, 64
    %v857 = vpop.permute.xlu0 %856
    %v859 = vmul.f32 %v841, %v857
    %v862 = vunpack.c.l.s4 1983009808
    %v863 = vunpack.c.0.s8 %v862
    %v864 = vlaneseq
    %v865 = vshrl.u32 %v864, 7
    %v866 = vsub.s32 %v863, %v865
    %v867 = vrot.slane %v859, %v866
    %868 = vrot.lane.b32.xlu0 %v867, 32
    %v869 = vpop.permute.xlu0 %868
    %s871 = scalar_lea.vmem [#allocation2], 16
    %872 = vst.msk [vmem:[%s871] sm:$0x3] %vm183, %v869
    %s873 = scalar_lea.vmem [#allocation5], 9
    %v874 = vld [vmem:[%s873] sm:$0x1]
    %v875 = vunpack.c.l.bf16 %v874
    %v876 = vpack.c.bf16 %v859, %v859
    %878 = vrot.lane.b32.xlu0 %v876, 32
    %v879 = vpop.permute.xlu0 %878
    %v881 = vsel %vm94, %v879, 0
    %883 = vmatprep.subr.bf16.mxu0 0
    %884 = vmatpush1.bf16.msra.mxu0 0
    %885 = vmatprep.subr.bf16.mxu0 0
    %886 = vmatpush1.bf16.msra.mxu0 0
    %887 = vmatprep.subr.bf16.mxu0 0
    %888 = vmatpush1.bf16.msra.mxu0 0
    %889 = vmatprep.subr.bf16.mxu0 0
    %890 = vmatpush1.bf16.msra.mxu0 0
    %891 = vmatprep.subr.bf16.mxu0 0
    %892 = vmatpush1.bf16.msra.mxu0 0
    %893 = vmatprep.subr.bf16.mxu0 0
    %894 = vmatpush1.bf16.msra.mxu0 0
    %895 = vmatprep.subr.bf16.mxu0 0
    %896 = vmatpush1.bf16.msra.mxu0 %v91
    %897 = vmatprep.subr.bf16.mxu0 0
    %898 = vmatpush1.bf16.msra.mxu0 %v90
    %899 = vmatprep.subr.bf16.mxu0 0
    %900 = vmatpush2.bf16.msra.mxu0 0
    %901 = vmatprep.subr.bf16.mxu0 0
    %902 = vmatpush2.bf16.msra.mxu0 0
    %903 = vmatprep.subr.bf16.mxu0 0
    %904 = vmatpush2.bf16.msra.mxu0 0
    %905 = vmatprep.subr.bf16.mxu0 0
    %906 = vmatpush2.bf16.msra.mxu0 0
    %907 = vmatprep.subr.bf16.mxu0 0
    %908 = vmatpush2.bf16.msra.mxu0 0
    %909 = vmatprep.subr.bf16.mxu0 0
    %910 = vmatpush2.bf16.msra.mxu0 0
    %911 = vmatprep.subr.bf16.mxu0 0
    %912 = vmatpush2.bf16.msra.mxu0 0
    %913 = vmatprep.subr.bf16.mxu0 0
    %914 = vmatpush2.bf16.msra.mxu0 0
    %915 = vmatprep.mubr.bf16.mxu0 0
    %916 = vmatmul.mubr.bf16.gmra.mxu0 %v881
    %v917 = vpop.f32.mrf.mxu0
    %v918 = vadd.f32 0.0, %v917
    %v919 = vpop.f32.mrf.mxu0
    %v920 = vpop.f32.mrf.mxu0
    %v921 = vpop.f32.mrf.mxu0
    %922 = vdwg.mxu0
    %v923 = vadd.f32 %v875, %v918
    %v924 = vmul.f32 %v923, 0.5
    %v925 = vtanh.pop %v924
    %v926 = vmul.f32 %v925, 0.5
    %v927 = vadd.f32 %v926, 0.5
    %v928 = vtanh.pop %v923
    %v929 = vmul.f32 %v927, %v853
    %931 = vrot.lane.b32.xlu0 %v928, 64
    %v932 = vpop.permute.xlu0 %931
    %v934 = vmul.f32 %v927, %v932
    %936 = vrot.lane.b32.xlu0 %v934, 32
    %v937 = vpop.permute.xlu0 %936
    %v939 = vadd.f32 %v929, %v937
    %v940 = vtanh.pop %v939
    %942 = vrot.lane.b32.xlu0 %v940, 64
    %v943 = vpop.permute.xlu0 %942
    %v945 = vmul.f32 %v927, %v943
    %v948 = vunpack.c.l.s4 1983009808
    %v949 = vunpack.c.0.s8 %v948
    %v950 = vlaneseq
    %v951 = vshrl.u32 %v950, 7
    %v952 = vsub.s32 %v949, %v951
    %v953 = vrot.slane %v945, %v952
    %954 = vrot.lane.b32.xlu0 %v953, 32
    %v955 = vpop.permute.xlu0 %954
    %s957 = scalar_lea.vmem [#allocation2], 18
    %958 = vst.msk [vmem:[%s957] sm:$0x3] %vm183, %v955
    %959 = vst.msk [vmem:[#allocation3] sm:$0x3] %vm183, %v955
    %v962 = vunpack.c.l.s4 1983009808
    %v963 = vunpack.c.0.s8 %v962
    %v964 = vlaneseq
    %v965 = vshrl.u32 %v964, 7
    %v966 = vsub.s32 %v963, %v965
    %v967 = vrot.slane %v939, %v966
    %968 = vrot.lane.b32.xlu0 %v967, 96
    %v969 = vpop.permute.xlu0 %968
    %971 = vst.msk [vmem:[#allocation4] sm:$0x3] %vm183, %v969
    %s972 = scalar_lea.vmem [#allocation8], 16
    %v973 = vld [vmem:[%s972] sm:$0xf]
    %v974 = vld [vmem:[%s972 + $0x4] sm:$0xf]
    %v975 = vld [vmem:[%s972 + $0x8] sm:$0xf]
    %v976 = vld [vmem:[%s972 + $0xc] sm:$0xf]
    %v977 = vld [vmem:[#allocation10] sm:$0xf]
    %v978 = vld [vmem:[#allocation10 + $0x4] sm:$0xf]
    %v979 = vld [vmem:[#allocation10 + $0x8] sm:$0xf]
    %v980 = vld [vmem:[#allocation10 + $0xc] sm:$0xf]
    %v981 = vld [vmem:[%s3] sm:$0x1]
    %s982 = scalar_lea.vmem [#allocation3], 2
    %v983 = vld [vmem:[%s982] sm:$0x3]
    %s984 = scalar_lea.vmem [#allocation4], 2
    %v985 = vld [vmem:[%s984] sm:$0x3]
    %v986 = vld [vmem:[#allocation2] sm:$0x3]
    %v987 = vpack.c.bf16 %v986, %v986
    %v989 = vlaneseq
    %v990 = vshrl.u32 %v989, 7
    %v991 = vsub.s32 0, %v990
    %v992 = vrot.slane %v981, %v991
    %v998 = vunpack.c.l.b16 %v977
    %v999 = vunpack.c.l.b16 %v978
    %v1000 = vunpack.c.l.b16 %v979
    %v1001 = vunpack.c.l.b16 %v980
    %v1002 = vpack.c.b16 %v999, %v998
    %v1003 = vpack.c.b16 %v1001, %v1000
    %v1007 = vsel %vm94, %v987, 0
    %1009 = vmatprep.subr.bf16.mxu0 0
    %1010 = vmatpush1.bf16.msra.mxu0 0
    %1011 = vmatprep.subr.bf16.mxu0 0
    %1012 = vmatpush1.bf16.msra.mxu0 0
    %1013 = vmatprep.subr.bf16.mxu0 0
    %1014 = vmatpush1.bf16.msra.mxu0 0
    %1015 = vmatprep.subr.bf16.mxu0 0
    %1016 = vmatpush1.bf16.msra.mxu0 0
    %1017 = vmatprep.subr.bf16.mxu0 0
    %1018 = vmatpush1.bf16.msra.mxu0 0
    %1019 = vmatprep.subr.bf16.mxu0 0
    %1020 = vmatpush1.bf16.msra.mxu0 0
    %1021 = vmatprep.subr.bf16.mxu0 0
    %1022 = vmatpush1.bf16.msra.mxu0 %v1003
    %1023 = vmatprep.subr.bf16.mxu0 0
    %1024 = vmatpush1.bf16.msra.mxu0 %v1002
    %1025 = vmatprep.subr.bf16.mxu0 0
    %1026 = vmatpush2.bf16.msra.mxu0 0
    %1027 = vmatprep.subr.bf16.mxu0 0
    %1028 = vmatpush2.bf16.msra.mxu0 0
    %1029 = vmatprep.subr.bf16.mxu0 0
    %1030 = vmatpush2.bf16.msra.mxu0 0
    %1031 = vmatprep.subr.bf16.mxu0 0
    %1032 = vmatpush2.bf16.msra.mxu0 0
    %1033 = vmatprep.subr.bf16.mxu0 0
    %1034 = vmatpush2.bf16.msra.mxu0 0
    %1035 = vmatprep.subr.bf16.mxu0 0
    %1036 = vmatpush2.bf16.msra.mxu0 0
    %1037 = vmatprep.subr.bf16.mxu0 0
    %1038 = vmatpush2.bf16.msra.mxu0 0
    %1039 = vmatprep.subr.bf16.mxu0 0
    %1040 = vmatpush2.bf16.msra.mxu0 0
    %1041 = vmatprep.mubr.bf16.mxu0 0
    %1042 = vmatmul.mubr.bf16.gmra.mxu0 %v1007
    %v1043 = vpop.f32.mrf.mxu0
    %v1044 = vadd.f32 %v992, %v1043
    %v1045 = vpop.f32.mrf.mxu0
    %v1046 = vpop.f32.mrf.mxu0
    %v1047 = vpop.f32.mrf.mxu0
    %1048 = vdwg.mxu0
    %v1049 = vpack.c.bf16 %v983, %v983
    %v1054 = vunpack.c.l.b16 %v973
    %v1055 = vunpack.c.l.b16 %v974
    %v1056 = vunpack.c.l.b16 %v975
    %v1057 = vunpack.c.l.b16 %v976
    %v1058 = vpack.c.b16 %v1055, %v1054
    %v1059 = vpack.c.b16 %v1057, %v1056
    %v1063 = vsel %vm94, %v1049, 0
    %1065 = vmatprep.subr.bf16.mxu0 0
    %1066 = vmatpush1.bf16.msra.mxu0 0
    %1067 = vmatprep.subr.bf16.mxu0 0
    %1068 = vmatpush1.bf16.msra.mxu0 0
    %1069 = vmatprep.subr.bf16.mxu0 0
    %1070 = vmatpush1.bf16.msra.mxu0 0
    %1071 = vmatprep.subr.bf16.mxu0 0
    %1072 = vmatpush1.bf16.msra.mxu0 0
    %1073 = vmatprep.subr.bf16.mxu0 0
    %1074 = vmatpush1.bf16.msra.mxu0 0
    %1075 = vmatprep.subr.bf16.mxu0 0
    %1076 = vmatpush1.bf16.msra.mxu0 0
    %1077 = vmatprep.subr.bf16.mxu0 0
    %1078 = vmatpush1.bf16.msra.mxu0 %v1059
    %1079 = vmatprep.subr.bf16.mxu0 0
    %1080 = vmatpush1.bf16.msra.mxu0 %v1058
    %1081 = vmatprep.subr.bf16.mxu0 0
    %1082 = vmatpush2.bf16.msra.mxu0 0
    %1083 = vmatprep.subr.bf16.mxu0 0
    %1084 = vmatpush2.bf16.msra.mxu0 0
    %1085 = vmatprep.subr.bf16.mxu0 0
    %1086 = vmatpush2.bf16.msra.mxu0 0
    %1087 = vmatprep.subr.bf16.mxu0 0
    %1088 = vmatpush2.bf16.msra.mxu0 0
    %1089 = vmatprep.subr.bf16.mxu0 0
    %1090 = vmatpush2.bf16.msra.mxu0 0
    %1091 = vmatprep.subr.bf16.mxu0 0
    %1092 = vmatpush2.bf16.msra.mxu0 0
    %1093 = vmatprep.subr.bf16.mxu0 0
    %1094 = vmatpush2.bf16.msra.mxu0 0
    %1095 = vmatprep.subr.bf16.mxu0 0
    %1096 = vmatpush2.bf16.msra.mxu0 0
    %1097 = vmatprep.mubr.bf16.mxu0 0
    %1098 = vmatmul.mubr.bf16.gmra.mxu0 %v1063
    %v1099 = vpop.f32.mrf.mxu0
    %v1100 = vadd.f32 0.0, %v1099
    %v1101 = vpop.f32.mrf.mxu0
    %v1102 = vpop.f32.mrf.mxu0
    %v1103 = vpop.f32.mrf.mxu0
    %1104 = vdwg.mxu0
    %v1105 = vadd.f32 %v1044, %v1100
    %v1106 = vmul.f32 %v1105, 0.5
    %v1107 = vtanh.pop %v1106
    %v1108 = vmul.f32 %v1107, 0.5
    %v1109 = vadd.f32 %v1108, 0.5
    %v1110 = vtanh.pop %v1105
    %1112 = vrot.lane.b32.xlu0 %v985, 32
    %v1113 = vpop.permute.xlu0 %1112
    %v1115 = vmul.f32 %v1109, %v1113
    %1117 = vrot.lane.b32.xlu0 %v1110, 64
    %v1118 = vpop.permute.xlu0 %1117
    %v1120 = vmul.f32 %v1109, %v1118
    %1122 = vrot.lane.b32.xlu0 %v1120, 32
    %v1123 = vpop.permute.xlu0 %1122
    %v1125 = vadd.f32 %v1115, %v1123
    %v1126 = vtanh.pop %v1125
    %1128 = vrot.lane.b32.xlu0 %v1126, 64
    %v1129 = vpop.permute.xlu0 %1128
    %v1131 = vmul.f32 %v1109, %v1129
    %1133 = vrot.lane.b32.xlu0 %v1131, 32
    %v1134 = vpop.permute.xlu0 %1133
    %1136 = vst.msk [vmem:[#allocation11] sm:$0x3] %vm183, %v1134
    %v1137 = vld [vmem:[%s269] sm:$0x3]
    %v1138 = vpack.c.bf16 %v1137, %v1137
    %v1140 = vsel %vm94, %v1138, 0
    %1142 = vmatprep.subr.bf16.mxu0 0
    %1143 = vmatpush1.bf16.msra.mxu0 0
    %1144 = vmatprep.subr.bf16.mxu0 0
    %1145 = vmatpush1.bf16.msra.mxu0 0
    %1146 = vmatprep.subr.bf16.mxu0 0
    %1147 = vmatpush1.bf16.msra.mxu0 0
    %1148 = vmatprep.subr.bf16.mxu0 0
    %1149 = vmatpush1.bf16.msra.mxu0 0
    %1150 = vmatprep.subr.bf16.mxu0 0
    %1151 = vmatpush1.bf16.msra.mxu0 0
    %1152 = vmatprep.subr.bf16.mxu0 0
    %1153 = vmatpush1.bf16.msra.mxu0 0
    %1154 = vmatprep.subr.bf16.mxu0 0
    %1155 = vmatpush1.bf16.msra.mxu0 %v1003
    %1156 = vmatprep.subr.bf16.mxu0 0
    %1157 = vmatpush1.bf16.msra.mxu0 %v1002
    %1158 = vmatprep.subr.bf16.mxu0 0
    %1159 = vmatpush2.bf16.msra.mxu0 0
    %1160 = vmatprep.subr.bf16.mxu0 0
    %1161 = vmatpush2.bf16.msra.mxu0 0
    %1162 = vmatprep.subr.bf16.mxu0 0
    %1163 = vmatpush2.bf16.msra.mxu0 0
    %1164 = vmatprep.subr.bf16.mxu0 0
    %1165 = vmatpush2.bf16.msra.mxu0 0
    %1166 = vmatprep.subr.bf16.mxu0 0
    %1167 = vmatpush2.bf16.msra.mxu0 0
    %1168 = vmatprep.subr.bf16.mxu0 0
    %1169 = vmatpush2.bf16.msra.mxu0 0
    %1170 = vmatprep.subr.bf16.mxu0 0
    %1171 = vmatpush2.bf16.msra.mxu0 0
    %1172 = vmatprep.subr.bf16.mxu0 0
    %1173 = vmatpush2.bf16.msra.mxu0 0
    %1174 = vmatprep.mubr.bf16.mxu0 0
    %1175 = vmatmul.mubr.bf16.gmra.mxu0 %v1140
    %v1176 = vpop.f32.mrf.mxu0
    %v1177 = vadd.f32 %v992, %v1176
    %v1178 = vpop.f32.mrf.mxu0
    %v1179 = vpop.f32.mrf.mxu0
    %v1180 = vpop.f32.mrf.mxu0
    %1181 = vdwg.mxu0
    %v1182 = vpack.c.bf16 %v1131, %v1131
    %1184 = vrot.lane.b32.xlu0 %v1182, 32
    %v1185 = vpop.permute.xlu0 %1184
    %v1187 = vsel %vm94, %v1185, 0
    %1189 = vmatprep.subr.bf16.mxu0 0
    %1190 = vmatpush1.bf16.msra.mxu0 0
    %1191 = vmatprep.subr.bf16.mxu0 0
    %1192 = vmatpush1.bf16.msra.mxu0 0
    %1193 = vmatprep.subr.bf16.mxu0 0
    %1194 = vmatpush1.bf16.msra.mxu0 0
    %1195 = vmatprep.subr.bf16.mxu0 0
    %1196 = vmatpush1.bf16.msra.mxu0 0
    %1197 = vmatprep.subr.bf16.mxu0 0
    %1198 = vmatpush1.bf16.msra.mxu0 0
    %1199 = vmatprep.subr.bf16.mxu0 0
    %1200 = vmatpush1.bf16.msra.mxu0 0
    %1201 = vmatprep.subr.bf16.mxu0 0
    %1202 = vmatpush1.bf16.msra.mxu0 %v1059
    %1203 = vmatprep.subr.bf16.mxu0 0
    %1204 = vmatpush1.bf16.msra.mxu0 %v1058
    %1205 = vmatprep.subr.bf16.mxu0 0
    %1206 = vmatpush2.bf16.msra.mxu0 0
    %1207 = vmatprep.subr.bf16.mxu0 0
    %1208 = vmatpush2.bf16.msra.mxu0 0
    %1209 = vmatprep.subr.bf16.mxu0 0
    %1210 = vmatpush2.bf16.msra.mxu0 0
    %1211 = vmatprep.subr.bf16.mxu0 0
    %1212 = vmatpush2.bf16.msra.mxu0 0
    %1213 = vmatprep.subr.bf16.mxu0 0
    %1214 = vmatpush2.bf16.msra.mxu0 0
    %1215 = vmatprep.subr.bf16.mxu0 0
    %1216 = vmatpush2.bf16.msra.mxu0 0
    %1217 = vmatprep.subr.bf16.mxu0 0
    %1218 = vmatpush2.bf16.msra.mxu0 0
    %1219 = vmatprep.subr.bf16.mxu0 0
    %1220 = vmatpush2.bf16.msra.mxu0 0
    %1221 = vmatprep.mubr.bf16.mxu0 0
    %1222 = vmatmul.mubr.bf16.gmra.mxu0 %v1187
    %v1223 = vpop.f32.mrf.mxu0
    %v1224 = vadd.f32 0.0, %v1223
    %v1225 = vpop.f32.mrf.mxu0
    %v1226 = vpop.f32.mrf.mxu0
    %v1227 = vpop.f32.mrf.mxu0
    %1228 = vdwg.mxu0
    %v1229 = vadd.f32 %v1177, %v1224
    %v1230 = vmul.f32 %v1229, 0.5
    %v1231 = vtanh.pop %v1230
    %v1232 = vmul.f32 %v1231, 0.5
    %v1233 = vadd.f32 %v1232, 0.5
    %v1234 = vtanh.pop %v1229
    %v1235 = vmul.f32 %v1233, %v1125
    %1237 = vrot.lane.b32.xlu0 %v1234, 64
    %v1238 = vpop.permute.xlu0 %1237
    %v1240 = vmul.f32 %v1233, %v1238
    %1242 = vrot.lane.b32.xlu0 %v1240, 32
    %v1243 = vpop.permute.xlu0 %1242
    %v1245 = vadd.f32 %v1235, %v1243
    %v1246 = vtanh.pop %v1245
    %1248 = vrot.lane.b32.xlu0 %v1246, 64
    %v1249 = vpop.permute.xlu0 %1248
    %v1251 = vmul.f32 %v1233, %v1249
    %1253 = vrot.lane.b32.xlu0 %v1251, 32
    %v1254 = vpop.permute.xlu0 %1253
    %s1256 = scalar_lea.vmem [#allocation11], 2
    %1257 = vst.msk [vmem:[%s1256] sm:$0x3] %vm183, %v1254
    %v1258 = vld [vmem:[%s355] sm:$0x3]
    %v1259 = vpack.c.bf16 %v1258, %v1258
    %v1261 = vsel %vm94, %v1259, 0
    %1263 = vmatprep.subr.bf16.mxu0 0
    %1264 = vmatpush1.bf16.msra.mxu0 0
    %1265 = vmatprep.subr.bf16.mxu0 0
    %1266 = vmatpush1.bf16.msra.mxu0 0
    %1267 = vmatprep.subr.bf16.mxu0 0
    %1268 = vmatpush1.bf16.msra.mxu0 0
    %1269 = vmatprep.subr.bf16.mxu0 0
    %1270 = vmatpush1.bf16.msra.mxu0 0
    %1271 = vmatprep.subr.bf16.mxu0 0
    %1272 = vmatpush1.bf16.msra.mxu0 0
    %1273 = vmatprep.subr.bf16.mxu0 0
    %1274 = vmatpush1.bf16.msra.mxu0 0
    %1275 = vmatprep.subr.bf16.mxu0 0
    %1276 = vmatpush1.bf16.msra.mxu0 %v1003
    %1277 = vmatprep.subr.bf16.mxu0 0
    %1278 = vmatpush1.bf16.msra.mxu0 %v1002
    %1279 = vmatprep.subr.bf16.mxu0 0
    %1280 = vmatpush2.bf16.msra.mxu0 0
    %1281 = vmatprep.subr.bf16.mxu0 0
    %1282 = vmatpush2.bf16.msra.mxu0 0
    %1283 = vmatprep.subr.bf16.mxu0 0
    %1284 = vmatpush2.bf16.msra.mxu0 0
    %1285 = vmatprep.subr.bf16.mxu0 0
    %1286 = vmatpush2.bf16.msra.mxu0 0
    %1287 = vmatprep.subr.bf16.mxu0 0
    %1288 = vmatpush2.bf16.msra.mxu0 0
    %1289 = vmatprep.subr.bf16.mxu0 0
    %1290 = vmatpush2.bf16.msra.mxu0 0
    %1291 = vmatprep.subr.bf16.mxu0 0
    %1292 = vmatpush2.bf16.msra.mxu0 0
    %1293 = vmatprep.subr.bf16.mxu0 0
    %1294 = vmatpush2.bf16.msra.mxu0 0
    %1295 = vmatprep.mubr.bf16.mxu0 0
    %1296 = vmatmul.mubr.bf16.gmra.mxu0 %v1261
    %v1297 = vpop.f32.mrf.mxu0
    %v1298 = vadd.f32 %v992, %v1297
    %v1299 = vpop.f32.mrf.mxu0
    %v1300 = vpop.f32.mrf.mxu0
    %v1301 = vpop.f32.mrf.mxu0
    %1302 = vdwg.mxu0
    %v1303 = vpack.c.bf16 %v1251, %v1251
    %1305 = vrot.lane.b32.xlu0 %v1303, 32
    %v1306 = vpop.permute.xlu0 %1305
    %v1308 = vsel %vm94, %v1306, 0
    %1310 = vmatprep.subr.bf16.mxu0 0
    %1311 = vmatpush1.bf16.msra.mxu0 0
    %1312 = vmatprep.subr.bf16.mxu0 0
    %1313 = vmatpush1.bf16.msra.mxu0 0
    %1314 = vmatprep.subr.bf16.mxu0 0
    %1315 = vmatpush1.bf16.msra.mxu0 0
    %1316 = vmatprep.subr.bf16.mxu0 0
    %1317 = vmatpush1.bf16.msra.mxu0 0
    %1318 = vmatprep.subr.bf16.mxu0 0
    %1319 = vmatpush1.bf16.msra.mxu0 0
    %1320 = vmatprep.subr.bf16.mxu0 0
    %1321 = vmatpush1.bf16.msra.mxu0 0
    %1322 = vmatprep.subr.bf16.mxu0 0
    %1323 = vmatpush1.bf16.msra.mxu0 %v1059
    %1324 = vmatprep.subr.bf16.mxu0 0
    %1325 = vmatpush1.bf16.msra.mxu0 %v1058
    %1326 = vmatprep.subr.bf16.mxu0 0
    %1327 = vmatpush2.bf16.msra.mxu0 0
    %1328 = vmatprep.subr.bf16.mxu0 0
    %1329 = vmatpush2.bf16.msra.mxu0 0
    %1330 = vmatprep.subr.bf16.mxu0 0
    %1331 = vmatpush2.bf16.msra.mxu0 0
    %1332 = vmatprep.subr.bf16.mxu0 0
    %1333 = vmatpush2.bf16.msra.mxu0 0
    %1334 = vmatprep.subr.bf16.mxu0 0
    %1335 = vmatpush2.bf16.msra.mxu0 0
    %1336 = vmatprep.subr.bf16.mxu0 0
    %1337 = vmatpush2.bf16.msra.mxu0 0
    %1338 = vmatprep.subr.bf16.mxu0 0
    %1339 = vmatpush2.bf16.msra.mxu0 0
    %1340 = vmatprep.subr.bf16.mxu0 0
    %1341 = vmatpush2.bf16.msra.mxu0 0
    %1342 = vmatprep.mubr.bf16.mxu0 0
    %1343 = vmatmul.mubr.bf16.gmra.mxu0 %v1308
    %v1344 = vpop.f32.mrf.mxu0
    %v1345 = vadd.f32 0.0, %v1344
    %v1346 = vpop.f32.mrf.mxu0
    %v1347 = vpop.f32.mrf.mxu0
    %v1348 = vpop.f32.mrf.mxu0
    %1349 = vdwg.mxu0
    %v1350 = vadd.f32 %v1298, %v1345
    %v1351 = vmul.f32 %v1350, 0.5
    %v1352 = vtanh.pop %v1351
    %v1353 = vmul.f32 %v1352, 0.5
    %v1354 = vadd.f32 %v1353, 0.5
    %v1355 = vtanh.pop %v1350
    %v1356 = vmul.f32 %v1354, %v1245
    %1358 = vrot.lane.b32.xlu0 %v1355, 64
    %v1359 = vpop.permute.xlu0 %1358
    %v1361 = vmul.f32 %v1354, %v1359
    %1363 = vrot.lane.b32.xlu0 %v1361, 32
    %v1364 = vpop.permute.xlu0 %1363
    %v1366 = vadd.f32 %v1356, %v1364
    %v1367 = vtanh.pop %v1366
    %1369 = vrot.lane.b32.xlu0 %v1367, 64
    %v1370 = vpop.permute.xlu0 %1369
    %v1372 = vmul.f32 %v1354, %v1370
    %1374 = vrot.lane.b32.xlu0 %v1372, 32
    %v1375 = vpop.permute.xlu0 %1374
    %s1377 = scalar_lea.vmem [#allocation11], 4
    %1378 = vst.msk [vmem:[%s1377] sm:$0x3] %vm183, %v1375
    %v1379 = vld [vmem:[%s441] sm:$0x3]
    %v1380 = vpack.c.bf16 %v1379, %v1379
    %v1382 = vsel %vm94, %v1380, 0
    %1384 = vmatprep.subr.bf16.mxu0 0
    %1385 = vmatpush1.bf16.msra.mxu0 0
    %1386 = vmatprep.subr.bf16.mxu0 0
    %1387 = vmatpush1.bf16.msra.mxu0 0
    %1388 = vmatprep.subr.bf16.mxu0 0
    %1389 = vmatpush1.bf16.msra.mxu0 0
    %1390 = vmatprep.subr.bf16.mxu0 0
    %1391 = vmatpush1.bf16.msra.mxu0 0
    %1392 = vmatprep.subr.bf16.mxu0 0
    %1393 = vmatpush1.bf16.msra.mxu0 0
    %1394 = vmatprep.subr.bf16.mxu0 0
    %1395 = vmatpush1.bf16.msra.mxu0 0
    %1396 = vmatprep.subr.bf16.mxu0 0
    %1397 = vmatpush1.bf16.msra.mxu0 %v1003
    %1398 = vmatprep.subr.bf16.mxu0 0
    %1399 = vmatpush1.bf16.msra.mxu0 %v1002
    %1400 = vmatprep.subr.bf16.mxu0 0
    %1401 = vmatpush2.bf16.msra.mxu0 0
    %1402 = vmatprep.subr.bf16.mxu0 0
    %1403 = vmatpush2.bf16.msra.mxu0 0
    %1404 = vmatprep.subr.bf16.mxu0 0
    %1405 = vmatpush2.bf16.msra.mxu0 0
    %1406 = vmatprep.subr.bf16.mxu0 0
    %1407 = vmatpush2.bf16.msra.mxu0 0
    %1408 = vmatprep.subr.bf16.mxu0 0
    %1409 = vmatpush2.bf16.msra.mxu0 0
    %1410 = vmatprep.subr.bf16.mxu0 0
    %1411 = vmatpush2.bf16.msra.mxu0 0
    %1412 = vmatprep.subr.bf16.mxu0 0
    %1413 = vmatpush2.bf16.msra.mxu0 0
    %1414 = vmatprep.subr.bf16.mxu0 0
    %1415 = vmatpush2.bf16.msra.mxu0 0
    %1416 = vmatprep.mubr.bf16.mxu0 0
    %1417 = vmatmul.mubr.bf16.gmra.mxu0 %v1382
    %v1418 = vpop.f32.mrf.mxu0
    %v1419 = vadd.f32 %v992, %v1418
    %v1420 = vpop.f32.mrf.mxu0
    %v1421 = vpop.f32.mrf.mxu0
    %v1422 = vpop.f32.mrf.mxu0
    %1423 = vdwg.mxu0
    %v1424 = vpack.c.bf16 %v1372, %v1372
    %1426 = vrot.lane.b32.xlu0 %v1424, 32
    %v1427 = vpop.permute.xlu0 %1426
    %v1429 = vsel %vm94, %v1427, 0
    %1431 = vmatprep.subr.bf16.mxu0 0
    %1432 = vmatpush1.bf16.msra.mxu0 0
    %1433 = vmatprep.subr.bf16.mxu0 0
    %1434 = vmatpush1.bf16.msra.mxu0 0
    %1435 = vmatprep.subr.bf16.mxu0 0
    %1436 = vmatpush1.bf16.msra.mxu0 0
    %1437 = vmatprep.subr.bf16.mxu0 0
    %1438 = vmatpush1.bf16.msra.mxu0 0
    %1439 = vmatprep.subr.bf16.mxu0 0
    %1440 = vmatpush1.bf16.msra.mxu0 0
    %1441 = vmatprep.subr.bf16.mxu0 0
    %1442 = vmatpush1.bf16.msra.mxu0 0
    %1443 = vmatprep.subr.bf16.mxu0 0
    %1444 = vmatpush1.bf16.msra.mxu0 %v1059
    %1445 = vmatprep.subr.bf16.mxu0 0
    %1446 = vmatpush1.bf16.msra.mxu0 %v1058
    %1447 = vmatprep.subr.bf16.mxu0 0
    %1448 = vmatpush2.bf16.msra.mxu0 0
    %1449 = vmatprep.subr.bf16.mxu0 0
    %1450 = vmatpush2.bf16.msra.mxu0 0
    %1451 = vmatprep.subr.bf16.mxu0 0
    %1452 = vmatpush2.bf16.msra.mxu0 0
    %1453 = vmatprep.subr.bf16.mxu0 0
    %1454 = vmatpush2.bf16.msra.mxu0 0
    %1455 = vmatprep.subr.bf16.mxu0 0
    %1456 = vmatpush2.bf16.msra.mxu0 0
    %1457 = vmatprep.subr.bf16.mxu0 0
    %1458 = vmatpush2.bf16.msra.mxu0 0
    %1459 = vmatprep.subr.bf16.mxu0 0
    %1460 = vmatpush2.bf16.msra.mxu0 0
    %1461 = vmatprep.subr.bf16.mxu0 0
    %1462 = vmatpush2.bf16.msra.mxu0 0
    %1463 = vmatprep.mubr.bf16.mxu0 0
    %1464 = vmatmul.mubr.bf16.gmra.mxu0 %v1429
    %v1465 = vpop.f32.mrf.mxu0
    %v1466 = vadd.f32 0.0, %v1465
    %v1467 = vpop.f32.mrf.mxu0
    %v1468 = vpop.f32.mrf.mxu0
    %v1469 = vpop.f32.mrf.mxu0
    %1470 = vdwg.mxu0
    %v1471 = vadd.f32 %v1419, %v1466
    %v1472 = vmul.f32 %v1471, 0.5
    %v1473 = vtanh.pop %v1472
    %v1474 = vmul.f32 %v1473, 0.5
    %v1475 = vadd.f32 %v1474, 0.5
    %v1476 = vtanh.pop %v1471
    %v1477 = vmul.f32 %v1475, %v1366
    %1479 = vrot.lane.b32.xlu0 %v1476, 64
    %v1480 = vpop.permute.xlu0 %1479
    %v1482 = vmul.f32 %v1475, %v1480
    %1484 = vrot.lane.b32.xlu0 %v1482, 32
    %v1485 = vpop.permute.xlu0 %1484
    %v1487 = vadd.f32 %v1477, %v1485
    %v1488 = vtanh.pop %v1487
    %1490 = vrot.lane.b32.xlu0 %v1488, 64
    %v1491 = vpop.permute.xlu0 %1490
    %v1493 = vmul.f32 %v1475, %v1491
    %1495 = vrot.lane.b32.xlu0 %v1493, 32
    %v1496 = vpop.permute.xlu0 %1495
    %s1498 = scalar_lea.vmem [#allocation11], 6
    %1499 = vst.msk [vmem:[%s1498] sm:$0x3] %vm183, %v1496
    %v1500 = vld [vmem:[%s527] sm:$0x3]
    %v1501 = vpack.c.bf16 %v1500, %v1500
    %v1503 = vsel %vm94, %v1501, 0
    %1505 = vmatprep.subr.bf16.mxu0 0
    %1506 = vmatpush1.bf16.msra.mxu0 0
    %1507 = vmatprep.subr.bf16.mxu0 0
    %1508 = vmatpush1.bf16.msra.mxu0 0
    %1509 = vmatprep.subr.bf16.mxu0 0
    %1510 = vmatpush1.bf16.msra.mxu0 0
    %1511 = vmatprep.subr.bf16.mxu0 0
    %1512 = vmatpush1.bf16.msra.mxu0 0
    %1513 = vmatprep.subr.bf16.mxu0 0
    %1514 = vmatpush1.bf16.msra.mxu0 0
    %1515 = vmatprep.subr.bf16.mxu0 0
    %1516 = vmatpush1.bf16.msra.mxu0 0
    %1517 = vmatprep.subr.bf16.mxu0 0
    %1518 = vmatpush1.bf16.msra.mxu0 %v1003
    %1519 = vmatprep.subr.bf16.mxu0 0
    %1520 = vmatpush1.bf16.msra.mxu0 %v1002
    %1521 = vmatprep.subr.bf16.mxu0 0
    %1522 = vmatpush2.bf16.msra.mxu0 0
    %1523 = vmatprep.subr.bf16.mxu0 0
    %1524 = vmatpush2.bf16.msra.mxu0 0
    %1525 = vmatprep.subr.bf16.mxu0 0
    %1526 = vmatpush2.bf16.msra.mxu0 0
    %1527 = vmatprep.subr.bf16.mxu0 0
    %1528 = vmatpush2.bf16.msra.mxu0 0
    %1529 = vmatprep.subr.bf16.mxu0 0
    %1530 = vmatpush2.bf16.msra.mxu0 0
    %1531 = vmatprep.subr.bf16.mxu0 0
    %1532 = vmatpush2.bf16.msra.mxu0 0
    %1533 = vmatprep.subr.bf16.mxu0 0
    %1534 = vmatpush2.bf16.msra.mxu0 0
    %1535 = vmatprep.subr.bf16.mxu0 0
    %1536 = vmatpush2.bf16.msra.mxu0 0
    %1537 = vmatprep.mubr.bf16.mxu0 0
    %1538 = vmatmul.mubr.bf16.gmra.mxu0 %v1503
    %v1539 = vpop.f32.mrf.mxu0
    %v1540 = vadd.f32 %v992, %v1539
    %v1541 = vpop.f32.mrf.mxu0
    %v1542 = vpop.f32.mrf.mxu0
    %v1543 = vpop.f32.mrf.mxu0
    %1544 = vdwg.mxu0
    %v1545 = vpack.c.bf16 %v1493, %v1493
    %1547 = vrot.lane.b32.xlu0 %v1545, 32
    %v1548 = vpop.permute.xlu0 %1547
    %v1550 = vsel %vm94, %v1548, 0
    %1552 = vmatprep.subr.bf16.mxu0 0
    %1553 = vmatpush1.bf16.msra.mxu0 0
    %1554 = vmatprep.subr.bf16.mxu0 0
    %1555 = vmatpush1.bf16.msra.mxu0 0
    %1556 = vmatprep.subr.bf16.mxu0 0
    %1557 = vmatpush1.bf16.msra.mxu0 0
    %1558 = vmatprep.subr.bf16.mxu0 0
    %1559 = vmatpush1.bf16.msra.mxu0 0
    %1560 = vmatprep.subr.bf16.mxu0 0
    %1561 = vmatpush1.bf16.msra.mxu0 0
    %1562 = vmatprep.subr.bf16.mxu0 0
    %1563 = vmatpush1.bf16.msra.mxu0 0
    %1564 = vmatprep.subr.bf16.mxu0 0
    %1565 = vmatpush1.bf16.msra.mxu0 %v1059
    %1566 = vmatprep.subr.bf16.mxu0 0
    %1567 = vmatpush1.bf16.msra.mxu0 %v1058
    %1568 = vmatprep.subr.bf16.mxu0 0
    %1569 = vmatpush2.bf16.msra.mxu0 0
    %1570 = vmatprep.subr.bf16.mxu0 0
    %1571 = vmatpush2.bf16.msra.mxu0 0
    %1572 = vmatprep.subr.bf16.mxu0 0
    %1573 = vmatpush2.bf16.msra.mxu0 0
    %1574 = vmatprep.subr.bf16.mxu0 0
    %1575 = vmatpush2.bf16.msra.mxu0 0
    %1576 = vmatprep.subr.bf16.mxu0 0
    %1577 = vmatpush2.bf16.msra.mxu0 0
    %1578 = vmatprep.subr.bf16.mxu0 0
    %1579 = vmatpush2.bf16.msra.mxu0 0
    %1580 = vmatprep.subr.bf16.mxu0 0
    %1581 = vmatpush2.bf16.msra.mxu0 0
    %1582 = vmatprep.subr.bf16.mxu0 0
    %1583 = vmatpush2.bf16.msra.mxu0 0
    %1584 = vmatprep.mubr.bf16.mxu0 0
    %1585 = vmatmul.mubr.bf16.gmra.mxu0 %v1550
    %v1586 = vpop.f32.mrf.mxu0
    %v1587 = vadd.f32 0.0, %v1586
    %v1588 = vpop.f32.mrf.mxu0
    %v1589 = vpop.f32.mrf.mxu0
    %v1590 = vpop.f32.mrf.mxu0
    %1591 = vdwg.mxu0
    %v1592 = vadd.f32 %v1540, %v1587
    %v1593 = vmul.f32 %v1592, 0.5
    %v1594 = vtanh.pop %v1593
    %v1595 = vmul.f32 %v1594, 0.5
    %v1596 = vadd.f32 %v1595, 0.5
    %v1597 = vtanh.pop %v1592
    %v1598 = vmul.f32 %v1596, %v1487
    %1600 = vrot.lane.b32.xlu0 %v1597, 64
    %v1601 = vpop.permute.xlu0 %1600
    %v1603 = vmul.f32 %v1596, %v1601
    %1605 = vrot.lane.b32.xlu0 %v1603, 32
    %v1606 = vpop.permute.xlu0 %1605
    %v1608 = vadd.f32 %v1598, %v1606
    %v1609 = vtanh.pop %v1608
    %1611 = vrot.lane.b32.xlu0 %v1609, 64
    %v1612 = vpop.permute.xlu0 %1611
    %v1614 = vmul.f32 %v1596, %v1612
    %1616 = vrot.lane.b32.xlu0 %v1614, 32
    %v1617 = vpop.permute.xlu0 %1616
    %s1619 = scalar_lea.vmem [#allocation11], 8
    %1620 = vst.msk [vmem:[%s1619] sm:$0x3] %vm183, %v1617
    %v1621 = vld [vmem:[%s613] sm:$0x3]
    %v1622 = vpack.c.bf16 %v1621, %v1621
    %v1624 = vsel %vm94, %v1622, 0
    %1626 = vmatprep.subr.bf16.mxu0 0
    %1627 = vmatpush1.bf16.msra.mxu0 0
    %1628 = vmatprep.subr.bf16.mxu0 0
    %1629 = vmatpush1.bf16.msra.mxu0 0
    %1630 = vmatprep.subr.bf16.mxu0 0
    %1631 = vmatpush1.bf16.msra.mxu0 0
    %1632 = vmatprep.subr.bf16.mxu0 0
    %1633 = vmatpush1.bf16.msra.mxu0 0
    %1634 = vmatprep.subr.bf16.mxu0 0
    %1635 = vmatpush1.bf16.msra.mxu0 0
    %1636 = vmatprep.subr.bf16.mxu0 0
    %1637 = vmatpush1.bf16.msra.mxu0 0
    %1638 = vmatprep.subr.bf16.mxu0 0
    %1639 = vmatpush1.bf16.msra.mxu0 %v1003
    %1640 = vmatprep.subr.bf16.mxu0 0
    %1641 = vmatpush1.bf16.msra.mxu0 %v1002
    %1642 = vmatprep.subr.bf16.mxu0 0
    %1643 = vmatpush2.bf16.msra.mxu0 0
    %1644 = vmatprep.subr.bf16.mxu0 0
    %1645 = vmatpush2.bf16.msra.mxu0 0
    %1646 = vmatprep.subr.bf16.mxu0 0
    %1647 = vmatpush2.bf16.msra.mxu0 0
    %1648 = vmatprep.subr.bf16.mxu0 0
    %1649 = vmatpush2.bf16.msra.mxu0 0
    %1650 = vmatprep.subr.bf16.mxu0 0
    %1651 = vmatpush2.bf16.msra.mxu0 0
    %1652 = vmatprep.subr.bf16.mxu0 0
    %1653 = vmatpush2.bf16.msra.mxu0 0
    %1654 = vmatprep.subr.bf16.mxu0 0
    %1655 = vmatpush2.bf16.msra.mxu0 0
    %1656 = vmatprep.subr.bf16.mxu0 0
    %1657 = vmatpush2.bf16.msra.mxu0 0
    %1658 = vmatprep.mubr.bf16.mxu0 0
    %1659 = vmatmul.mubr.bf16.gmra.mxu0 %v1624
    %v1660 = vpop.f32.mrf.mxu0
    %v1661 = vadd.f32 %v992, %v1660
    %v1662 = vpop.f32.mrf.mxu0
    %v1663 = vpop.f32.mrf.mxu0
    %v1664 = vpop.f32.mrf.mxu0
    %1665 = vdwg.mxu0
    %v1666 = vpack.c.bf16 %v1614, %v1614
    %1668 = vrot.lane.b32.xlu0 %v1666, 32
    %v1669 = vpop.permute.xlu0 %1668
    %v1671 = vsel %vm94, %v1669, 0
    %1673 = vmatprep.subr.bf16.mxu0 0
    %1674 = vmatpush1.bf16.msra.mxu0 0
    %1675 = vmatprep.subr.bf16.mxu0 0
    %1676 = vmatpush1.bf16.msra.mxu0 0
    %1677 = vmatprep.subr.bf16.mxu0 0
    %1678 = vmatpush1.bf16.msra.mxu0 0
    %1679 = vmatprep.subr.bf16.mxu0 0
    %1680 = vmatpush1.bf16.msra.mxu0 0
    %1681 = vmatprep.subr.bf16.mxu0 0
    %1682 = vmatpush1.bf16.msra.mxu0 0
    %1683 = vmatprep.subr.bf16.mxu0 0
    %1684 = vmatpush1.bf16.msra.mxu0 0
    %1685 = vmatprep.subr.bf16.mxu0 0
    %1686 = vmatpush1.bf16.msra.mxu0 %v1059
    %1687 = vmatprep.subr.bf16.mxu0 0
    %1688 = vmatpush1.bf16.msra.mxu0 %v1058
    %1689 = vmatprep.subr.bf16.mxu0 0
    %1690 = vmatpush2.bf16.msra.mxu0 0
    %1691 = vmatprep.subr.bf16.mxu0 0
    %1692 = vmatpush2.bf16.msra.mxu0 0
    %1693 = vmatprep.subr.bf16.mxu0 0
    %1694 = vmatpush2.bf16.msra.mxu0 0
    %1695 = vmatprep.subr.bf16.mxu0 0
    %1696 = vmatpush2.bf16.msra.mxu0 0
    %1697 = vmatprep.subr.bf16.mxu0 0
    %1698 = vmatpush2.bf16.msra.mxu0 0
    %1699 = vmatprep.subr.bf16.mxu0 0
    %1700 = vmatpush2.bf16.msra.mxu0 0
    %1701 = vmatprep.subr.bf16.mxu0 0
    %1702 = vmatpush2.bf16.msra.mxu0 0
    %1703 = vmatprep.subr.bf16.mxu0 0
    %1704 = vmatpush2.bf16.msra.mxu0 0
    %1705 = vmatprep.mubr.bf16.mxu0 0
    %1706 = vmatmul.mubr.bf16.gmra.mxu0 %v1671
    %v1707 = vpop.f32.mrf.mxu0
    %v1708 = vadd.f32 0.0, %v1707
    %v1709 = vpop.f32.mrf.mxu0
    %v1710 = vpop.f32.mrf.mxu0
    %v1711 = vpop.f32.mrf.mxu0
    %1712 = vdwg.mxu0
    %v1713 = vadd.f32 %v1661, %v1708
    %v1714 = vmul.f32 %v1713, 0.5
    %v1715 = vtanh.pop %v1714
    %v1716 = vmul.f32 %v1715, 0.5
    %v1717 = vadd.f32 %v1716, 0.5
    %v1718 = vtanh.pop %v1713
    %v1719 = vmul.f32 %v1717, %v1608
    %1721 = vrot.lane.b32.xlu0 %v1718, 64
    %v1722 = vpop.permute.xlu0 %1721
    %v1724 = vmul.f32 %v1717, %v1722
    %1726 = vrot.lane.b32.xlu0 %v1724, 32
    %v1727 = vpop.permute.xlu0 %1726
    %v1729 = vadd.f32 %v1719, %v1727
    %v1730 = vtanh.pop %v1729
    %1732 = vrot.lane.b32.xlu0 %v1730, 64
    %v1733 = vpop.permute.xlu0 %1732
    %v1735 = vmul.f32 %v1717, %v1733
    %1737 = vrot.lane.b32.xlu0 %v1735, 32
    %v1738 = vpop.permute.xlu0 %1737
    %s1740 = scalar_lea.vmem [#allocation11], 10
    %1741 = vst.msk [vmem:[%s1740] sm:$0x3] %vm183, %v1738
    %v1742 = vld [vmem:[%s699] sm:$0x3]
    %v1743 = vpack.c.bf16 %v1742, %v1742
    %v1745 = vsel %vm94, %v1743, 0
    %1747 = vmatprep.subr.bf16.mxu0 0
    %1748 = vmatpush1.bf16.msra.mxu0 0
    %1749 = vmatprep.subr.bf16.mxu0 0
    %1750 = vmatpush1.bf16.msra.mxu0 0
    %1751 = vmatprep.subr.bf16.mxu0 0
    %1752 = vmatpush1.bf16.msra.mxu0 0
    %1753 = vmatprep.subr.bf16.mxu0 0
    %1754 = vmatpush1.bf16.msra.mxu0 0
    %1755 = vmatprep.subr.bf16.mxu0 0
    %1756 = vmatpush1.bf16.msra.mxu0 0
    %1757 = vmatprep.subr.bf16.mxu0 0
    %1758 = vmatpush1.bf16.msra.mxu0 0
    %1759 = vmatprep.subr.bf16.mxu0 0
    %1760 = vmatpush1.bf16.msra.mxu0 %v1003
    %1761 = vmatprep.subr.bf16.mxu0 0
    %1762 = vmatpush1.bf16.msra.mxu0 %v1002
    %1763 = vmatprep.subr.bf16.mxu0 0
    %1764 = vmatpush2.bf16.msra.mxu0 0
    %1765 = vmatprep.subr.bf16.mxu0 0
    %1766 = vmatpush2.bf16.msra.mxu0 0
    %1767 = vmatprep.subr.bf16.mxu0 0
    %1768 = vmatpush2.bf16.msra.mxu0 0
    %1769 = vmatprep.subr.bf16.mxu0 0
    %1770 = vmatpush2.bf16.msra.mxu0 0
    %1771 = vmatprep.subr.bf16.mxu0 0
    %1772 = vmatpush2.bf16.msra.mxu0 0
    %1773 = vmatprep.subr.bf16.mxu0 0
    %1774 = vmatpush2.bf16.msra.mxu0 0
    %1775 = vmatprep.subr.bf16.mxu0 0
    %1776 = vmatpush2.bf16.msra.mxu0 0
    %1777 = vmatprep.subr.bf16.mxu0 0
    %1778 = vmatpush2.bf16.msra.mxu0 0
    %1779 = vmatprep.mubr.bf16.mxu0 0
    %1780 = vmatmul.mubr.bf16.gmra.mxu0 %v1745
    %v1781 = vpop.f32.mrf.mxu0
    %v1782 = vadd.f32 %v992, %v1781
    %v1783 = vpop.f32.mrf.mxu0
    %v1784 = vpop.f32.mrf.mxu0
    %v1785 = vpop.f32.mrf.mxu0
    %1786 = vdwg.mxu0
    %v1787 = vpack.c.bf16 %v1735, %v1735
    %1789 = vrot.lane.b32.xlu0 %v1787, 32
    %v1790 = vpop.permute.xlu0 %1789
    %v1792 = vsel %vm94, %v1790, 0
    %1794 = vmatprep.subr.bf16.mxu0 0
    %1795 = vmatpush1.bf16.msra.mxu0 0
    %1796 = vmatprep.subr.bf16.mxu0 0
    %1797 = vmatpush1.bf16.msra.mxu0 0
    %1798 = vmatprep.subr.bf16.mxu0 0
    %1799 = vmatpush1.bf16.msra.mxu0 0
    %1800 = vmatprep.subr.bf16.mxu0 0
    %1801 = vmatpush1.bf16.msra.mxu0 0
    %1802 = vmatprep.subr.bf16.mxu0 0
    %1803 = vmatpush1.bf16.msra.mxu0 0
    %1804 = vmatprep.subr.bf16.mxu0 0
    %1805 = vmatpush1.bf16.msra.mxu0 0
    %1806 = vmatprep.subr.bf16.mxu0 0
    %1807 = vmatpush1.bf16.msra.mxu0 %v1059
    %1808 = vmatprep.subr.bf16.mxu0 0
    %1809 = vmatpush1.bf16.msra.mxu0 %v1058
    %1810 = vmatprep.subr.bf16.mxu0 0
    %1811 = vmatpush2.bf16.msra.mxu0 0
    %1812 = vmatprep.subr.bf16.mxu0 0
    %1813 = vmatpush2.bf16.msra.mxu0 0
    %1814 = vmatprep.subr.bf16.mxu0 0
    %1815 = vmatpush2.bf16.msra.mxu0 0
    %1816 = vmatprep.subr.bf16.mxu0 0
    %1817 = vmatpush2.bf16.msra.mxu0 0
    %1818 = vmatprep.subr.bf16.mxu0 0
    %1819 = vmatpush2.bf16.msra.mxu0 0
    %1820 = vmatprep.subr.bf16.mxu0 0
    %1821 = vmatpush2.bf16.msra.mxu0 0
    %1822 = vmatprep.subr.bf16.mxu0 0
    %1823 = vmatpush2.bf16.msra.mxu0 0
    %1824 = vmatprep.subr.bf16.mxu0 0
    %1825 = vmatpush2.bf16.msra.mxu0 0
    %1826 = vmatprep.mubr.bf16.mxu0 0
    %1827 = vmatmul.mubr.bf16.gmra.mxu0 %v1792
    %v1828 = vpop.f32.mrf.mxu0
    %v1829 = vadd.f32 0.0, %v1828
    %v1830 = vpop.f32.mrf.mxu0
    %v1831 = vpop.f32.mrf.mxu0
    %v1832 = vpop.f32.mrf.mxu0
    %1833 = vdwg.mxu0
    %v1834 = vadd.f32 %v1782, %v1829
    %v1835 = vmul.f32 %v1834, 0.5
    %v1836 = vtanh.pop %v1835
    %v1837 = vmul.f32 %v1836, 0.5
    %v1838 = vadd.f32 %v1837, 0.5
    %v1839 = vtanh.pop %v1834
    %v1840 = vmul.f32 %v1838, %v1729
    %1842 = vrot.lane.b32.xlu0 %v1839, 64
    %v1843 = vpop.permute.xlu0 %1842
    %v1845 = vmul.f32 %v1838, %v1843
    %1847 = vrot.lane.b32.xlu0 %v1845, 32
    %v1848 = vpop.permute.xlu0 %1847
    %v1850 = vadd.f32 %v1840, %v1848
    %v1851 = vtanh.pop %v1850
    %1853 = vrot.lane.b32.xlu0 %v1851, 64
    %v1854 = vpop.permute.xlu0 %1853
    %v1856 = vmul.f32 %v1838, %v1854
    %1858 = vrot.lane.b32.xlu0 %v1856, 32
    %v1859 = vpop.permute.xlu0 %1858
    %s1861 = scalar_lea.vmem [#allocation11], 12
    %1862 = vst.msk [vmem:[%s1861] sm:$0x3] %vm183, %v1859
    %v1863 = vld [vmem:[%s785] sm:$0x3]
    %v1864 = vpack.c.bf16 %v1863, %v1863
    %v1866 = vsel %vm94, %v1864, 0
    %1868 = vmatprep.subr.bf16.mxu0 0
    %1869 = vmatpush1.bf16.msra.mxu0 0
    %1870 = vmatprep.subr.bf16.mxu0 0
    %1871 = vmatpush1.bf16.msra.mxu0 0
    %1872 = vmatprep.subr.bf16.mxu0 0
    %1873 = vmatpush1.bf16.msra.mxu0 0
    %1874 = vmatprep.subr.bf16.mxu0 0
    %1875 = vmatpush1.bf16.msra.mxu0 0
    %1876 = vmatprep.subr.bf16.mxu0 0
    %1877 = vmatpush1.bf16.msra.mxu0 0
    %1878 = vmatprep.subr.bf16.mxu0 0
    %1879 = vmatpush1.bf16.msra.mxu0 0
    %1880 = vmatprep.subr.bf16.mxu0 0
    %1881 = vmatpush1.bf16.msra.mxu0 %v1003
    %1882 = vmatprep.subr.bf16.mxu0 0
    %1883 = vmatpush1.bf16.msra.mxu0 %v1002
    %1884 = vmatprep.subr.bf16.mxu0 0
    %1885 = vmatpush2.bf16.msra.mxu0 0
    %1886 = vmatprep.subr.bf16.mxu0 0
    %1887 = vmatpush2.bf16.msra.mxu0 0
    %1888 = vmatprep.subr.bf16.mxu0 0
    %1889 = vmatpush2.bf16.msra.mxu0 0
    %1890 = vmatprep.subr.bf16.mxu0 0
    %1891 = vmatpush2.bf16.msra.mxu0 0
    %1892 = vmatprep.subr.bf16.mxu0 0
    %1893 = vmatpush2.bf16.msra.mxu0 0
    %1894 = vmatprep.subr.bf16.mxu0 0
    %1895 = vmatpush2.bf16.msra.mxu0 0
    %1896 = vmatprep.subr.bf16.mxu0 0
    %1897 = vmatpush2.bf16.msra.mxu0 0
    %1898 = vmatprep.subr.bf16.mxu0 0
    %1899 = vmatpush2.bf16.msra.mxu0 0
    %1900 = vmatprep.mubr.bf16.mxu0 0
    %1901 = vmatmul.mubr.bf16.gmra.mxu0 %v1866
    %v1902 = vpop.f32.mrf.mxu0
    %v1903 = vadd.f32 %v992, %v1902
    %v1904 = vpop.f32.mrf.mxu0
    %v1905 = vpop.f32.mrf.mxu0
    %v1906 = vpop.f32.mrf.mxu0
    %1907 = vdwg.mxu0
    %v1908 = vpack.c.bf16 %v1856, %v1856
    %1910 = vrot.lane.b32.xlu0 %v1908, 32
    %v1911 = vpop.permute.xlu0 %1910
    %v1913 = vsel %vm94, %v1911, 0
    %1915 = vmatprep.subr.bf16.mxu0 0
    %1916 = vmatpush1.bf16.msra.mxu0 0
    %1917 = vmatprep.subr.bf16.mxu0 0
    %1918 = vmatpush1.bf16.msra.mxu0 0
    %1919 = vmatprep.subr.bf16.mxu0 0
    %1920 = vmatpush1.bf16.msra.mxu0 0
    %1921 = vmatprep.subr.bf16.mxu0 0
    %1922 = vmatpush1.bf16.msra.mxu0 0
    %1923 = vmatprep.subr.bf16.mxu0 0
    %1924 = vmatpush1.bf16.msra.mxu0 0
    %1925 = vmatprep.subr.bf16.mxu0 0
    %1926 = vmatpush1.bf16.msra.mxu0 0
    %1927 = vmatprep.subr.bf16.mxu0 0
    %1928 = vmatpush1.bf16.msra.mxu0 %v1059
    %1929 = vmatprep.subr.bf16.mxu0 0
    %1930 = vmatpush1.bf16.msra.mxu0 %v1058
    %1931 = vmatprep.subr.bf16.mxu0 0
    %1932 = vmatpush2.bf16.msra.mxu0 0
    %1933 = vmatprep.subr.bf16.mxu0 0
    %1934 = vmatpush2.bf16.msra.mxu0 0
    %1935 = vmatprep.subr.bf16.mxu0 0
    %1936 = vmatpush2.bf16.msra.mxu0 0
    %1937 = vmatprep.subr.bf16.mxu0 0
    %1938 = vmatpush2.bf16.msra.mxu0 0
    %1939 = vmatprep.subr.bf16.mxu0 0
    %1940 = vmatpush2.bf16.msra.mxu0 0
    %1941 = vmatprep.subr.bf16.mxu0 0
    %1942 = vmatpush2.bf16.msra.mxu0 0
    %1943 = vmatprep.subr.bf16.mxu0 0
    %1944 = vmatpush2.bf16.msra.mxu0 0
    %1945 = vmatprep.subr.bf16.mxu0 0
    %1946 = vmatpush2.bf16.msra.mxu0 0
    %1947 = vmatprep.mubr.bf16.mxu0 0
    %1948 = vmatmul.mubr.bf16.gmra.mxu0 %v1913
    %v1949 = vpop.f32.mrf.mxu0
    %v1950 = vadd.f32 0.0, %v1949
    %v1951 = vpop.f32.mrf.mxu0
    %v1952 = vpop.f32.mrf.mxu0
    %v1953 = vpop.f32.mrf.mxu0
    %1954 = vdwg.mxu0
    %v1955 = vadd.f32 %v1903, %v1950
    %v1956 = vmul.f32 %v1955, 0.5
    %v1957 = vtanh.pop %v1956
    %v1958 = vmul.f32 %v1957, 0.5
    %v1959 = vadd.f32 %v1958, 0.5
    %v1960 = vtanh.pop %v1955
    %v1961 = vmul.f32 %v1959, %v1850
    %1963 = vrot.lane.b32.xlu0 %v1960, 64
    %v1964 = vpop.permute.xlu0 %1963
    %v1966 = vmul.f32 %v1959, %v1964
    %1968 = vrot.lane.b32.xlu0 %v1966, 32
    %v1969 = vpop.permute.xlu0 %1968
    %v1971 = vadd.f32 %v1961, %v1969
    %v1972 = vtanh.pop %v1971
    %1974 = vrot.lane.b32.xlu0 %v1972, 64
    %v1975 = vpop.permute.xlu0 %1974
    %v1977 = vmul.f32 %v1959, %v1975
    %1979 = vrot.lane.b32.xlu0 %v1977, 32
    %v1980 = vpop.permute.xlu0 %1979
    %s1982 = scalar_lea.vmem [#allocation11], 14
    %1983 = vst.msk [vmem:[%s1982] sm:$0x3] %vm183, %v1980
    %v1984 = vld [vmem:[%s871] sm:$0x3]
    %v1985 = vpack.c.bf16 %v1984, %v1984
    %v1987 = vsel %vm94, %v1985, 0
    %1989 = vmatprep.subr.bf16.mxu0 0
    %1990 = vmatpush1.bf16.msra.mxu0 0
    %1991 = vmatprep.subr.bf16.mxu0 0
    %1992 = vmatpush1.bf16.msra.mxu0 0
    %1993 = vmatprep.subr.bf16.mxu0 0
    %1994 = vmatpush1.bf16.msra.mxu0 0
    %1995 = vmatprep.subr.bf16.mxu0 0
    %1996 = vmatpush1.bf16.msra.mxu0 0
    %1997 = vmatprep.subr.bf16.mxu0 0
    %1998 = vmatpush1.bf16.msra.mxu0 0
    %1999 = vmatprep.subr.bf16.mxu0 0
    %2000 = vmatpush1.bf16.msra.mxu0 0
    %2001 = vmatprep.subr.bf16.mxu0 0
    %2002 = vmatpush1.bf16.msra.mxu0 %v1003
    %2003 = vmatprep.subr.bf16.mxu0 0
    %2004 = vmatpush1.bf16.msra.mxu0 %v1002
    %2005 = vmatprep.subr.bf16.mxu0 0
    %2006 = vmatpush2.bf16.msra.mxu0 0
    %2007 = vmatprep.subr.bf16.mxu0 0
    %2008 = vmatpush2.bf16.msra.mxu0 0
    %2009 = vmatprep.subr.bf16.mxu0 0
    %2010 = vmatpush2.bf16.msra.mxu0 0
    %2011 = vmatprep.subr.bf16.mxu0 0
    %2012 = vmatpush2.bf16.msra.mxu0 0
    %2013 = vmatprep.subr.bf16.mxu0 0
    %2014 = vmatpush2.bf16.msra.mxu0 0
    %2015 = vmatprep.subr.bf16.mxu0 0
    %2016 = vmatpush2.bf16.msra.mxu0 0
    %2017 = vmatprep.subr.bf16.mxu0 0
    %2018 = vmatpush2.bf16.msra.mxu0 0
    %2019 = vmatprep.subr.bf16.mxu0 0
    %2020 = vmatpush2.bf16.msra.mxu0 0
    %2021 = vmatprep.mubr.bf16.mxu0 0
    %2022 = vmatmul.mubr.bf16.gmra.mxu0 %v1987
    %v2023 = vpop.f32.mrf.mxu0
    %v2024 = vadd.f32 %v992, %v2023
    %v2025 = vpop.f32.mrf.mxu0
    %v2026 = vpop.f32.mrf.mxu0
    %v2027 = vpop.f32.mrf.mxu0
    %2028 = vdwg.mxu0
    %v2029 = vpack.c.bf16 %v1977, %v1977
    %2031 = vrot.lane.b32.xlu0 %v2029, 32
    %v2032 = vpop.permute.xlu0 %2031
    %v2034 = vsel %vm94, %v2032, 0
    %2036 = vmatprep.subr.bf16.mxu0 0
    %2037 = vmatpush1.bf16.msra.mxu0 0
    %2038 = vmatprep.subr.bf16.mxu0 0
    %2039 = vmatpush1.bf16.msra.mxu0 0
    %2040 = vmatprep.subr.bf16.mxu0 0
    %2041 = vmatpush1.bf16.msra.mxu0 0
    %2042 = vmatprep.subr.bf16.mxu0 0
    %2043 = vmatpush1.bf16.msra.mxu0 0
    %2044 = vmatprep.subr.bf16.mxu0 0
    %2045 = vmatpush1.bf16.msra.mxu0 0
    %2046 = vmatprep.subr.bf16.mxu0 0
    %2047 = vmatpush1.bf16.msra.mxu0 0
    %2048 = vmatprep.subr.bf16.mxu0 0
    %2049 = vmatpush1.bf16.msra.mxu0 %v1059
    %2050 = vmatprep.subr.bf16.mxu0 0
    %2051 = vmatpush1.bf16.msra.mxu0 %v1058
    %2052 = vmatprep.subr.bf16.mxu0 0
    %2053 = vmatpush2.bf16.msra.mxu0 0
    %2054 = vmatprep.subr.bf16.mxu0 0
    %2055 = vmatpush2.bf16.msra.mxu0 0
    %2056 = vmatprep.subr.bf16.mxu0 0
    %2057 = vmatpush2.bf16.msra.mxu0 0
    %2058 = vmatprep.subr.bf16.mxu0 0
    %2059 = vmatpush2.bf16.msra.mxu0 0
    %2060 = vmatprep.subr.bf16.mxu0 0
    %2061 = vmatpush2.bf16.msra.mxu0 0
    %2062 = vmatprep.subr.bf16.mxu0 0
    %2063 = vmatpush2.bf16.msra.mxu0 0
    %2064 = vmatprep.subr.bf16.mxu0 0
    %2065 = vmatpush2.bf16.msra.mxu0 0
    %2066 = vmatprep.subr.bf16.mxu0 0
    %2067 = vmatpush2.bf16.msra.mxu0 0
    %2068 = vmatprep.mubr.bf16.mxu0 0
    %2069 = vmatmul.mubr.bf16.gmra.mxu0 %v2034
    %v2070 = vpop.f32.mrf.mxu0
    %v2071 = vadd.f32 0.0, %v2070
    %v2072 = vpop.f32.mrf.mxu0
    %v2073 = vpop.f32.mrf.mxu0
    %v2074 = vpop.f32.mrf.mxu0
    %2075 = vdwg.mxu0
    %v2076 = vadd.f32 %v2024, %v2071
    %v2077 = vmul.f32 %v2076, 0.5
    %v2078 = vtanh.pop %v2077
    %v2079 = vmul.f32 %v2078, 0.5
    %v2080 = vadd.f32 %v2079, 0.5
    %v2081 = vtanh.pop %v2076
    %v2082 = vmul.f32 %v2080, %v1971
    %2084 = vrot.lane.b32.xlu0 %v2081, 64
    %v2085 = vpop.permute.xlu0 %2084
    %v2087 = vmul.f32 %v2080, %v2085
    %2089 = vrot.lane.b32.xlu0 %v2087, 32
    %v2090 = vpop.permute.xlu0 %2089
    %v2092 = vadd.f32 %v2082, %v2090
    %v2093 = vtanh.pop %v2092
    %2095 = vrot.lane.b32.xlu0 %v2093, 64
    %v2096 = vpop.permute.xlu0 %2095
    %v2098 = vmul.f32 %v2080, %v2096
    %2100 = vrot.lane.b32.xlu0 %v2098, 32
    %v2101 = vpop.permute.xlu0 %2100
    %s2103 = scalar_lea.vmem [#allocation11], 16
    %2104 = vst.msk [vmem:[%s2103] sm:$0x3] %vm183, %v2101
    %v2105 = vld [vmem:[%s957] sm:$0x3]
    %v2106 = vpack.c.bf16 %v2105, %v2105
    %v2108 = vsel %vm94, %v2106, 0
    %2110 = vmatprep.subr.bf16.mxu0 0
    %2111 = vmatpush1.bf16.msra.mxu0 0
    %2112 = vmatprep.subr.bf16.mxu0 0
    %2113 = vmatpush1.bf16.msra.mxu0 0
    %2114 = vmatprep.subr.bf16.mxu0 0
    %2115 = vmatpush1.bf16.msra.mxu0 0
    %2116 = vmatprep.subr.bf16.mxu0 0
    %2117 = vmatpush1.bf16.msra.mxu0 0
    %2118 = vmatprep.subr.bf16.mxu0 0
    %2119 = vmatpush1.bf16.msra.mxu0 0
    %2120 = vmatprep.subr.bf16.mxu0 0
    %2121 = vmatpush1.bf16.msra.mxu0 0
    %2122 = vmatprep.subr.bf16.mxu0 0
    %2123 = vmatpush1.bf16.msra.mxu0 %v1003
    %2124 = vmatprep.subr.bf16.mxu0 0
    %2125 = vmatpush1.bf16.msra.mxu0 %v1002
    %2126 = vmatprep.subr.bf16.mxu0 0
    %2127 = vmatpush2.bf16.msra.mxu0 0
    %2128 = vmatprep.subr.bf16.mxu0 0
    %2129 = vmatpush2.bf16.msra.mxu0 0
    %2130 = vmatprep.subr.bf16.mxu0 0
    %2131 = vmatpush2.bf16.msra.mxu0 0
    %2132 = vmatprep.subr.bf16.mxu0 0
    %2133 = vmatpush2.bf16.msra.mxu0 0
    %2134 = vmatprep.subr.bf16.mxu0 0
    %2135 = vmatpush2.bf16.msra.mxu0 0
    %2136 = vmatprep.subr.bf16.mxu0 0
    %2137 = vmatpush2.bf16.msra.mxu0 0
    %2138 = vmatprep.subr.bf16.mxu0 0
    %2139 = vmatpush2.bf16.msra.mxu0 0
    %2140 = vmatprep.subr.bf16.mxu0 0
    %2141 = vmatpush2.bf16.msra.mxu0 0
    %2142 = vmatprep.mubr.bf16.mxu0 0
    %2143 = vmatmul.mubr.bf16.gmra.mxu0 %v2108
    %v2144 = vpop.f32.mrf.mxu0
    %v2145 = vadd.f32 %v992, %v2144
    %v2146 = vpop.f32.mrf.mxu0
    %v2147 = vpop.f32.mrf.mxu0
    %v2148 = vpop.f32.mrf.mxu0
    %2149 = vdwg.mxu0
    %v2150 = vpack.c.bf16 %v2098, %v2098
    %2152 = vrot.lane.b32.xlu0 %v2150, 32
    %v2153 = vpop.permute.xlu0 %2152
    %v2155 = vsel %vm94, %v2153, 0
    %2157 = vmatprep.subr.bf16.mxu0 0
    %2158 = vmatpush1.bf16.msra.mxu0 0
    %2159 = vmatprep.subr.bf16.mxu0 0
    %2160 = vmatpush1.bf16.msra.mxu0 0
    %2161 = vmatprep.subr.bf16.mxu0 0
    %2162 = vmatpush1.bf16.msra.mxu0 0
    %2163 = vmatprep.subr.bf16.mxu0 0
    %2164 = vmatpush1.bf16.msra.mxu0 0
    %2165 = vmatprep.subr.bf16.mxu0 0
    %2166 = vmatpush1.bf16.msra.mxu0 0
    %2167 = vmatprep.subr.bf16.mxu0 0
    %2168 = vmatpush1.bf16.msra.mxu0 0
    %2169 = vmatprep.subr.bf16.mxu0 0
    %2170 = vmatpush1.bf16.msra.mxu0 %v1059
    %2171 = vmatprep.subr.bf16.mxu0 0
    %2172 = vmatpush1.bf16.msra.mxu0 %v1058
    %2173 = vmatprep.subr.bf16.mxu0 0
    %2174 = vmatpush2.bf16.msra.mxu0 0
    %2175 = vmatprep.subr.bf16.mxu0 0
    %2176 = vmatpush2.bf16.msra.mxu0 0
    %2177 = vmatprep.subr.bf16.mxu0 0
    %2178 = vmatpush2.bf16.msra.mxu0 0
    %2179 = vmatprep.subr.bf16.mxu0 0
    %2180 = vmatpush2.bf16.msra.mxu0 0
    %2181 = vmatprep.subr.bf16.mxu0 0
    %2182 = vmatpush2.bf16.msra.mxu0 0
    %2183 = vmatprep.subr.bf16.mxu0 0
    %2184 = vmatpush2.bf16.msra.mxu0 0
    %2185 = vmatprep.subr.bf16.mxu0 0
    %2186 = vmatpush2.bf16.msra.mxu0 0
    %2187 = vmatprep.subr.bf16.mxu0 0
    %2188 = vmatpush2.bf16.msra.mxu0 0
    %2189 = vmatprep.mubr.bf16.mxu0 0
    %2190 = vmatmul.mubr.bf16.gmra.mxu0 %v2155
    %v2191 = vpop.f32.mrf.mxu0
    %v2192 = vadd.f32 0.0, %v2191
    %v2193 = vpop.f32.mrf.mxu0
    %v2194 = vpop.f32.mrf.mxu0
    %v2195 = vpop.f32.mrf.mxu0
    %2196 = vdwg.mxu0
    %v2197 = vadd.f32 %v2145, %v2192
    %v2198 = vmul.f32 %v2197, 0.5
    %v2199 = vtanh.pop %v2198
    %v2200 = vmul.f32 %v2199, 0.5
    %v2201 = vadd.f32 %v2200, 0.5
    %v2202 = vtanh.pop %v2197
    %v2203 = vmul.f32 %v2201, %v2092
    %2205 = vrot.lane.b32.xlu0 %v2202, 64
    %v2206 = vpop.permute.xlu0 %2205
    %v2208 = vmul.f32 %v2201, %v2206
    %2210 = vrot.lane.b32.xlu0 %v2208, 32
    %v2211 = vpop.permute.xlu0 %2210
    %v2213 = vadd.f32 %v2203, %v2211
    %v2214 = vtanh.pop %v2213
    %2216 = vrot.lane.b32.xlu0 %v2214, 64
    %v2217 = vpop.permute.xlu0 %2216
    %v2219 = vmul.f32 %v2201, %v2217
    %2221 = vrot.lane.b32.xlu0 %v2219, 32
    %v2222 = vpop.permute.xlu0 %2221
    %s2224 = scalar_lea.vmem [#allocation11], 18
    %2225 = vst.msk [vmem:[%s2224] sm:$0x3] %vm183, %v2222
    %2226 = vst.msk [vmem:[%s982] sm:$0x3] %vm183, %v2222
    %2228 = vrot.lane.b32.xlu0 %v2213, 96
    %v2229 = vpop.permute.xlu0 %2228
    %2231 = vst.msk [vmem:[%s984] sm:$0x3] %vm183, %v2229
    %v2232 = vld [vmem:[#allocation3] sm:$0x3]
    %v2233 = vld [vmem:[#allocation3 + $0x2] sm:$0x3]
    %2234 = vst.msk [vmem:[#allocation12] sm:$0x3] %vm183, %v2232
    %2235 = vst.msk [vmem:[#allocation12 + $0x2] sm:$0x3] %vm183, %v2233
    %v2236 = vld [vmem:[#allocation4] sm:$0x3]
    %v2237 = vld [vmem:[#allocation4 + $0x2] sm:$0x3]
    %2238 = vst.msk [vmem:[#allocation14] sm:$0x3] %vm183, %v2236
    %2239 = vst.msk [vmem:[#allocation14 + $0x2] sm:$0x3] %vm183, %v2237
    // Predicated region
    $region34: #{tpu_custom_call.1} parent=1 // pred_check
      _
    $region35: #{tpu_custom_call.1} parent=1 // pred_check_branch
      %2241 = sbr.rel (0) target = $region37
    $region36: #{tpu_custom_call.1} parent=1 // pred_region
      %s2243 = ssub.s32 320, 320
      %2244 = vsyncadd [#allocation7], %s2243
      %s2245 = sshll.u32 [#allocation11], 4
      %s2246 = int_to_ptr.vmem [resolvable:$true] %s2245
      %2251 = dma.vmem_to_hbm [thread:$0]  %s2246, 320, %s4, [#allocation7], 32, 32, 2
    $region37: #{tpu_custom_call.1} parent=1 // pred_fallthru
      _
    // Predicated region
    $region38: #{tpu_custom_call.1} parent=1 // pred_check
      _
    $region39: #{tpu_custom_call.1} parent=1 // pred_check_branch
      %2253 = sbr.rel (0) target = $region41
    $region40: #{tpu_custom_call.1} parent=1 // pred_region
      %s2255 = ssub.s32 64, 64
      %2256 = vsyncadd [#allocation13], %s2255
      %s2257 = sshll.u32 [#allocation12], 4
      %s2258 = int_to_ptr.vmem [resolvable:$true] %s2257
      %2263 = dma.vmem_to_hbm [thread:$0]  %s2258, 64, %s5, [#allocation13], 32, 32, 2
    $region41: #{tpu_custom_call.1} parent=1 // pred_fallthru
      _
    // Predicated region
    $region42: #{tpu_custom_call.1} parent=1 // pred_check
      _
    $region43: #{tpu_custom_call.1} parent=1 // pred_check_branch
      %2265 = sbr.rel (0) target = $region45
    $region44: #{tpu_custom_call.1} parent=1 // pred_region
      %s2267 = ssub.s32 64, 64
      %2268 = vsyncadd [#allocation13], %s2267
      %s2269 = sshll.u32 [#allocation14], 4
      %s2270 = int_to_ptr.vmem [resolvable:$true] %s2269
      %2275 = dma.vmem_to_hbm [thread:$0]  %s2270, 64, %s6, [#allocation13], 32, 32, 2
    $region45: #{tpu_custom_call.1} parent=1 // pred_fallthru
      _
    // Predicated region
    $region46: #{tpu_custom_call.1} parent=1 // pred_check
      _
    $region47: #{tpu_custom_call.1} parent=1 // pred_check_branch
      %2277 = sbr.rel (0) target = $region49
    $region48: #{tpu_custom_call.1} parent=1 // pred_region
      %2278 = dma.done [#allocation7], 320
    $region49: #{tpu_custom_call.1} parent=1 // pred_fallthru
      _
    // Predicated region
    $region50: #{tpu_custom_call.1} parent=1 // pred_check
      _
    $region51: #{tpu_custom_call.1} parent=1 // pred_check_branch
      %2280 = sbr.rel (0) target = $region53
    $region52: #{tpu_custom_call.1} parent=1 // pred_region
      %2281 = dma.done [#allocation13], 64
    $region53: #{tpu_custom_call.1} parent=1 // pred_fallthru
      _
    // Predicated region
    $region54: #{tpu_custom_call.1} parent=1 // pred_check
      _
    $region55: #{tpu_custom_call.1} parent=1 // pred_check_branch
      %2283 = sbr.rel (0) target = $region57
    $region56: #{tpu_custom_call.1} parent=1 // pred_region
      %2284 = dma.done [#allocation13], 64
    $region57: #{tpu_custom_call.1} parent=1 // pred_fallthru
      _
    %2285 = vsyncpa [#allocation6], 1
    %2286 = vsyncpa [#allocation9], 1
    %2287 = vsyncpa [#allocation7], 1
    %2288 = vsyncpa [#allocation13], 1

</llo_original>
